<compile_context>
chip_gen: v5e
topology: v5e:2x2
jax: 0.10.0
libtpu: 0.0.40
codegen_flags: <defaults>
</compile_context>

<pallas_src>
import functools

import jax
import jax.numpy as jnp
from jax.experimental import pallas as pl
from jax.experimental.pallas import tpu as pltpu


def _aspect_imp_kernel(wproj_ref, whead_ref, act_ref, out_ref, *,
                       A_u, A_i, h1, h2):
    TB = act_ref.shape[-1]          # batch-tile width (lane axis)
    K_u = A_u * h1

    act = act_ref[...]                                  # (A_u*h1 + A_i*h1, TB)
    u3 = act[:K_u].reshape(A_u, h1, TB)                 # u3[p, k, b] = u[b, p, k]
    i3 = act[K_u:].reshape(A_i, h1, TB)                 # i3[q, k, b] = i[b, q, k]

    # ---- Single fused, lane-dense projection matmul on the MXU ------------
    # p_all[p*h2 + x, b] = sum_k W_u[x, k] * u[b, p, k]   (user rows)
    # p_all[A_u*h2 + q*h2 + x, b] = sum_k W_i[x, k] * i[b, q, k]  (item rows)
    p_all = jnp.dot(wproj_ref[...], act, preferred_element_type=jnp.float32)
    p_u3 = p_all[:A_u * h2].reshape(A_u, h2, TB)        # (W_u u^T)[b, x, p]
    p_i3 = p_all[A_u * h2:].reshape(A_i, h2, TB)        # (W_i i^T)[b, x, q]

    # ---- Pairwise L1 similarity + sim mixing, unrolled over item aspects ---
    acc_u = jnp.zeros((A_u, h2, TB), jnp.float32)       # sum_q sim[p,q] * P_i[q]
    hi_rows = []                                        # row q: sum_p sim[p,q]*P_u[p]
    for q in range(A_i):                                # A_i is small and static
        d_q = jnp.sum(jnp.abs(u3 - i3[q][None, :, :]), axis=1)    # (A_u, TB)
        s_q = 1.0 / (1.0 + d_q)                                    # sim[b, :, q]
        acc_u = acc_u + s_q[:, None, :] * p_i3[q][None, :, :]      # (A_u, h2, TB)
        hi_rows.append(jnp.sum(s_q[:, None, :] * p_u3, axis=0))    # (h2, TB)

    h_u = jnp.maximum(p_u3 + acc_u, 0.0).reshape(A_u * h2, TB)
    h_i = jnp.maximum(p_i3 + jnp.stack(hi_rows, axis=0), 0.0).reshape(A_i * h2, TB)

    # ---- Fused head projection: one small MXU matmul ------------------------
    scores = jnp.dot(whead_ref[...], jnp.concatenate([h_u, h_i], axis=0),
                     preferred_element_type=jnp.float32)           # (A_u+A_i, TB)
    s_u = scores[:A_u]
    s_i = scores[A_u:]

    # Softmax over the aspect (sublane) axis, independently per batch column.
    e_u = jnp.exp(s_u - jnp.max(s_u, axis=0, keepdims=True))
    e_i = jnp.exp(s_i - jnp.max(s_i, axis=0, keepdims=True))
    out_u = e_u / jnp.sum(e_u, axis=0, keepdims=True)
    out_i = e_i / jnp.sum(e_i, axis=0, keepdims=True)

    # Single lane-dense store of the fused (2A, TB) slab.
    out_ref[...] = jnp.concatenate([out_u, out_i], axis=0)


def _block_diag(a, b):
    za = jnp.zeros((a.shape[0], b.shape[1]), a.dtype)
    zb = jnp.zeros((b.shape[0], a.shape[1]), a.dtype)
    return jnp.concatenate(
        [jnp.concatenate([a, za], axis=1), jnp.concatenate([zb, b], axis=1)],
        axis=0)


def aspect_imp(user_asp, item_asp, W_u, W_i, w_hu, w_hi, *, batch_tile=128):
    """Pallas AspectImp.forward. Returns (userAspImpt, itemAspImpt), each (B, A)."""
    B, A_u, h1 = user_asp.shape
    _, A_i, _ = item_asp.shape
    h2 = W_u.shape[0]
    assert batch_tile % 128 == 0, "keep the lane (batch) axis 128-dense"
    # Tuning note: batch_tile=256 is a good choice on v6e (256-wide MXU, big
    # VMEM); 128 keeps >=2 grid steps for v7x megacore at moderate batch sizes.

    # Fused block-diagonal weights (built once, outside the kernel).
    eye_u = jnp.eye(A_u, dtype=W_u.dtype)
    eye_i = jnp.eye(A_i, dtype=W_i.dtype)
    wproj = _block_diag(jnp.kron(eye_u, W_u), jnp.kron(eye_i, W_i))
    whead = _block_diag(jnp.kron(eye_u, w_hu.T), jnp.kron(eye_i, w_hi.T))

    # Batch-on-lanes activation slab:
    #   row p*h1 + k            -> user[b, p, k]
    #   row A_u*h1 + q*h1 + k   -> item[b, q, k]
    K_u, K_i = A_u * h1, A_i * h1
    act = jnp.concatenate([user_asp.reshape(B, K_u),
                           item_asp.reshape(B, K_i)], axis=1).T     # (K_u+K_i, B)

    TB = batch_tile
    Bp = pl.cdiv(B, TB) * TB
    if Bp != B:
        act = jnp.pad(act, ((0, 0), (0, Bp - B)))   # zero cols -> finite, discarded

    kernel = functools.partial(_aspect_imp_kernel, A_u=A_u, A_i=A_i, h1=h1, h2=h2)
    out = pl.pallas_call(
        kernel,
        out_shape=jax.ShapeDtypeStruct((A_u + A_i, Bp), jnp.float32),
        grid_spec=pltpu.PrefetchScalarGridSpec(
            num_scalar_prefetch=0,
            grid=(Bp // TB,),
            in_specs=[
                pl.BlockSpec(wproj.shape, lambda t: (0, 0)),        # fused proj weight
                pl.BlockSpec(whead.shape, lambda t: (0, 0)),        # fused head weight
                pl.BlockSpec((K_u + K_i, TB), lambda t: (0, t)),    # activations
            ],
            out_specs=pl.BlockSpec((A_u + A_i, TB), lambda t: (0, t)),
        ),
        compiler_params=pltpu.CompilerParams(
            dimension_semantics=("parallel",)),      # batch tiles -> megacore
    )(wproj, whead, act)

    return out[:A_u, :B].T, out[A_u:, :B].T


def aspect_imp_reference(user_asp, item_asp, W_u, W_i, w_hu, w_hi):
    """Plain-JAX mirror of the PyTorch forward (for correctness checking)."""
    P = jax.lax.Precision.HIGHEST
    uT = jnp.swapaxes(user_asp, 1, 2)                 # (B, h1, A_u)
    iT = jnp.swapaxes(item_asp, 1, 2)                 # (B, h1, A_i)
    diff = jnp.abs(user_asp[:, :, None, :] - item_asp[:, None, :, :])
    sim = 1.0 / (1.0 + diff.sum(-1))                  # (B, A_u, A_i)

    H_u = jax.nn.relu(jnp.matmul(W_u, uT, precision=P) +
                      jnp.matmul(jnp.matmul(W_i, iT, precision=P),
                                 jnp.swapaxes(sim, 1, 2), precision=P))
    u_imp = jnp.matmul(w_hu.T, H_u, precision=P)      # (B, 1, A_u)
    u_imp = jax.nn.softmax(jnp.swapaxes(u_imp, 1, 2), axis=1)[:, :, 0]

    H_i = jax.nn.relu(jnp.matmul(W_i, iT, precision=P) +
                      jnp.matmul(jnp.matmul(W_u, uT, precision=P), sim, precision=P))
    i_imp = jnp.matmul(w_hi.T, H_i, precision=P)      # (B, 1, A_i)
    i_imp = jax.nn.softmax(jnp.swapaxes(i_imp, 1, 2), axis=1)[:, :, 0]
    return u_imp, i_imp


if __name__ == "__main__":
    def make_inputs(key, B, A, h1, h2):
        k = jax.random.split(key, 6)
        user = jax.random.normal(k[0], (B, A, h1), dtype=jnp.float32)
        item = jax.random.normal(k[1], (B, A, h1), dtype=jnp.float32)
        # Parameter init mirroring the module's uniform_(-0.01, 0.01).
        W_u = jax.random.uniform(k[2], (h2, h1), minval=-0.01, maxval=0.01, dtype=jnp.float32)
        W_i = jax.random.uniform(k[3], (h2, h1), minval=-0.01, maxval=0.01, dtype=jnp.float32)
        w_hu = jax.random.uniform(k[4], (h2, 1), minval=-0.01, maxval=0.01, dtype=jnp.float32)
        w_hi = jax.random.uniform(k[5], (h2, 1), minval=-0.01, maxval=0.01, dtype=jnp.float32)
        return user, item, W_u, W_i, w_hu, w_hi

    # Small config implied by the module: A aspects, h1/h2 hidden sizes.
    B, A, h1, h2 = 2, 8, 32, 16
    args = make_inputs(jax.random.PRNGKey(0), B, A, h1, h2)
    u_imp, i_imp = aspect_imp(*args)
    (u_imp, i_imp) = jax.block_until_ready((u_imp, i_imp))

    u_ref, i_ref = aspect_imp_reference(*args)
    assert u_imp.shape == (B, A) and i_imp.shape == (B, A)
    assert jnp.allclose(u_imp, u_ref, atol=1e-5, rtol=1e-5)
    assert jnp.allclose(i_imp, i_ref, atol=1e-5, rtol=1e-5)

    # Slightly larger batch: exercises the multi-step grid + batch-padding path.
    B2 = 300
    args2 = make_inputs(jax.random.PRNGKey(1), B2, A, h1, h2)
    u2, i2 = aspect_imp(*args2, batch_tile=128)
    (u2, i2) = jax.block_until_ready((u2, i2))
    u2_ref, i2_ref = aspect_imp_reference(*args2)
    assert u2.shape == (B2, A) and i2.shape == (B2, A)
    assert jnp.allclose(u2, u2_ref, atol=1e-5, rtol=1e-5)
    assert jnp.allclose(i2, i2_ref, atol=1e-5, rtol=1e-5)

    print("KERNEL_OK")
</pallas_src>

<mosaic_0001>
module attributes {stable_mosaic.version = 11 : i64} {
  func.func @_aspect_imp_kernel(%arg0: i32, %arg1: memref<256x512xf32, #tpu.memory_space<vmem>>, %arg2: memref<16x256xf32, #tpu.memory_space<vmem>>, %arg3: memref<512x128xf32, #tpu.memory_space<vmem>>, %arg4: memref<16x128xf32, #tpu.memory_space<vmem>>) attributes {dimension_semantics = [#tpu.dimension_semantics<parallel>], iteration_bounds = array<i64: 1>, scalar_prefetch = 0 : i64, scratch_operands = 0 : i64, tpu.core_type = #tpu.core_type<tc>, window_params = [{pipeline_mode = #tpu.pipeline_mode<synchronous>, transform_indices = @transform_0, window_bounds = array<i64: 256, 512>}, {pipeline_mode = #tpu.pipeline_mode<synchronous>, transform_indices = @transform_1, window_bounds = array<i64: 16, 256>}, {transform_indices = @transform_2, window_bounds = array<i64: 512, 128>}, {transform_indices = @transform_3, window_bounds = array<i64: 16, 128>}]} {
    %c0 = arith.constant 0 : index
    %c0_0 = arith.constant 0 : index
    %0 = vector.load %arg3[%c0, %c0_0] : memref<512x128xf32, #tpu.memory_space<vmem>>, vector<512x128xf32>
    %1 = vector.extract_strided_slice %0 {offsets = [0, 0], sizes = [256, 128], strides = [1, 1]} : vector<512x128xf32> to vector<256x128xf32>
    %2 = vector.shape_cast %1 : vector<256x128xf32> to vector<8x32x128xf32>
    %3 = vector.extract_strided_slice %0 {offsets = [256, 0], sizes = [256, 128], strides = [1, 1]} : vector<512x128xf32> to vector<256x128xf32>
    %4 = vector.shape_cast %3 : vector<256x128xf32> to vector<8x32x128xf32>
    %c0_1 = arith.constant 0 : index
    %c0_2 = arith.constant 0 : index
    %5 = vector.load %arg1[%c0_1, %c0_2] : memref<256x512xf32, #tpu.memory_space<vmem>>, vector<256x512xf32>
    %cst = arith.constant dense<0.000000e+00> : vector<256x128xf32>
    %6 = tpu.matmul %5, %0, %cst {dimension_numbers = #tpu.dot_dimension_numbers<[1], [0], [0], [1], [0, 0, 1, 1], [], []>} : vector<256x512xf32>, vector<512x128xf32>, vector<256x128xf32> -> vector<256x128xf32>
    %7 = vector.extract_strided_slice %6 {offsets = [0, 0], sizes = [128, 128], strides = [1, 1]} : vector<256x128xf32> to vector<128x128xf32>
    %8 = vector.shape_cast %7 : vector<128x128xf32> to vector<8x16x128xf32>
    %9 = vector.extract_strided_slice %6 {offsets = [128, 0], sizes = [128, 128], strides = [1, 1]} : vector<256x128xf32> to vector<128x128xf32>
    %10 = vector.shape_cast %9 : vector<128x128xf32> to vector<8x16x128xf32>
    %cst_3 = arith.constant 0.000000e+00 : f32
    %11 = vector.broadcast %cst_3 : f32 to vector<8x16x128xf32>
    %12 = vector.extract_strided_slice %4 {offsets = [0, 0, 0], sizes = [1, 32, 128], strides = [1, 1, 1]} : vector<8x32x128xf32> to vector<1x32x128xf32>
    %13 = vector.shape_cast %12 : vector<1x32x128xf32> to vector<32x128xf32>
    %14 = vector.shape_cast %13 : vector<32x128xf32> to vector<1x32x128xf32>
    %15 = vector.broadcast %14 : vector<1x32x128xf32> to vector<8x32x128xf32>
    %16 = arith.subf %2, %15 : vector<8x32x128xf32>
    %17 = math.absf %16 : vector<8x32x128xf32>
    %cst_4 = arith.constant dense<0.000000e+00> : vector<8x128xf32>
    %18 = vector.multi_reduction <add>, %17, %cst_4 [1] : vector<8x32x128xf32> to vector<8x128xf32>
    %cst_5 = arith.constant 1.000000e+00 : f32
    %19 = vector.broadcast %cst_5 : f32 to vector<8x128xf32>
    %20 = arith.addf %19, %18 : vector<8x128xf32>
    %cst_6 = arith.constant 1.000000e+00 : f32
    %21 = vector.broadcast %cst_6 : f32 to vector<8x128xf32>
    %22 = arith.divf %21, %20 : vector<8x128xf32>
    %23 = vector.shape_cast %22 : vector<8x128xf32> to vector<8x1x128xf32>
    %24 = vector.extract_strided_slice %10 {offsets = [0, 0, 0], sizes = [1, 16, 128], strides = [1, 1, 1]} : vector<8x16x128xf32> to vector<1x16x128xf32>
    %25 = vector.shape_cast %24 : vector<1x16x128xf32> to vector<16x128xf32>
    %26 = vector.shape_cast %25 : vector<16x128xf32> to vector<1x16x128xf32>
    %27 = vector.broadcast %23 : vector<8x1x128xf32> to vector<8x16x128xf32>
    %28 = vector.broadcast %26 : vector<1x16x128xf32> to vector<8x16x128xf32>
    %29 = arith.mulf %27, %28 : vector<8x16x128xf32>
    %30 = arith.addf %11, %29 : vector<8x16x128xf32>
    %31 = vector.shape_cast %22 : vector<8x128xf32> to vector<8x1x128xf32>
    %32 = vector.broadcast %31 : vector<8x1x128xf32> to vector<8x16x128xf32>
    %33 = arith.mulf %32, %8 : vector<8x16x128xf32>
    %cst_7 = arith.constant dense<0.000000e+00> : vector<16x128xf32>
    %34 = vector.multi_reduction <add>, %33, %cst_7 [0] : vector<8x16x128xf32> to vector<16x128xf32>
    %35 = vector.extract_strided_slice %4 {offsets = [1, 0, 0], sizes = [1, 32, 128], strides = [1, 1, 1]} : vector<8x32x128xf32> to vector<1x32x128xf32>
    %36 = vector.shape_cast %35 : vector<1x32x128xf32> to vector<32x128xf32>
    %37 = vector.shape_cast %36 : vector<32x128xf32> to vector<1x32x128xf32>
    %38 = vector.broadcast %37 : vector<1x32x128xf32> to vector<8x32x128xf32>
    %39 = arith.subf %2, %38 : vector<8x32x128xf32>
    %40 = math.absf %39 : vector<8x32x128xf32>
    %cst_8 = arith.constant dense<0.000000e+00> : vector<8x128xf32>
    %41 = vector.multi_reduction <add>, %40, %cst_8 [1] : vector<8x32x128xf32> to vector<8x128xf32>
    %cst_9 = arith.constant 1.000000e+00 : f32
    %42 = vector.broadcast %cst_9 : f32 to vector<8x128xf32>
    %43 = arith.addf %42, %41 : vector<8x128xf32>
    %cst_10 = arith.constant 1.000000e+00 : f32
    %44 = vector.broadcast %cst_10 : f32 to vector<8x128xf32>
    %45 = arith.divf %44, %43 : vector<8x128xf32>
    %46 = vector.shape_cast %45 : vector<8x128xf32> to vector<8x1x128xf32>
    %47 = vector.extract_strided_slice %10 {offsets = [1, 0, 0], sizes = [1, 16, 128], strides = [1, 1, 1]} : vector<8x16x128xf32> to vector<1x16x128xf32>
    %48 = vector.shape_cast %47 : vector<1x16x128xf32> to vector<16x128xf32>
    %49 = vector.shape_cast %48 : vector<16x128xf32> to vector<1x16x128xf32>
    %50 = vector.broadcast %46 : vector<8x1x128xf32> to vector<8x16x128xf32>
    %51 = vector.broadcast %49 : vector<1x16x128xf32> to vector<8x16x128xf32>
    %52 = arith.mulf %50, %51 : vector<8x16x128xf32>
    %53 = arith.addf %30, %52 : vector<8x16x128xf32>
    %54 = vector.shape_cast %45 : vector<8x128xf32> to vector<8x1x128xf32>
    %55 = vector.broadcast %54 : vector<8x1x128xf32> to vector<8x16x128xf32>
    %56 = arith.mulf %55, %8 : vector<8x16x128xf32>
    %cst_11 = arith.constant dense<0.000000e+00> : vector<16x128xf32>
    %57 = vector.multi_reduction <add>, %56, %cst_11 [0] : vector<8x16x128xf32> to vector<16x128xf32>
    %58 = vector.extract_strided_slice %4 {offsets = [2, 0, 0], sizes = [1, 32, 128], strides = [1, 1, 1]} : vector<8x32x128xf32> to vector<1x32x128xf32>
    %59 = vector.shape_cast %58 : vector<1x32x128xf32> to vector<32x128xf32>
    %60 = vector.shape_cast %59 : vector<32x128xf32> to vector<1x32x128xf32>
    %61 = vector.broadcast %60 : vector<1x32x128xf32> to vector<8x32x128xf32>
    %62 = arith.subf %2, %61 : vector<8x32x128xf32>
    %63 = math.absf %62 : vector<8x32x128xf32>
    %cst_12 = arith.constant dense<0.000000e+00> : vector<8x128xf32>
    %64 = vector.multi_reduction <add>, %63, %cst_12 [1] : vector<8x32x128xf32> to vector<8x128xf32>
    %cst_13 = arith.constant 1.000000e+00 : f32
    %65 = vector.broadcast %cst_13 : f32 to vector<8x128xf32>
    %66 = arith.addf %65, %64 : vector<8x128xf32>
    %cst_14 = arith.constant 1.000000e+00 : f32
    %67 = vector.broadcast %cst_14 : f32 to vector<8x128xf32>
    %68 = arith.divf %67, %66 : vector<8x128xf32>
    %69 = vector.shape_cast %68 : vector<8x128xf32> to vector<8x1x128xf32>
    %70 = vector.extract_strided_slice %10 {offsets = [2, 0, 0], sizes = [1, 16, 128], strides = [1, 1, 1]} : vector<8x16x128xf32> to vector<1x16x128xf32>
    %71 = vector.shape_cast %70 : vector<1x16x128xf32> to vector<16x128xf32>
    %72 = vector.shape_cast %71 : vector<16x128xf32> to vector<1x16x128xf32>
    %73 = vector.broadcast %69 : vector<8x1x128xf32> to vector<8x16x128xf32>
    %74 = vector.broadcast %72 : vector<1x16x128xf32> to vector<8x16x128xf32>
    %75 = arith.mulf %73, %74 : vector<8x16x128xf32>
    %76 = arith.addf %53, %75 : vector<8x16x128xf32>
    %77 = vector.shape_cast %68 : vector<8x128xf32> to vector<8x1x128xf32>
    %78 = vector.broadcast %77 : vector<8x1x128xf32> to vector<8x16x128xf32>
    %79 = arith.mulf %78, %8 : vector<8x16x128xf32>
    %cst_15 = arith.constant dense<0.000000e+00> : vector<16x128xf32>
    %80 = vector.multi_reduction <add>, %79, %cst_15 [0] : vector<8x16x128xf32> to vector<16x128xf32>
    %81 = vector.extract_strided_slice %4 {offsets = [3, 0, 0], sizes = [1, 32, 128], strides = [1, 1, 1]} : vector<8x32x128xf32> to vector<1x32x128xf32>
    %82 = vector.shape_cast %81 : vector<1x32x128xf32> to vector<32x128xf32>
    %83 = vector.shape_cast %82 : vector<32x128xf32> to vector<1x32x128xf32>
    %84 = vector.broadcast %83 : vector<1x32x128xf32> to vector<8x32x128xf32>
    %85 = arith.subf %2, %84 : vector<8x32x128xf32>
    %86 = math.absf %85 : vector<8x32x128xf32>
    %cst_16 = arith.constant dense<0.000000e+00> : vector<8x128xf32>
    %87 = vector.multi_reduction <add>, %86, %cst_16 [1] : vector<8x32x128xf32> to vector<8x128xf32>
    %cst_17 = arith.constant 1.000000e+00 : f32
    %88 = vector.broadcast %cst_17 : f32 to vector<8x128xf32>
    %89 = arith.addf %88, %87 : vector<8x128xf32>
    %cst_18 = arith.constant 1.000000e+00 : f32
    %90 = vector.broadcast %cst_18 : f32 to vector<8x128xf32>
    %91 = arith.divf %90, %89 : vector<8x128xf32>
    %92 = vector.shape_cast %91 : vector<8x128xf32> to vector<8x1x128xf32>
    %93 = vector.extract_strided_slice %10 {offsets = [3, 0, 0], sizes = [1, 16, 128], strides = [1, 1, 1]} : vector<8x16x128xf32> to vector<1x16x128xf32>
    %94 = vector.shape_cast %93 : vector<1x16x128xf32> to vector<16x128xf32>
    %95 = vector.shape_cast %94 : vector<16x128xf32> to vector<1x16x128xf32>
    %96 = vector.broadcast %92 : vector<8x1x128xf32> to vector<8x16x128xf32>
    %97 = vector.broadcast %95 : vector<1x16x128xf32> to vector<8x16x128xf32>
    %98 = arith.mulf %96, %97 : vector<8x16x128xf32>
    %99 = arith.addf %76, %98 : vector<8x16x128xf32>
    %100 = vector.shape_cast %91 : vector<8x128xf32> to vector<8x1x128xf32>
    %101 = vector.broadcast %100 : vector<8x1x128xf32> to vector<8x16x128xf32>
    %102 = arith.mulf %101, %8 : vector<8x16x128xf32>
    %cst_19 = arith.constant dense<0.000000e+00> : vector<16x128xf32>
    %103 = vector.multi_reduction <add>, %102, %cst_19 [0] : vector<8x16x128xf32> to vector<16x128xf32>
    %104 = vector.extract_strided_slice %4 {offsets = [4, 0, 0], sizes = [1, 32, 128], strides = [1, 1, 1]} : vector<8x32x128xf32> to vector<1x32x128xf32>
    %105 = vector.shape_cast %104 : vector<1x32x128xf32> to vector<32x128xf32>
    %106 = vector.shape_cast %105 : vector<32x128xf32> to vector<1x32x128xf32>
    %107 = vector.broadcast %106 : vector<1x32x128xf32> to vector<8x32x128xf32>
    %108 = arith.subf %2, %107 : vector<8x32x128xf32>
    %109 = math.absf %108 : vector<8x32x128xf32>
    %cst_20 = arith.constant dense<0.000000e+00> : vector<8x128xf32>
    %110 = vector.multi_reduction <add>, %109, %cst_20 [1] : vector<8x32x128xf32> to vector<8x128xf32>
    %cst_21 = arith.constant 1.000000e+00 : f32
    %111 = vector.broadcast %cst_21 : f32 to vector<8x128xf32>
    %112 = arith.addf %111, %110 : vector<8x128xf32>
    %cst_22 = arith.constant 1.000000e+00 : f32
    %113 = vector.broadcast %cst_22 : f32 to vector<8x128xf32>
    %114 = arith.divf %113, %112 : vector<8x128xf32>
    %115 = vector.shape_cast %114 : vector<8x128xf32> to vector<8x1x128xf32>
    %116 = vector.extract_strided_slice %10 {offsets = [4, 0, 0], sizes = [1, 16, 128], strides = [1, 1, 1]} : vector<8x16x128xf32> to vector<1x16x128xf32>
    %117 = vector.shape_cast %116 : vector<1x16x128xf32> to vector<16x128xf32>
    %118 = vector.shape_cast %117 : vector<16x128xf32> to vector<1x16x128xf32>
    %119 = vector.broadcast %115 : vector<8x1x128xf32> to vector<8x16x128xf32>
    %120 = vector.broadcast %118 : vector<1x16x128xf32> to vector<8x16x128xf32>
    %121 = arith.mulf %119, %120 : vector<8x16x128xf32>
    %122 = arith.addf %99, %121 : vector<8x16x128xf32>
    %123 = vector.shape_cast %114 : vector<8x128xf32> to vector<8x1x128xf32>
    %124 = vector.broadcast %123 : vector<8x1x128xf32> to vector<8x16x128xf32>
    %125 = arith.mulf %124, %8 : vector<8x16x128xf32>
    %cst_23 = arith.constant dense<0.000000e+00> : vector<16x128xf32>
    %126 = vector.multi_reduction <add>, %125, %cst_23 [0] : vector<8x16x128xf32> to vector<16x128xf32>
    %127 = vector.extract_strided_slice %4 {offsets = [5, 0, 0], sizes = [1, 32, 128], strides = [1, 1, 1]} : vector<8x32x128xf32> to vector<1x32x128xf32>
    %128 = vector.shape_cast %127 : vector<1x32x128xf32> to vector<32x128xf32>
    %129 = vector.shape_cast %128 : vector<32x128xf32> to vector<1x32x128xf32>
    %130 = vector.broadcast %129 : vector<1x32x128xf32> to vector<8x32x128xf32>
    %131 = arith.subf %2, %130 : vector<8x32x128xf32>
    %132 = math.absf %131 : vector<8x32x128xf32>
    %cst_24 = arith.constant dense<0.000000e+00> : vector<8x128xf32>
    %133 = vector.multi_reduction <add>, %132, %cst_24 [1] : vector<8x32x128xf32> to vector<8x128xf32>
    %cst_25 = arith.constant 1.000000e+00 : f32
    %134 = vector.broadcast %cst_25 : f32 to vector<8x128xf32>
    %135 = arith.addf %134, %133 : vector<8x128xf32>
    %cst_26 = arith.constant 1.000000e+00 : f32
    %136 = vector.broadcast %cst_26 : f32 to vector<8x128xf32>
    %137 = arith.divf %136, %135 : vector<8x128xf32>
    %138 = vector.shape_cast %137 : vector<8x128xf32> to vector<8x1x128xf32>
    %139 = vector.extract_strided_slice %10 {offsets = [5, 0, 0], sizes = [1, 16, 128], strides = [1, 1, 1]} : vector<8x16x128xf32> to vector<1x16x128xf32>
    %140 = vector.shape_cast %139 : vector<1x16x128xf32> to vector<16x128xf32>
    %141 = vector.shape_cast %140 : vector<16x128xf32> to vector<1x16x128xf32>
    %142 = vector.broadcast %138 : vector<8x1x128xf32> to vector<8x16x128xf32>
    %143 = vector.broadcast %141 : vector<1x16x128xf32> to vector<8x16x128xf32>
    %144 = arith.mulf %142, %143 : vector<8x16x128xf32>
    %145 = arith.addf %122, %144 : vector<8x16x128xf32>
    %146 = vector.shape_cast %137 : vector<8x128xf32> to vector<8x1x128xf32>
    %147 = vector.broadcast %146 : vector<8x1x128xf32> to vector<8x16x128xf32>
    %148 = arith.mulf %147, %8 : vector<8x16x128xf32>
    %cst_27 = arith.constant dense<0.000000e+00> : vector<16x128xf32>
    %149 = vector.multi_reduction <add>, %148, %cst_27 [0] : vector<8x16x128xf32> to vector<16x128xf32>
    %150 = vector.extract_strided_slice %4 {offsets = [6, 0, 0], sizes = [1, 32, 128], strides = [1, 1, 1]} : vector<8x32x128xf32> to vector<1x32x128xf32>
    %151 = vector.shape_cast %150 : vector<1x32x128xf32> to vector<32x128xf32>
    %152 = vector.shape_cast %151 : vector<32x128xf32> to vector<1x32x128xf32>
    %153 = vector.broadcast %152 : vector<1x32x128xf32> to vector<8x32x128xf32>
    %154 = arith.subf %2, %153 : vector<8x32x128xf32>
    %155 = math.absf %154 : vector<8x32x128xf32>
    %cst_28 = arith.constant dense<0.000000e+00> : vector<8x128xf32>
    %156 = vector.multi_reduction <add>, %155, %cst_28 [1] : vector<8x32x128xf32> to vector<8x128xf32>
    %cst_29 = arith.constant 1.000000e+00 : f32
    %157 = vector.broadcast %cst_29 : f32 to vector<8x128xf32>
    %158 = arith.addf %157, %156 : vector<8x128xf32>
    %cst_30 = arith.constant 1.000000e+00 : f32
    %159 = vector.broadcast %cst_30 : f32 to vector<8x128xf32>
    %160 = arith.divf %159, %158 : vector<8x128xf32>
    %161 = vector.shape_cast %160 : vector<8x128xf32> to vector<8x1x128xf32>
    %162 = vector.extract_strided_slice %10 {offsets = [6, 0, 0], sizes = [1, 16, 128], strides = [1, 1, 1]} : vector<8x16x128xf32> to vector<1x16x128xf32>
    %163 = vector.shape_cast %162 : vector<1x16x128xf32> to vector<16x128xf32>
    %164 = vector.shape_cast %163 : vector<16x128xf32> to vector<1x16x128xf32>
    %165 = vector.broadcast %161 : vector<8x1x128xf32> to vector<8x16x128xf32>
    %166 = vector.broadcast %164 : vector<1x16x128xf32> to vector<8x16x128xf32>
    %167 = arith.mulf %165, %166 : vector<8x16x128xf32>
    %168 = arith.addf %145, %167 : vector<8x16x128xf32>
    %169 = vector.shape_cast %160 : vector<8x128xf32> to vector<8x1x128xf32>
    %170 = vector.broadcast %169 : vector<8x1x128xf32> to vector<8x16x128xf32>
    %171 = arith.mulf %170, %8 : vector<8x16x128xf32>
    %cst_31 = arith.constant dense<0.000000e+00> : vector<16x128xf32>
    %172 = vector.multi_reduction <add>, %171, %cst_31 [0] : vector<8x16x128xf32> to vector<16x128xf32>
    %173 = vector.extract_strided_slice %4 {offsets = [7, 0, 0], sizes = [1, 32, 128], strides = [1, 1, 1]} : vector<8x32x128xf32> to vector<1x32x128xf32>
    %174 = vector.shape_cast %173 : vector<1x32x128xf32> to vector<32x128xf32>
    %175 = vector.shape_cast %174 : vector<32x128xf32> to vector<1x32x128xf32>
    %176 = vector.broadcast %175 : vector<1x32x128xf32> to vector<8x32x128xf32>
    %177 = arith.subf %2, %176 : vector<8x32x128xf32>
    %178 = math.absf %177 : vector<8x32x128xf32>
    %cst_32 = arith.constant dense<0.000000e+00> : vector<8x128xf32>
    %179 = vector.multi_reduction <add>, %178, %cst_32 [1] : vector<8x32x128xf32> to vector<8x128xf32>
    %cst_33 = arith.constant 1.000000e+00 : f32
    %180 = vector.broadcast %cst_33 : f32 to vector<8x128xf32>
    %181 = arith.addf %180, %179 : vector<8x128xf32>
    %cst_34 = arith.constant 1.000000e+00 : f32
    %182 = vector.broadcast %cst_34 : f32 to vector<8x128xf32>
    %183 = arith.divf %182, %181 : vector<8x128xf32>
    %184 = vector.shape_cast %183 : vector<8x128xf32> to vector<8x1x128xf32>
    %185 = vector.extract_strided_slice %10 {offsets = [7, 0, 0], sizes = [1, 16, 128], strides = [1, 1, 1]} : vector<8x16x128xf32> to vector<1x16x128xf32>
    %186 = vector.shape_cast %185 : vector<1x16x128xf32> to vector<16x128xf32>
    %187 = vector.shape_cast %186 : vector<16x128xf32> to vector<1x16x128xf32>
    %188 = vector.broadcast %184 : vector<8x1x128xf32> to vector<8x16x128xf32>
    %189 = vector.broadcast %187 : vector<1x16x128xf32> to vector<8x16x128xf32>
    %190 = arith.mulf %188, %189 : vector<8x16x128xf32>
    %191 = arith.addf %168, %190 : vector<8x16x128xf32>
    %192 = vector.shape_cast %183 : vector<8x128xf32> to vector<8x1x128xf32>
    %193 = vector.broadcast %192 : vector<8x1x128xf32> to vector<8x16x128xf32>
    %194 = arith.mulf %193, %8 : vector<8x16x128xf32>
    %cst_35 = arith.constant dense<0.000000e+00> : vector<16x128xf32>
    %195 = vector.multi_reduction <add>, %194, %cst_35 [0] : vector<8x16x128xf32> to vector<16x128xf32>
    %196 = arith.addf %8, %191 : vector<8x16x128xf32>
    %cst_36 = arith.constant 0.000000e+00 : f32
    %197 = vector.broadcast %cst_36 : f32 to vector<8x16x128xf32>
    %198 = arith.maximumf %196, %197 : vector<8x16x128xf32>
    %199 = vector.shape_cast %198 : vector<8x16x128xf32> to vector<128x128xf32>
    %200 = vector.shape_cast %34 : vector<16x128xf32> to vector<1x16x128xf32>
    %201 = vector.shape_cast %57 : vector<16x128xf32> to vector<1x16x128xf32>
    %202 = vector.shape_cast %80 : vector<16x128xf32> to vector<1x16x128xf32>
    %203 = vector.shape_cast %103 : vector<16x128xf32> to vector<1x16x128xf32>
    %204 = vector.shape_cast %126 : vector<16x128xf32> to vector<1x16x128xf32>
    %205 = vector.shape_cast %149 : vector<16x128xf32> to vector<1x16x128xf32>
    %206 = vector.shape_cast %172 : vector<16x128xf32> to vector<1x16x128xf32>
    %207 = vector.shape_cast %195 : vector<16x128xf32> to vector<1x16x128xf32>
    %208 = tpu.concatenate %200, %201, %202, %203, %204, %205, %206, %207 in 0 : vector<1x16x128xf32>, vector<1x16x128xf32>, vector<1x16x128xf32>, vector<1x16x128xf32>, vector<1x16x128xf32>, vector<1x16x128xf32>, vector<1x16x128xf32>, vector<1x16x128xf32> -> vector<8x16x128xf32>
    %209 = arith.addf %10, %208 : vector<8x16x128xf32>
    %cst_37 = arith.constant 0.000000e+00 : f32
    %210 = vector.broadcast %cst_37 : f32 to vector<8x16x128xf32>
    %211 = arith.maximumf %209, %210 : vector<8x16x128xf32>
    %212 = vector.shape_cast %211 : vector<8x16x128xf32> to vector<128x128xf32>
    %c0_38 = arith.constant 0 : index
    %c0_39 = arith.constant 0 : index
    %213 = vector.load %arg2[%c0_38, %c0_39] : memref<16x256xf32, #tpu.memory_space<vmem>>, vector<16x256xf32>
    %214 = tpu.concatenate %199, %212 in 0 : vector<128x128xf32>, vector<128x128xf32> -> vector<256x128xf32>
    %cst_40 = arith.constant dense<0.000000e+00> : vector<16x128xf32>
    %215 = tpu.matmul %213, %214, %cst_40 {dimension_numbers = #tpu.dot_dimension_numbers<[1], [0], [0], [1], [0, 0, 1, 1], [], []>} : vector<16x256xf32>, vector<256x128xf32>, vector<16x128xf32> -> vector<16x128xf32>
    %216 = vector.extract_strided_slice %215 {offsets = [0, 0], sizes = [8, 128], strides = [1, 1]} : vector<16x128xf32> to vector<8x128xf32>
    %217 = vector.extract_strided_slice %215 {offsets = [8, 0], sizes = [8, 128], strides = [1, 1]} : vector<16x128xf32> to vector<8x128xf32>
    %cst_41 = arith.constant dense<0xFF800000> : vector<128xf32>
    %218 = vector.multi_reduction <maximumf>, %216, %cst_41 [0] : vector<8x128xf32> to vector<128xf32>
    %219 = vector.shape_cast %218 : vector<128xf32> to vector<1x128xf32>
    %220 = vector.broadcast %219 : vector<1x128xf32> to vector<8x128xf32>
    %221 = arith.subf %216, %220 : vector<8x128xf32>
    %222 = math.exp %221 : vector<8x128xf32>
    %cst_42 = arith.constant dense<0xFF800000> : vector<128xf32>
    %223 = vector.multi_reduction <maximumf>, %217, %cst_42 [0] : vector<8x128xf32> to vector<128xf32>
    %224 = vector.shape_cast %223 : vector<128xf32> to vector<1x128xf32>
    %225 = vector.broadcast %224 : vector<1x128xf32> to vector<8x128xf32>
    %226 = arith.subf %217, %225 : vector<8x128xf32>
    %227 = math.exp %226 : vector<8x128xf32>
    %cst_43 = arith.constant dense<0.000000e+00> : vector<128xf32>
    %228 = vector.multi_reduction <add>, %222, %cst_43 [0] : vector<8x128xf32> to vector<128xf32>
    %229 = vector.shape_cast %228 : vector<128xf32> to vector<1x128xf32>
    %230 = vector.broadcast %229 : vector<1x128xf32> to vector<8x128xf32>
    %231 = arith.divf %222, %230 : vector<8x128xf32>
    %cst_44 = arith.constant dense<0.000000e+00> : vector<128xf32>
    %232 = vector.multi_reduction <add>, %227, %cst_44 [0] : vector<8x128xf32> to vector<128xf32>
    %233 = vector.shape_cast %232 : vector<128xf32> to vector<1x128xf32>
    %234 = vector.broadcast %233 : vector<1x128xf32> to vector<8x128xf32>
    %235 = arith.divf %227, %234 : vector<8x128xf32>
    %236 = tpu.concatenate %231, %235 in 0 : vector<8x128xf32>, vector<8x128xf32> -> vector<16x128xf32>
    %c0_45 = arith.constant 0 : index
    %c0_46 = arith.constant 0 : index
    %237 = vector.load %arg4[%c0_45, %c0_46] : memref<16x128xf32, #tpu.memory_space<vmem>>, vector<16x128xf32>
    tpu.vector_store %arg4[%c0_45, %c0_46], %236 {strides = array<i32>} : memref<16x128xf32, #tpu.memory_space<vmem>>, vector<16x128xf32>,
    return
  }
  func.func @transform_0(%arg0: i32) -> (i32, i32) {
    %c0_i32 = arith.constant 0 : i32
    %c0_i32_0 = arith.constant 0 : i32
    %c0_i32_1 = arith.constant 0 : i32
    return %c0_i32, %c0_i32_0 : i32, i32
  }
  func.func @transform_1(%arg0: i32) -> (i32, i32) {
    %c0_i32 = arith.constant 0 : i32
    %c0_i32_0 = arith.constant 0 : i32
    %c0_i32_1 = arith.constant 0 : i32
    return %c0_i32, %c0_i32_0 : i32, i32
  }
  func.func @transform_2(%arg0: i32) -> (i32, i32) {
    %c0_i32 = arith.constant 0 : i32
    %c0_i32_0 = arith.constant 0 : i32
    return %c0_i32, %arg0 : i32, i32
  }
  func.func @transform_3(%arg0: i32) -> (i32, i32) {
    %c0_i32 = arith.constant 0 : i32
    %c0_i32_0 = arith.constant 0 : i32
    return %c0_i32, %arg0 : i32, i32
  }
}

</mosaic_0001>

<llo_original>
// kernel: tpu_custom_call.1
$region0: #{tpu_custom_call.1}
  #allocation0 [shape = 'u32[]', space=smem, size = 0x4, offset = 0x4, fixed_abs, tag = 'smem constant byte address 0x4 - core index']
  #allocation1 [shape = 'u32[72,128]{1,0:T(1,128)}', space=vmem, size = 0x9000, scoped, tag = 'internal scratch']
  %s0 = inlined_call_operand.hbm [shape: f32[256,512], index: 0, kind: input, shape index: {}]
  %s1 = inlined_call_operand.hbm [shape: f32[16,256], index: 1, kind: input, shape index: {}]
  %s2 = inlined_call_operand.hbm [shape: f32[512,128], index: 2, kind: input, shape index: {}]
  %s3 = inlined_call_operand.hbm [shape: f32[16,128], index: 3, kind: output, shape index: {}]
  %s4 = sld [smem:[#allocation0]]
  $region34: #{tpu_custom_call.1} parent=0
    _
  %s6 = ssub.s32 1, %s4
  %s7 = scalar_select 0, %s6, %s4
  $region1: #{tpu_custom_call.1} parent=0
    #allocation2 [shape = 'u8[524288]{0}', space=vmem, size = 0x80000, scoped, tag = 'input window, operand 0, single buffered']
    #allocation3 [shape = 's32[1]{0}', space=sflag, size = 0x4, scoped, tag = 'scoped memory for tpu_custom_call.1']
    #allocation4 [shape = 's32[1]{0}', space=sflag, size = 0x4, scoped, tag = 'scoped memory for tpu_custom_call.1']
    #allocation5 [shape = 'u8[16384]{0}', space=vmem, size = 0x4000, scoped, tag = 'input window, operand 1, single buffered']
    #allocation6 [shape = 's32[1]{0}', space=sflag, size = 0x4, scoped, tag = 'scoped memory for tpu_custom_call.1']
    #allocation7 [shape = 'u8[262144]{0}', space=vmem, size = 0x40000, scoped, tag = 'input window, operand 2, single buffered']
    #allocation8 [shape = 'u8[8192]{0}', space=vmem, size = 0x2000, scoped, tag = 'output window, operand 0, single buffered']
    %8 = vsyncpa [#allocation3], 0
    %9 = vsyncpa [#allocation6], 0
    %10 = vsyncpa [#allocation4], 0
    // Predicated region
    $region2: #{tpu_custom_call.1} parent=1 // pred_check
      _
    $region3: #{tpu_custom_call.1} parent=1 // pred_check_branch
      %12 = sbr.rel (0) target = $region5
    $region4: #{tpu_custom_call.1} parent=1 // pred_region
      %14 = vsyncadd [#allocation3], 0
      %s15 = sshll.u32 %s0, 4
      %s16 = int_to_ptr.hbm [resolvable:$true] %s15
      %s17 = sshll.u32 [#allocation2], 4
      %s18 = int_to_ptr.vmem [resolvable:$true] %s17
      %23 = dma.hbm_to_vmem [thread:$0]  %s16, 16384, %s18, [#allocation3], 512, 512, 32
    $region5: #{tpu_custom_call.1} parent=1 // pred_fallthru
      _
    // Predicated region
    $region6: #{tpu_custom_call.1} parent=1 // pred_check
      _
    $region7: #{tpu_custom_call.1} parent=1 // pred_check_branch
      %25 = sbr.rel (0) target = $region9
    $region8: #{tpu_custom_call.1} parent=1 // pred_region
      %27 = vsyncadd [#allocation6], 0
      %s28 = sshll.u32 %s1, 4
      %s29 = int_to_ptr.hbm [resolvable:$true] %s28
      %s30 = sshll.u32 [#allocation5], 4
      %s31 = int_to_ptr.vmem [resolvable:$true] %s30
      %36 = dma.hbm_to_vmem [thread:$0]  %s29, 512, %s31, [#allocation6], 256, 256, 16
    $region9: #{tpu_custom_call.1} parent=1 // pred_fallthru
      _
    // Predicated region
    $region10: #{tpu_custom_call.1} parent=1 // pred_check
      _
    $region11: #{tpu_custom_call.1} parent=1 // pred_check_branch
      %38 = sbr.rel (0) target = $region13
    $region12: #{tpu_custom_call.1} parent=1 // pred_region
      %40 = vsyncadd [#allocation6], 0
      %s41 = sshll.u32 %s2, 4
      %s42 = int_to_ptr.hbm [resolvable:$true] %s41
      %s43 = sshll.u32 [#allocation7], 4
      %s44 = int_to_ptr.vmem [resolvable:$true] %s43
      %49 = dma.hbm_to_vmem [thread:$0]  %s42, 8192, %s44, [#allocation6], 128, 128, 8
    $region13: #{tpu_custom_call.1} parent=1 // pred_fallthru
      _
    // Predicated region
    $region14: #{tpu_custom_call.1} parent=1 // pred_check
      _
    $region15: #{tpu_custom_call.1} parent=1 // pred_check_branch
      %51 = sbr.rel (0) target = $region17
    $region16: #{tpu_custom_call.1} parent=1 // pred_region
      %53 = dma.done [#allocation3], 16384
    $region17: #{tpu_custom_call.1} parent=1 // pred_fallthru
      _
    // Predicated region
    $region18: #{tpu_custom_call.1} parent=1 // pred_check
      _
    $region19: #{tpu_custom_call.1} parent=1 // pred_check_branch
      %55 = sbr.rel (0) target = $region21
    $region20: #{tpu_custom_call.1} parent=1 // pred_region
      %57 = dma.done [#allocation6], 512
    $region21: #{tpu_custom_call.1} parent=1 // pred_fallthru
      _
    // Predicated region
    $region22: #{tpu_custom_call.1} parent=1 // pred_check
      _
    $region23: #{tpu_custom_call.1} parent=1 // pred_check_branch
      %59 = sbr.rel (0) target = $region25
    $region24: #{tpu_custom_call.1} parent=1 // pred_region
      %61 = dma.done [#allocation6], 8192
    $region25: #{tpu_custom_call.1} parent=1 // pred_fallthru
      _
    %v62 = vld [vmem:[#allocation7] sm:$0xff]
    %v63 = vld [vmem:[#allocation7 + $0x8] sm:$0xff]
    %v64 = vld [vmem:[#allocation7 + $0x10] sm:$0xff]
    %v65 = vld [vmem:[#allocation7 + $0x18] sm:$0xff]
    %v66 = vld [vmem:[#allocation7 + $0x20] sm:$0xff]
    %v67 = vld [vmem:[#allocation7 + $0x28] sm:$0xff]
    %v68 = vld [vmem:[#allocation7 + $0x30] sm:$0xff]
    %v69 = vld [vmem:[#allocation7 + $0x38] sm:$0xff]
    %v70 = vld [vmem:[#allocation7 + $0x40] sm:$0xff]
    %v71 = vld [vmem:[#allocation7 + $0x48] sm:$0xff]
    %v72 = vld [vmem:[#allocation7 + $0x50] sm:$0xff]
    %v73 = vld [vmem:[#allocation7 + $0x58] sm:$0xff]
    %v74 = vld [vmem:[#allocation7 + $0x60] sm:$0xff]
    %v75 = vld [vmem:[#allocation7 + $0x68] sm:$0xff]
    %v76 = vld [vmem:[#allocation7 + $0x70] sm:$0xff]
    %v77 = vld [vmem:[#allocation7 + $0x78] sm:$0xff]
    %v78 = vld [vmem:[#allocation7 + $0x80] sm:$0xff]
    %v79 = vld [vmem:[#allocation7 + $0x88] sm:$0xff]
    %v80 = vld [vmem:[#allocation7 + $0x90] sm:$0xff]
    %v81 = vld [vmem:[#allocation7 + $0x98] sm:$0xff]
    %v82 = vld [vmem:[#allocation7 + $0xa0] sm:$0xff]
    %v83 = vld [vmem:[#allocation7 + $0xa8] sm:$0xff]
    %v84 = vld [vmem:[#allocation7 + $0xb0] sm:$0xff]
    %v85 = vld [vmem:[#allocation7 + $0xb8] sm:$0xff]
    %v86 = vld [vmem:[#allocation7 + $0xc0] sm:$0xff]
    %v87 = vld [vmem:[#allocation7 + $0xc8] sm:$0xff]
    %v88 = vld [vmem:[#allocation7 + $0xd0] sm:$0xff]
    %v89 = vld [vmem:[#allocation7 + $0xd8] sm:$0xff]
    %v90 = vld [vmem:[#allocation7 + $0xe0] sm:$0xff]
    %v91 = vld [vmem:[#allocation7 + $0xe8] sm:$0xff]
    %v92 = vld [vmem:[#allocation7 + $0xf0] sm:$0xff]
    %v93 = vld [vmem:[#allocation7 + $0xf8] sm:$0xff]
    %v94 = vld [vmem:[#allocation7 + $0x100] sm:$0xff]
    %v95 = vld [vmem:[#allocation7 + $0x108] sm:$0xff]
    %v96 = vld [vmem:[#allocation7 + $0x110] sm:$0xff]
    %v97 = vld [vmem:[#allocation7 + $0x118] sm:$0xff]
    %v98 = vld [vmem:[#allocation7 + $0x120] sm:$0xff]
    %v99 = vld [vmem:[#allocation7 + $0x128] sm:$0xff]
    %v100 = vld [vmem:[#allocation7 + $0x130] sm:$0xff]
    %v101 = vld [vmem:[#allocation7 + $0x138] sm:$0xff]
    %v102 = vld [vmem:[#allocation7 + $0x140] sm:$0xff]
    %v103 = vld [vmem:[#allocation7 + $0x148] sm:$0xff]
    %v104 = vld [vmem:[#allocation7 + $0x150] sm:$0xff]
    %v105 = vld [vmem:[#allocation7 + $0x158] sm:$0xff]
    %v106 = vld [vmem:[#allocation7 + $0x160] sm:$0xff]
    %v107 = vld [vmem:[#allocation7 + $0x168] sm:$0xff]
    %v108 = vld [vmem:[#allocation7 + $0x170] sm:$0xff]
    %v109 = vld [vmem:[#allocation7 + $0x178] sm:$0xff]
    %v110 = vld [vmem:[#allocation7 + $0x180] sm:$0xff]
    %v111 = vld [vmem:[#allocation7 + $0x188] sm:$0xff]
    %v112 = vld [vmem:[#allocation7 + $0x190] sm:$0xff]
    %v113 = vld [vmem:[#allocation7 + $0x198] sm:$0xff]
    %v114 = vld [vmem:[#allocation7 + $0x1a0] sm:$0xff]
    %v115 = vld [vmem:[#allocation7 + $0x1a8] sm:$0xff]
    %v116 = vld [vmem:[#allocation7 + $0x1b0] sm:$0xff]
    %v117 = vld [vmem:[#allocation7 + $0x1b8] sm:$0xff]
    %v118 = vld [vmem:[#allocation7 + $0x1c0] sm:$0xff]
    %v119 = vld [vmem:[#allocation7 + $0x1c8] sm:$0xff]
    %v120 = vld [vmem:[#allocation7 + $0x1d0] sm:$0xff]
    %v121 = vld [vmem:[#allocation7 + $0x1d8] sm:$0xff]
    %v122 = vld [vmem:[#allocation7 + $0x1e0] sm:$0xff]
    %v123 = vld [vmem:[#allocation7 + $0x1e8] sm:$0xff]
    %v124 = vld [vmem:[#allocation7 + $0x1f0] sm:$0xff]
    %v125 = vld [vmem:[#allocation7 + $0x1f8] sm:$0xff]
    %v126 = vld [vmem:[#allocation2] sm:$0xff]
    %v127 = vld [vmem:[#allocation2 + $0x8] sm:$0xff]
    %v128 = vld [vmem:[#allocation2 + $0x10] sm:$0xff]
    %v129 = vld [vmem:[#allocation2 + $0x18] sm:$0xff]
    %v130 = vld [vmem:[#allocation2 + $0x20] sm:$0xff]
    %v131 = vld [vmem:[#allocation2 + $0x28] sm:$0xff]
    %v132 = vld [vmem:[#allocation2 + $0x30] sm:$0xff]
    %v133 = vld [vmem:[#allocation2 + $0x38] sm:$0xff]
    %v134 = vld [vmem:[#allocation2 + $0x40] sm:$0xff]
    %v135 = vld [vmem:[#allocation2 + $0x48] sm:$0xff]
    %v136 = vld [vmem:[#allocation2 + $0x50] sm:$0xff]
    %v137 = vld [vmem:[#allocation2 + $0x58] sm:$0xff]
    %v138 = vld [vmem:[#allocation2 + $0x60] sm:$0xff]
    %v139 = vld [vmem:[#allocation2 + $0x68] sm:$0xff]
    %v140 = vld [vmem:[#allocation2 + $0x70] sm:$0xff]
    %v141 = vld [vmem:[#allocation2 + $0x78] sm:$0xff]
    %v142 = vld [vmem:[#allocation2 + $0x80] sm:$0xff]
    %v143 = vld [vmem:[#allocation2 + $0x88] sm:$0xff]
    %v144 = vld [vmem:[#allocation2 + $0x90] sm:$0xff]
    %v145 = vld [vmem:[#allocation2 + $0x98] sm:$0xff]
    %v146 = vld [vmem:[#allocation2 + $0xa0] sm:$0xff]
    %v147 = vld [vmem:[#allocation2 + $0xa8] sm:$0xff]
    %v148 = vld [vmem:[#allocation2 + $0xb0] sm:$0xff]
    %v149 = vld [vmem:[#allocation2 + $0xb8] sm:$0xff]
    %v150 = vld [vmem:[#allocation2 + $0xc0] sm:$0xff]
    %v151 = vld [vmem:[#allocation2 + $0xc8] sm:$0xff]
    %v152 = vld [vmem:[#allocation2 + $0xd0] sm:$0xff]
    %v153 = vld [vmem:[#allocation2 + $0xd8] sm:$0xff]
    %v154 = vld [vmem:[#allocation2 + $0xe0] sm:$0xff]
    %v155 = vld [vmem:[#allocation2 + $0xe8] sm:$0xff]
    %v156 = vld [vmem:[#allocation2 + $0xf0] sm:$0xff]
    %v157 = vld [vmem:[#allocation2 + $0xf8] sm:$0xff]
    %v158 = vld [vmem:[#allocation2 + $0x100] sm:$0xff]
    %v159 = vld [vmem:[#allocation2 + $0x108] sm:$0xff]
    %v160 = vld [vmem:[#allocation2 + $0x110] sm:$0xff]
    %v161 = vld [vmem:[#allocation2 + $0x118] sm:$0xff]
    %v162 = vld [vmem:[#allocation2 + $0x120] sm:$0xff]
    %v163 = vld [vmem:[#allocation2 + $0x128] sm:$0xff]
    %v164 = vld [vmem:[#allocation2 + $0x130] sm:$0xff]
    %v165 = vld [vmem:[#allocation2 + $0x138] sm:$0xff]
    %v166 = vld [vmem:[#allocation2 + $0x140] sm:$0xff]
    %v167 = vld [vmem:[#allocation2 + $0x148] sm:$0xff]
    %v168 = vld [vmem:[#allocation2 + $0x150] sm:$0xff]
    %v169 = vld [vmem:[#allocation2 + $0x158] sm:$0xff]
    %v170 = vld [vmem:[#allocation2 + $0x160] sm:$0xff]
    %v171 = vld [vmem:[#allocation2 + $0x168] sm:$0xff]
    %v172 = vld [vmem:[#allocation2 + $0x170] sm:$0xff]
    %v173 = vld [vmem:[#allocation2 + $0x178] sm:$0xff]
    %v174 = vld [vmem:[#allocation2 + $0x180] sm:$0xff]
    %v175 = vld [vmem:[#allocation2 + $0x188] sm:$0xff]
    %v176 = vld [vmem:[#allocation2 + $0x190] sm:$0xff]
    %v177 = vld [vmem:[#allocation2 + $0x198] sm:$0xff]
    %v178 = vld [vmem:[#allocation2 + $0x1a0] sm:$0xff]
    %v179 = vld [vmem:[#allocation2 + $0x1a8] sm:$0xff]
    %v180 = vld [vmem:[#allocation2 + $0x1b0] sm:$0xff]
    %v181 = vld [vmem:[#allocation2 + $0x1b8] sm:$0xff]
    %v182 = vld [vmem:[#allocation2 + $0x1c0] sm:$0xff]
    %v183 = vld [vmem:[#allocation2 + $0x1c8] sm:$0xff]
    %v184 = vld [vmem:[#allocation2 + $0x1d0] sm:$0xff]
    %v185 = vld [vmem:[#allocation2 + $0x1d8] sm:$0xff]
    %v186 = vld [vmem:[#allocation2 + $0x1e0] sm:$0xff]
    %v187 = vld [vmem:[#allocation2 + $0x1e8] sm:$0xff]
    %v188 = vld [vmem:[#allocation2 + $0x1f0] sm:$0xff]
    %v189 = vld [vmem:[#allocation2 + $0x1f8] sm:$0xff]
    %v190 = vld [vmem:[#allocation2 + $0x200] sm:$0xff]
    %v191 = vld [vmem:[#allocation2 + $0x208] sm:$0xff]
    %v192 = vld [vmem:[#allocation2 + $0x210] sm:$0xff]
    %v193 = vld [vmem:[#allocation2 + $0x218] sm:$0xff]
    %v194 = vld [vmem:[#allocation2 + $0x220] sm:$0xff]
    %v195 = vld [vmem:[#allocation2 + $0x228] sm:$0xff]
    %v196 = vld [vmem:[#allocation2 + $0x230] sm:$0xff]
    %v197 = vld [vmem:[#allocation2 + $0x238] sm:$0xff]
    %v198 = vld [vmem:[#allocation2 + $0x240] sm:$0xff]
    %v199 = vld [vmem:[#allocation2 + $0x248] sm:$0xff]
    %v200 = vld [vmem:[#allocation2 + $0x250] sm:$0xff]
    %v201 = vld [vmem:[#allocation2 + $0x258] sm:$0xff]
    %v202 = vld [vmem:[#allocation2 + $0x260] sm:$0xff]
    %v203 = vld [vmem:[#allocation2 + $0x268] sm:$0xff]
    %v204 = vld [vmem:[#allocation2 + $0x270] sm:$0xff]
    %v205 = vld [vmem:[#allocation2 + $0x278] sm:$0xff]
    %v206 = vld [vmem:[#allocation2 + $0x280] sm:$0xff]
    %v207 = vld [vmem:[#allocation2 + $0x288] sm:$0xff]
    %v208 = vld [vmem:[#allocation2 + $0x290] sm:$0xff]
    %v209 = vld [vmem:[#allocation2 + $0x298] sm:$0xff]
    %v210 = vld [vmem:[#allocation2 + $0x2a0] sm:$0xff]
    %v211 = vld [vmem:[#allocation2 + $0x2a8] sm:$0xff]
    %v212 = vld [vmem:[#allocation2 + $0x2b0] sm:$0xff]
    %v213 = vld [vmem:[#allocation2 + $0x2b8] sm:$0xff]
    %v214 = vld [vmem:[#allocation2 + $0x2c0] sm:$0xff]
    %v215 = vld [vmem:[#allocation2 + $0x2c8] sm:$0xff]
    %v216 = vld [vmem:[#allocation2 + $0x2d0] sm:$0xff]
    %v217 = vld [vmem:[#allocation2 + $0x2d8] sm:$0xff]
    %v218 = vld [vmem:[#allocation2 + $0x2e0] sm:$0xff]
    %v219 = vld [vmem:[#allocation2 + $0x2e8] sm:$0xff]
    %v220 = vld [vmem:[#allocation2 + $0x2f0] sm:$0xff]
    %v221 = vld [vmem:[#allocation2 + $0x2f8] sm:$0xff]
    %v222 = vld [vmem:[#allocation2 + $0x300] sm:$0xff]
    %v223 = vld [vmem:[#allocation2 + $0x308] sm:$0xff]
    %v224 = vld [vmem:[#allocation2 + $0x310] sm:$0xff]
    %v225 = vld [vmem:[#allocation2 + $0x318] sm:$0xff]
    %v226 = vld [vmem:[#allocation2 + $0x320] sm:$0xff]
    %v227 = vld [vmem:[#allocation2 + $0x328] sm:$0xff]
    %v228 = vld [vmem:[#allocation2 + $0x330] sm:$0xff]
    %v229 = vld [vmem:[#allocation2 + $0x338] sm:$0xff]
    %v230 = vld [vmem:[#allocation2 + $0x340] sm:$0xff]
    %v231 = vld [vmem:[#allocation2 + $0x348] sm:$0xff]
    %v232 = vld [vmem:[#allocation2 + $0x350] sm:$0xff]
    %v233 = vld [vmem:[#allocation2 + $0x358] sm:$0xff]
    %v234 = vld [vmem:[#allocation2 + $0x360] sm:$0xff]
    %v235 = vld [vmem:[#allocation2 + $0x368] sm:$0xff]
    %v236 = vld [vmem:[#allocation2 + $0x370] sm:$0xff]
    %v237 = vld [vmem:[#allocation2 + $0x378] sm:$0xff]
    %v238 = vld [vmem:[#allocation2 + $0x380] sm:$0xff]
    %v239 = vld [vmem:[#allocation2 + $0x388] sm:$0xff]
    %v240 = vld [vmem:[#allocation2 + $0x390] sm:$0xff]
    %v241 = vld [vmem:[#allocation2 + $0x398] sm:$0xff]
    %v242 = vld [vmem:[#allocation2 + $0x3a0] sm:$0xff]
    %v243 = vld [vmem:[#allocation2 + $0x3a8] sm:$0xff]
    %v244 = vld [vmem:[#allocation2 + $0x3b0] sm:$0xff]
    %v245 = vld [vmem:[#allocation2 + $0x3b8] sm:$0xff]
    %v246 = vld [vmem:[#allocation2 + $0x3c0] sm:$0xff]
    %v247 = vld [vmem:[#allocation2 + $0x3c8] sm:$0xff]
    %v248 = vld [vmem:[#allocation2 + $0x3d0] sm:$0xff]
    %v249 = vld [vmem:[#allocation2 + $0x3d8] sm:$0xff]
    %v250 = vld [vmem:[#allocation2 + $0x3e0] sm:$0xff]
    %v251 = vld [vmem:[#allocation2 + $0x3e8] sm:$0xff]
    %v252 = vld [vmem:[#allocation2 + $0x3f0] sm:$0xff]
    %v253 = vld [vmem:[#allocation2 + $0x3f8] sm:$0xff]
    %254 = vmatpush.msra.mxu0 %v77
    %255 = vmatpush.msra.mxu0 %v76
    %256 = vmatpush.msra.mxu0 %v75
    %257 = vmatpush.msra.mxu0 %v74
    %258 = vmatpush.msra.mxu0 %v73
    %259 = vmatpush.msra.mxu0 %v72
    %260 = vmatpush.msra.mxu0 %v71
    %261 = vmatpush.msra.mxu0 %v70
    %262 = vmatpush.msra.mxu0 %v69
    %263 = vmatpush.msra.mxu0 %v68
    %264 = vmatpush.msra.mxu0 %v67
    %265 = vmatpush.msra.mxu0 %v66
    %266 = vmatpush.msra.mxu0 %v65
    %267 = vmatpush.msra.mxu0 %v64
    %268 = vmatpush.msra.mxu0 %v63
    %269 = vmatpush.msra.mxu0 %v62
    %270 = vmatmul.f32.gmra.mxu0 %v126
    %v271 = vpop.f32.mrf.mxu0
    %v272 = vadd.f32 0.0, %v271
    %273 = vmatmul.f32.gmra.mxu0 %v130
    %v274 = vpop.f32.mrf.mxu0
    %v275 = vadd.f32 0.0, %v274
    %276 = vmatmul.f32.gmra.mxu0 %v134
    %v277 = vpop.f32.mrf.mxu0
    %v278 = vadd.f32 0.0, %v277
    %279 = vmatmul.f32.gmra.mxu0 %v138
    %v280 = vpop.f32.mrf.mxu0
    %v281 = vadd.f32 0.0, %v280
    %282 = vmatmul.f32.gmra.mxu0 %v142
    %v283 = vpop.f32.mrf.mxu0
    %v284 = vadd.f32 0.0, %v283
    %285 = vmatmul.f32.gmra.mxu0 %v146
    %v286 = vpop.f32.mrf.mxu0
    %v287 = vadd.f32 0.0, %v286
    %288 = vmatmul.f32.gmra.mxu0 %v150
    %v289 = vpop.f32.mrf.mxu0
    %v290 = vadd.f32 0.0, %v289
    %291 = vmatmul.f32.gmra.mxu0 %v154
    %v292 = vpop.f32.mrf.mxu0
    %v293 = vadd.f32 0.0, %v292
    %294 = vmatmul.f32.gmra.mxu0 %v158
    %v295 = vpop.f32.mrf.mxu0
    %v296 = vadd.f32 0.0, %v295
    %297 = vmatmul.f32.gmra.mxu0 %v162
    %v298 = vpop.f32.mrf.mxu0
    %v299 = vadd.f32 0.0, %v298
    %300 = vmatmul.f32.gmra.mxu0 %v166
    %v301 = vpop.f32.mrf.mxu0
    %v302 = vadd.f32 0.0, %v301
    %303 = vmatmul.f32.gmra.mxu0 %v170
    %v304 = vpop.f32.mrf.mxu0
    %v305 = vadd.f32 0.0, %v304
    %306 = vmatmul.f32.gmra.mxu0 %v174
    %v307 = vpop.f32.mrf.mxu0
    %v308 = vadd.f32 0.0, %v307
    %309 = vmatmul.f32.gmra.mxu0 %v178
    %v310 = vpop.f32.mrf.mxu0
    %v311 = vadd.f32 0.0, %v310
    %312 = vmatmul.f32.gmra.mxu0 %v182
    %v313 = vpop.f32.mrf.mxu0
    %v314 = vadd.f32 0.0, %v313
    %315 = vmatmul.f32.gmra.mxu0 %v186
    %v316 = vpop.f32.mrf.mxu0
    %v317 = vadd.f32 0.0, %v316
    %318 = vmatmul.f32.gmra.mxu0 %v190
    %v319 = vpop.f32.mrf.mxu0
    %v320 = vadd.f32 0.0, %v319
    %321 = vmatmul.f32.gmra.mxu0 %v194
    %v322 = vpop.f32.mrf.mxu0
    %v323 = vadd.f32 0.0, %v322
    %324 = vmatmul.f32.gmra.mxu0 %v198
    %v325 = vpop.f32.mrf.mxu0
    %v326 = vadd.f32 0.0, %v325
    %327 = vmatmul.f32.gmra.mxu0 %v202
    %v328 = vpop.f32.mrf.mxu0
    %v329 = vadd.f32 0.0, %v328
    %330 = vmatmul.f32.gmra.mxu0 %v206
    %v331 = vpop.f32.mrf.mxu0
    %v332 = vadd.f32 0.0, %v331
    %333 = vmatmul.f32.gmra.mxu0 %v210
    %v334 = vpop.f32.mrf.mxu0
    %v335 = vadd.f32 0.0, %v334
    %336 = vmatmul.f32.gmra.mxu0 %v214
    %v337 = vpop.f32.mrf.mxu0
    %v338 = vadd.f32 0.0, %v337
    %339 = vmatmul.f32.gmra.mxu0 %v218
    %v340 = vpop.f32.mrf.mxu0
    %v341 = vadd.f32 0.0, %v340
    %342 = vmatmul.f32.gmra.mxu0 %v222
    %v343 = vpop.f32.mrf.mxu0
    %v344 = vadd.f32 0.0, %v343
    %345 = vmatmul.f32.gmra.mxu0 %v226
    %v346 = vpop.f32.mrf.mxu0
    %v347 = vadd.f32 0.0, %v346
    %348 = vmatmul.f32.gmra.mxu0 %v230
    %v349 = vpop.f32.mrf.mxu0
    %v350 = vadd.f32 0.0, %v349
    %351 = vmatmul.f32.gmra.mxu0 %v234
    %v352 = vpop.f32.mrf.mxu0
    %v353 = vadd.f32 0.0, %v352
    %354 = vmatmul.f32.gmra.mxu0 %v238
    %v355 = vpop.f32.mrf.mxu0
    %v356 = vadd.f32 0.0, %v355
    %357 = vmatmul.f32.gmra.mxu0 %v242
    %v358 = vpop.f32.mrf.mxu0
    %v359 = vadd.f32 0.0, %v358
    %360 = vmatmul.f32.gmra.mxu0 %v246
    %v361 = vpop.f32.mrf.mxu0
    %v362 = vadd.f32 0.0, %v361
    %363 = vmatmul.f32.gmra.mxu0 %v250
    %v364 = vpop.f32.mrf.mxu0
    %v365 = vadd.f32 0.0, %v364
    %366 = vdwg.mxu0
    %367 = vmatpush.msra.mxu0 %v93
    %368 = vmatpush.msra.mxu0 %v92
    %369 = vmatpush.msra.mxu0 %v91
    %370 = vmatpush.msra.mxu0 %v90
    %371 = vmatpush.msra.mxu0 %v89
    %372 = vmatpush.msra.mxu0 %v88
    %373 = vmatpush.msra.mxu0 %v87
    %374 = vmatpush.msra.mxu0 %v86
    %375 = vmatpush.msra.mxu0 %v85
    %376 = vmatpush.msra.mxu0 %v84
    %377 = vmatpush.msra.mxu0 %v83
    %378 = vmatpush.msra.mxu0 %v82
    %379 = vmatpush.msra.mxu0 %v81
    %380 = vmatpush.msra.mxu0 %v80
    %381 = vmatpush.msra.mxu0 %v79
    %382 = vmatpush.msra.mxu0 %v78
    %383 = vmatmul.f32.gmra.mxu0 %v127
    %v384 = vpop.f32.mrf.mxu0
    %v385 = vadd.f32 %v272, %v384
    %386 = vmatmul.f32.gmra.mxu0 %v131
    %v387 = vpop.f32.mrf.mxu0
    %v388 = vadd.f32 %v275, %v387
    %389 = vmatmul.f32.gmra.mxu0 %v135
    %v390 = vpop.f32.mrf.mxu0
    %v391 = vadd.f32 %v278, %v390
    %392 = vmatmul.f32.gmra.mxu0 %v139
    %v393 = vpop.f32.mrf.mxu0
    %v394 = vadd.f32 %v281, %v393
    %395 = vmatmul.f32.gmra.mxu0 %v143
    %v396 = vpop.f32.mrf.mxu0
    %v397 = vadd.f32 %v284, %v396
    %398 = vmatmul.f32.gmra.mxu0 %v147
    %v399 = vpop.f32.mrf.mxu0
    %v400 = vadd.f32 %v287, %v399
    %401 = vmatmul.f32.gmra.mxu0 %v151
    %v402 = vpop.f32.mrf.mxu0
    %v403 = vadd.f32 %v290, %v402
    %404 = vmatmul.f32.gmra.mxu0 %v155
    %v405 = vpop.f32.mrf.mxu0
    %v406 = vadd.f32 %v293, %v405
    %407 = vmatmul.f32.gmra.mxu0 %v159
    %v408 = vpop.f32.mrf.mxu0
    %v409 = vadd.f32 %v296, %v408
    %410 = vmatmul.f32.gmra.mxu0 %v163
    %v411 = vpop.f32.mrf.mxu0
    %v412 = vadd.f32 %v299, %v411
    %413 = vmatmul.f32.gmra.mxu0 %v167
    %v414 = vpop.f32.mrf.mxu0
    %v415 = vadd.f32 %v302, %v414
    %416 = vmatmul.f32.gmra.mxu0 %v171
    %v417 = vpop.f32.mrf.mxu0
    %v418 = vadd.f32 %v305, %v417
    %419 = vmatmul.f32.gmra.mxu0 %v175
    %v420 = vpop.f32.mrf.mxu0
    %v421 = vadd.f32 %v308, %v420
    %422 = vmatmul.f32.gmra.mxu0 %v179
    %v423 = vpop.f32.mrf.mxu0
    %v424 = vadd.f32 %v311, %v423
    %425 = vmatmul.f32.gmra.mxu0 %v183
    %v426 = vpop.f32.mrf.mxu0
    %v427 = vadd.f32 %v314, %v426
    %428 = vmatmul.f32.gmra.mxu0 %v187
    %v429 = vpop.f32.mrf.mxu0
    %v430 = vadd.f32 %v317, %v429
    %431 = vmatmul.f32.gmra.mxu0 %v191
    %v432 = vpop.f32.mrf.mxu0
    %v433 = vadd.f32 %v320, %v432
    %434 = vmatmul.f32.gmra.mxu0 %v195
    %v435 = vpop.f32.mrf.mxu0
    %v436 = vadd.f32 %v323, %v435
    %437 = vmatmul.f32.gmra.mxu0 %v199
    %v438 = vpop.f32.mrf.mxu0
    %v439 = vadd.f32 %v326, %v438
    %440 = vmatmul.f32.gmra.mxu0 %v203
    %v441 = vpop.f32.mrf.mxu0
    %v442 = vadd.f32 %v329, %v441
    %443 = vmatmul.f32.gmra.mxu0 %v207
    %v444 = vpop.f32.mrf.mxu0
    %v445 = vadd.f32 %v332, %v444
    %446 = vmatmul.f32.gmra.mxu0 %v211
    %v447 = vpop.f32.mrf.mxu0
    %v448 = vadd.f32 %v335, %v447
    %449 = vmatmul.f32.gmra.mxu0 %v215
    %v450 = vpop.f32.mrf.mxu0
    %v451 = vadd.f32 %v338, %v450
    %452 = vmatmul.f32.gmra.mxu0 %v219
    %v453 = vpop.f32.mrf.mxu0
    %v454 = vadd.f32 %v341, %v453
    %455 = vmatmul.f32.gmra.mxu0 %v223
    %v456 = vpop.f32.mrf.mxu0
    %v457 = vadd.f32 %v344, %v456
    %458 = vmatmul.f32.gmra.mxu0 %v227
    %v459 = vpop.f32.mrf.mxu0
    %v460 = vadd.f32 %v347, %v459
    %461 = vmatmul.f32.gmra.mxu0 %v231
    %v462 = vpop.f32.mrf.mxu0
    %v463 = vadd.f32 %v350, %v462
    %464 = vmatmul.f32.gmra.mxu0 %v235
    %v465 = vpop.f32.mrf.mxu0
    %v466 = vadd.f32 %v353, %v465
    %467 = vmatmul.f32.gmra.mxu0 %v239
    %v468 = vpop.f32.mrf.mxu0
    %v469 = vadd.f32 %v356, %v468
    %470 = vmatmul.f32.gmra.mxu0 %v243
    %v471 = vpop.f32.mrf.mxu0
    %v472 = vadd.f32 %v359, %v471
    %473 = vmatmul.f32.gmra.mxu0 %v247
    %v474 = vpop.f32.mrf.mxu0
    %v475 = vadd.f32 %v362, %v474
    %476 = vmatmul.f32.gmra.mxu0 %v251
    %v477 = vpop.f32.mrf.mxu0
    %v478 = vadd.f32 %v365, %v477
    %479 = vdwg.mxu0
    %480 = vmatpush.msra.mxu0 %v109
    %481 = vmatpush.msra.mxu0 %v108
    %482 = vmatpush.msra.mxu0 %v107
    %483 = vmatpush.msra.mxu0 %v106
    %484 = vmatpush.msra.mxu0 %v105
    %485 = vmatpush.msra.mxu0 %v104
    %486 = vmatpush.msra.mxu0 %v103
    %487 = vmatpush.msra.mxu0 %v102
    %488 = vmatpush.msra.mxu0 %v101
    %489 = vmatpush.msra.mxu0 %v100
    %490 = vmatpush.msra.mxu0 %v99
    %491 = vmatpush.msra.mxu0 %v98
    %492 = vmatpush.msra.mxu0 %v97
    %493 = vmatpush.msra.mxu0 %v96
    %494 = vmatpush.msra.mxu0 %v95
    %495 = vmatpush.msra.mxu0 %v94
    %496 = vmatmul.f32.gmra.mxu0 %v128
    %v497 = vpop.f32.mrf.mxu0
    %v498 = vadd.f32 %v385, %v497
    %499 = vmatmul.f32.gmra.mxu0 %v132
    %v500 = vpop.f32.mrf.mxu0
    %v501 = vadd.f32 %v388, %v500
    %502 = vmatmul.f32.gmra.mxu0 %v136
    %v503 = vpop.f32.mrf.mxu0
    %v504 = vadd.f32 %v391, %v503
    %505 = vmatmul.f32.gmra.mxu0 %v140
    %v506 = vpop.f32.mrf.mxu0
    %v507 = vadd.f32 %v394, %v506
    %508 = vmatmul.f32.gmra.mxu0 %v144
    %v509 = vpop.f32.mrf.mxu0
    %v510 = vadd.f32 %v397, %v509
    %511 = vmatmul.f32.gmra.mxu0 %v148
    %v512 = vpop.f32.mrf.mxu0
    %v513 = vadd.f32 %v400, %v512
    %514 = vmatmul.f32.gmra.mxu0 %v152
    %v515 = vpop.f32.mrf.mxu0
    %v516 = vadd.f32 %v403, %v515
    %517 = vmatmul.f32.gmra.mxu0 %v156
    %v518 = vpop.f32.mrf.mxu0
    %v519 = vadd.f32 %v406, %v518
    %520 = vmatmul.f32.gmra.mxu0 %v160
    %v521 = vpop.f32.mrf.mxu0
    %v522 = vadd.f32 %v409, %v521
    %523 = vmatmul.f32.gmra.mxu0 %v164
    %v524 = vpop.f32.mrf.mxu0
    %v525 = vadd.f32 %v412, %v524
    %526 = vmatmul.f32.gmra.mxu0 %v168
    %v527 = vpop.f32.mrf.mxu0
    %v528 = vadd.f32 %v415, %v527
    %529 = vmatmul.f32.gmra.mxu0 %v172
    %v530 = vpop.f32.mrf.mxu0
    %v531 = vadd.f32 %v418, %v530
    %532 = vmatmul.f32.gmra.mxu0 %v176
    %v533 = vpop.f32.mrf.mxu0
    %v534 = vadd.f32 %v421, %v533
    %535 = vmatmul.f32.gmra.mxu0 %v180
    %v536 = vpop.f32.mrf.mxu0
    %v537 = vadd.f32 %v424, %v536
    %538 = vmatmul.f32.gmra.mxu0 %v184
    %v539 = vpop.f32.mrf.mxu0
    %v540 = vadd.f32 %v427, %v539
    %541 = vmatmul.f32.gmra.mxu0 %v188
    %v542 = vpop.f32.mrf.mxu0
    %v543 = vadd.f32 %v430, %v542
    %544 = vmatmul.f32.gmra.mxu0 %v192
    %v545 = vpop.f32.mrf.mxu0
    %v546 = vadd.f32 %v433, %v545
    %547 = vmatmul.f32.gmra.mxu0 %v196
    %v548 = vpop.f32.mrf.mxu0
    %v549 = vadd.f32 %v436, %v548
    %550 = vmatmul.f32.gmra.mxu0 %v200
    %v551 = vpop.f32.mrf.mxu0
    %v552 = vadd.f32 %v439, %v551
    %553 = vmatmul.f32.gmra.mxu0 %v204
    %v554 = vpop.f32.mrf.mxu0
    %v555 = vadd.f32 %v442, %v554
    %556 = vmatmul.f32.gmra.mxu0 %v208
    %v557 = vpop.f32.mrf.mxu0
    %v558 = vadd.f32 %v445, %v557
    %559 = vmatmul.f32.gmra.mxu0 %v212
    %v560 = vpop.f32.mrf.mxu0
    %v561 = vadd.f32 %v448, %v560
    %562 = vmatmul.f32.gmra.mxu0 %v216
    %v563 = vpop.f32.mrf.mxu0
    %v564 = vadd.f32 %v451, %v563
    %565 = vmatmul.f32.gmra.mxu0 %v220
    %v566 = vpop.f32.mrf.mxu0
    %v567 = vadd.f32 %v454, %v566
    %568 = vmatmul.f32.gmra.mxu0 %v224
    %v569 = vpop.f32.mrf.mxu0
    %v570 = vadd.f32 %v457, %v569
    %571 = vmatmul.f32.gmra.mxu0 %v228
    %v572 = vpop.f32.mrf.mxu0
    %v573 = vadd.f32 %v460, %v572
    %574 = vmatmul.f32.gmra.mxu0 %v232
    %v575 = vpop.f32.mrf.mxu0
    %v576 = vadd.f32 %v463, %v575
    %577 = vmatmul.f32.gmra.mxu0 %v236
    %v578 = vpop.f32.mrf.mxu0
    %v579 = vadd.f32 %v466, %v578
    %580 = vmatmul.f32.gmra.mxu0 %v240
    %v581 = vpop.f32.mrf.mxu0
    %v582 = vadd.f32 %v469, %v581
    %583 = vmatmul.f32.gmra.mxu0 %v244
    %v584 = vpop.f32.mrf.mxu0
    %v585 = vadd.f32 %v472, %v584
    %586 = vmatmul.f32.gmra.mxu0 %v248
    %v587 = vpop.f32.mrf.mxu0
    %v588 = vadd.f32 %v475, %v587
    %589 = vmatmul.f32.gmra.mxu0 %v252
    %v590 = vpop.f32.mrf.mxu0
    %v591 = vadd.f32 %v478, %v590
    %592 = vdwg.mxu0
    %593 = vmatpush.msra.mxu0 %v125
    %594 = vmatpush.msra.mxu0 %v124
    %595 = vmatpush.msra.mxu0 %v123
    %596 = vmatpush.msra.mxu0 %v122
    %597 = vmatpush.msra.mxu0 %v121
    %598 = vmatpush.msra.mxu0 %v120
    %599 = vmatpush.msra.mxu0 %v119
    %600 = vmatpush.msra.mxu0 %v118
    %601 = vmatpush.msra.mxu0 %v117
    %602 = vmatpush.msra.mxu0 %v116
    %603 = vmatpush.msra.mxu0 %v115
    %604 = vmatpush.msra.mxu0 %v114
    %605 = vmatpush.msra.mxu0 %v113
    %606 = vmatpush.msra.mxu0 %v112
    %607 = vmatpush.msra.mxu0 %v111
    %608 = vmatpush.msra.mxu0 %v110
    %609 = vmatmul.f32.gmra.mxu0 %v129
    %v610 = vpop.f32.mrf.mxu0
    %v611 = vadd.f32 %v498, %v610
    %612 = vmatmul.f32.gmra.mxu0 %v133
    %v613 = vpop.f32.mrf.mxu0
    %v614 = vadd.f32 %v501, %v613
    %615 = vmatmul.f32.gmra.mxu0 %v137
    %v616 = vpop.f32.mrf.mxu0
    %v617 = vadd.f32 %v504, %v616
    %618 = vmatmul.f32.gmra.mxu0 %v141
    %v619 = vpop.f32.mrf.mxu0
    %v620 = vadd.f32 %v507, %v619
    %621 = vmatmul.f32.gmra.mxu0 %v145
    %v622 = vpop.f32.mrf.mxu0
    %v623 = vadd.f32 %v510, %v622
    %624 = vmatmul.f32.gmra.mxu0 %v149
    %v625 = vpop.f32.mrf.mxu0
    %v626 = vadd.f32 %v513, %v625
    %627 = vmatmul.f32.gmra.mxu0 %v153
    %v628 = vpop.f32.mrf.mxu0
    %v629 = vadd.f32 %v516, %v628
    %630 = vmatmul.f32.gmra.mxu0 %v157
    %v631 = vpop.f32.mrf.mxu0
    %v632 = vadd.f32 %v519, %v631
    %633 = vmatmul.f32.gmra.mxu0 %v161
    %v634 = vpop.f32.mrf.mxu0
    %v635 = vadd.f32 %v522, %v634
    %636 = vmatmul.f32.gmra.mxu0 %v165
    %v637 = vpop.f32.mrf.mxu0
    %v638 = vadd.f32 %v525, %v637
    %639 = vmatmul.f32.gmra.mxu0 %v169
    %v640 = vpop.f32.mrf.mxu0
    %v641 = vadd.f32 %v528, %v640
    %642 = vmatmul.f32.gmra.mxu0 %v173
    %v643 = vpop.f32.mrf.mxu0
    %v644 = vadd.f32 %v531, %v643
    %645 = vmatmul.f32.gmra.mxu0 %v177
    %v646 = vpop.f32.mrf.mxu0
    %v647 = vadd.f32 %v534, %v646
    %648 = vmatmul.f32.gmra.mxu0 %v181
    %v649 = vpop.f32.mrf.mxu0
    %v650 = vadd.f32 %v537, %v649
    %651 = vmatmul.f32.gmra.mxu0 %v185
    %v652 = vpop.f32.mrf.mxu0
    %v653 = vadd.f32 %v540, %v652
    %654 = vmatmul.f32.gmra.mxu0 %v189
    %v655 = vpop.f32.mrf.mxu0
    %v656 = vadd.f32 %v543, %v655
    %657 = vmatmul.f32.gmra.mxu0 %v193
    %v658 = vpop.f32.mrf.mxu0
    %v659 = vadd.f32 %v546, %v658
    %660 = vmatmul.f32.gmra.mxu0 %v197
    %v661 = vpop.f32.mrf.mxu0
    %v662 = vadd.f32 %v549, %v661
    %663 = vmatmul.f32.gmra.mxu0 %v201
    %v664 = vpop.f32.mrf.mxu0
    %v665 = vadd.f32 %v552, %v664
    %666 = vmatmul.f32.gmra.mxu0 %v205
    %v667 = vpop.f32.mrf.mxu0
    %v668 = vadd.f32 %v555, %v667
    %669 = vmatmul.f32.gmra.mxu0 %v209
    %v670 = vpop.f32.mrf.mxu0
    %v671 = vadd.f32 %v558, %v670
    %672 = vmatmul.f32.gmra.mxu0 %v213
    %v673 = vpop.f32.mrf.mxu0
    %v674 = vadd.f32 %v561, %v673
    %675 = vmatmul.f32.gmra.mxu0 %v217
    %v676 = vpop.f32.mrf.mxu0
    %v677 = vadd.f32 %v564, %v676
    %678 = vmatmul.f32.gmra.mxu0 %v221
    %v679 = vpop.f32.mrf.mxu0
    %v680 = vadd.f32 %v567, %v679
    %681 = vmatmul.f32.gmra.mxu0 %v225
    %v682 = vpop.f32.mrf.mxu0
    %v683 = vadd.f32 %v570, %v682
    %684 = vmatmul.f32.gmra.mxu0 %v229
    %v685 = vpop.f32.mrf.mxu0
    %v686 = vadd.f32 %v573, %v685
    %687 = vmatmul.f32.gmra.mxu0 %v233
    %v688 = vpop.f32.mrf.mxu0
    %v689 = vadd.f32 %v576, %v688
    %690 = vmatmul.f32.gmra.mxu0 %v237
    %v691 = vpop.f32.mrf.mxu0
    %v692 = vadd.f32 %v579, %v691
    %693 = vmatmul.f32.gmra.mxu0 %v241
    %v694 = vpop.f32.mrf.mxu0
    %v695 = vadd.f32 %v582, %v694
    %696 = vmatmul.f32.gmra.mxu0 %v245
    %v697 = vpop.f32.mrf.mxu0
    %v698 = vadd.f32 %v585, %v697
    %699 = vmatmul.f32.gmra.mxu0 %v249
    %v700 = vpop.f32.mrf.mxu0
    %v701 = vadd.f32 %v588, %v700
    %702 = vmatmul.f32.gmra.mxu0 %v253
    %v703 = vpop.f32.mrf.mxu0
    %v704 = vadd.f32 %v591, %v703
    %705 = vdwg.mxu0
    %v706 = vsub.f32 %v62, %v94
    %v707 = vsub.f32 %v63, %v95
    %v708 = vsub.f32 %v64, %v96
    %v709 = vsub.f32 %v65, %v97
    %v710 = vsub.f32 %v66, %v94
    %v711 = vsub.f32 %v67, %v95
    %v712 = vsub.f32 %v68, %v96
    %v713 = vsub.f32 %v69, %v97
    %v714 = vsub.f32 %v70, %v94
    %v715 = vsub.f32 %v71, %v95
    %v716 = vsub.f32 %v72, %v96
    %v717 = vsub.f32 %v73, %v97
    %v718 = vsub.f32 %v74, %v94
    %v719 = vsub.f32 %v75, %v95
    %v720 = vsub.f32 %v76, %v96
    %v721 = vsub.f32 %v77, %v97
    %v722 = vsub.f32 %v78, %v94
    %v723 = vsub.f32 %v79, %v95
    %v724 = vsub.f32 %v80, %v96
    %v725 = vsub.f32 %v81, %v97
    %v726 = vsub.f32 %v82, %v94
    %v727 = vsub.f32 %v83, %v95
    %v728 = vsub.f32 %v84, %v96
    %v729 = vsub.f32 %v85, %v97
    %v730 = vsub.f32 %v86, %v94
    %v731 = vsub.f32 %v87, %v95
    %v732 = vsub.f32 %v88, %v96
    %v733 = vsub.f32 %v89, %v97
    %v734 = vsub.f32 %v90, %v94
    %v735 = vsub.f32 %v91, %v95
    %v736 = vsub.f32 %v92, %v96
    %v737 = vsub.f32 %v93, %v97
    %v738 = vand.u32 2147483647, %v706
    %v739 = vand.u32 2147483647, %v707
    %v740 = vand.u32 2147483647, %v708
    %v741 = vand.u32 2147483647, %v709
    %v742 = vand.u32 2147483647, %v710
    %v743 = vand.u32 2147483647, %v711
    %v744 = vand.u32 2147483647, %v712
    %v745 = vand.u32 2147483647, %v713
    %v746 = vand.u32 2147483647, %v714
    %v747 = vand.u32 2147483647, %v715
    %v748 = vand.u32 2147483647, %v716
    %v749 = vand.u32 2147483647, %v717
    %v750 = vand.u32 2147483647, %v718
    %v751 = vand.u32 2147483647, %v719
    %v752 = vand.u32 2147483647, %v720
    %v753 = vand.u32 2147483647, %v721
    %v754 = vand.u32 2147483647, %v722
    %v755 = vand.u32 2147483647, %v723
    %v756 = vand.u32 2147483647, %v724
    %v757 = vand.u32 2147483647, %v725
    %v758 = vand.u32 2147483647, %v726
    %v759 = vand.u32 2147483647, %v727
    %v760 = vand.u32 2147483647, %v728
    %v761 = vand.u32 2147483647, %v729
    %v762 = vand.u32 2147483647, %v730
    %v763 = vand.u32 2147483647, %v731
    %v764 = vand.u32 2147483647, %v732
    %v765 = vand.u32 2147483647, %v733
    %v766 = vand.u32 2147483647, %v734
    %v767 = vand.u32 2147483647, %v735
    %v768 = vand.u32 2147483647, %v736
    %v769 = vand.u32 2147483647, %v737
    %v770 = vadd.f32 %v738, %v739
    %v771 = vadd.f32 %v770, %v740
    %v772 = vadd.f32 %v771, %v741
    %v773 = vrot.slane %v772, 4
    %v774 = vadd.f32 %v772, %v773
    %v775 = vrot.slane %v774, 2
    %v776 = vadd.f32 %v774, %v775
    %v777 = vrot.slane %v776, 1
    %v778 = vadd.f32 %v776, %v777
    %v779 = vadd.f32 %v742, %v743
    %v780 = vadd.f32 %v779, %v744
    %v781 = vadd.f32 %v780, %v745
    %v782 = vrot.slane %v781, 4
    %v783 = vadd.f32 %v781, %v782
    %v784 = vrot.slane %v783, 2
    %v785 = vadd.f32 %v783, %v784
    %v786 = vrot.slane %v785, 1
    %v787 = vadd.f32 %v785, %v786
    %v788 = vadd.f32 %v746, %v747
    %v789 = vadd.f32 %v788, %v748
    %v790 = vadd.f32 %v789, %v749
    %v791 = vrot.slane %v790, 4
    %v792 = vadd.f32 %v790, %v791
    %v793 = vrot.slane %v792, 2
    %v794 = vadd.f32 %v792, %v793
    %v795 = vrot.slane %v794, 1
    %v796 = vadd.f32 %v794, %v795
    %v797 = vadd.f32 %v750, %v751
    %v798 = vadd.f32 %v797, %v752
    %v799 = vadd.f32 %v798, %v753
    %v800 = vrot.slane %v799, 4
    %v801 = vadd.f32 %v799, %v800
    %v802 = vrot.slane %v801, 2
    %v803 = vadd.f32 %v801, %v802
    %v804 = vrot.slane %v803, 1
    %v805 = vadd.f32 %v803, %v804
    %v806 = vadd.f32 %v754, %v755
    %v807 = vadd.f32 %v806, %v756
    %v808 = vadd.f32 %v807, %v757
    %v809 = vrot.slane %v808, 4
    %v810 = vadd.f32 %v808, %v809
    %v811 = vrot.slane %v810, 2
    %v812 = vadd.f32 %v810, %v811
    %v813 = vrot.slane %v812, 1
    %v814 = vadd.f32 %v812, %v813
    %v815 = vadd.f32 %v758, %v759
    %v816 = vadd.f32 %v815, %v760
    %v817 = vadd.f32 %v816, %v761
    %v818 = vrot.slane %v817, 4
    %v819 = vadd.f32 %v817, %v818
    %v820 = vrot.slane %v819, 2
    %v821 = vadd.f32 %v819, %v820
    %v822 = vrot.slane %v821, 1
    %v823 = vadd.f32 %v821, %v822
    %v824 = vadd.f32 %v762, %v763
    %v825 = vadd.f32 %v824, %v764
    %v826 = vadd.f32 %v825, %v765
    %v827 = vrot.slane %v826, 4
    %v828 = vadd.f32 %v826, %v827
    %v829 = vrot.slane %v828, 2
    %v830 = vadd.f32 %v828, %v829
    %v831 = vrot.slane %v830, 1
    %v832 = vadd.f32 %v830, %v831
    %v833 = vadd.f32 %v766, %v767
    %v834 = vadd.f32 %v833, %v768
    %v835 = vadd.f32 %v834, %v769
    %v836 = vrot.slane %v835, 4
    %v837 = vadd.f32 %v835, %v836
    %v838 = vrot.slane %v837, 2
    %v839 = vadd.f32 %v837, %v838
    %v840 = vrot.slane %v839, 1
    %v841 = vadd.f32 %v839, %v840
    %v842 = vadd.f32 %v778, 1.0
    %v843 = vadd.f32 %v787, 1.0
    %v844 = vadd.f32 %v796, 1.0
    %v845 = vadd.f32 %v805, 1.0
    %v846 = vadd.f32 %v814, 1.0
    %v847 = vadd.f32 %v823, 1.0
    %v848 = vadd.f32 %v832, 1.0
    %v849 = vadd.f32 %v841, 1.0
    %v850 = vrcp.pop %v842
    %v851 = vmul.f32 %v842, %v850
    %v852 = vsub.f32 1.0, %v851
    %v853 = vmul.f32 %v850, %v852
    %v854 = vadd.f32 %v850, %v853
    %vm855 = vweird.f32 %v842
    %vm856 = vweird.f32 %v850
    %vm857 = vmor %vm855, %vm856
    %v858 = vsel %vm857, %v850, %v854
    %v859 = vand.u32 2147483647, %v842
    %vm860 = vcmp.eq.f32.partialorder %v859, 8.507059e+37
    %v861 = vand.u32 %v842, 2147483648
    %v862 = vor.u32 1.1754944e-38, %v861
    %v863 = vsel %vm860, %v862, %v858
    %v864 = vmul.f32 1.0, %v863
    %v865 = vrcp.pop %v843
    %v866 = vmul.f32 %v843, %v865
    %v867 = vsub.f32 1.0, %v866
    %v868 = vmul.f32 %v865, %v867
    %v869 = vadd.f32 %v865, %v868
    %vm870 = vweird.f32 %v843
    %vm871 = vweird.f32 %v865
    %vm872 = vmor %vm870, %vm871
    %v873 = vsel %vm872, %v865, %v869
    %v874 = vand.u32 2147483647, %v843
    %vm875 = vcmp.eq.f32.partialorder %v874, 8.507059e+37
    %v876 = vand.u32 %v843, 2147483648
    %v877 = vor.u32 1.1754944e-38, %v876
    %v878 = vsel %vm875, %v877, %v873
    %v879 = vmul.f32 1.0, %v878
    %v880 = vrcp.pop %v844
    %v881 = vmul.f32 %v844, %v880
    %v882 = vsub.f32 1.0, %v881
    %v883 = vmul.f32 %v880, %v882
    %v884 = vadd.f32 %v880, %v883
    %vm885 = vweird.f32 %v844
    %vm886 = vweird.f32 %v880
    %vm887 = vmor %vm885, %vm886
    %v888 = vsel %vm887, %v880, %v884
    %v889 = vand.u32 2147483647, %v844
    %vm890 = vcmp.eq.f32.partialorder %v889, 8.507059e+37
    %v891 = vand.u32 %v844, 2147483648
    %v892 = vor.u32 1.1754944e-38, %v891
    %v893 = vsel %vm890, %v892, %v888
    %v894 = vmul.f32 1.0, %v893
    %v895 = vrcp.pop %v845
    %v896 = vmul.f32 %v845, %v895
    %v897 = vsub.f32 1.0, %v896
    %v898 = vmul.f32 %v895, %v897
    %v899 = vadd.f32 %v895, %v898
    %vm900 = vweird.f32 %v845
    %vm901 = vweird.f32 %v895
    %vm902 = vmor %vm900, %vm901
    %v903 = vsel %vm902, %v895, %v899
    %v904 = vand.u32 2147483647, %v845
    %vm905 = vcmp.eq.f32.partialorder %v904, 8.507059e+37
    %v906 = vand.u32 %v845, 2147483648
    %v907 = vor.u32 1.1754944e-38, %v906
    %v908 = vsel %vm905, %v907, %v903
    %v909 = vmul.f32 1.0, %v908
    %v910 = vrcp.pop %v846
    %v911 = vmul.f32 %v846, %v910
    %v912 = vsub.f32 1.0, %v911
    %v913 = vmul.f32 %v910, %v912
    %v914 = vadd.f32 %v910, %v913
    %vm915 = vweird.f32 %v846
    %vm916 = vweird.f32 %v910
    %vm917 = vmor %vm915, %vm916
    %v918 = vsel %vm917, %v910, %v914
    %v919 = vand.u32 2147483647, %v846
    %vm920 = vcmp.eq.f32.partialorder %v919, 8.507059e+37
    %v921 = vand.u32 %v846, 2147483648
    %v922 = vor.u32 1.1754944e-38, %v921
    %v923 = vsel %vm920, %v922, %v918
    %v924 = vmul.f32 1.0, %v923
    %v925 = vrcp.pop %v847
    %v926 = vmul.f32 %v847, %v925
    %v927 = vsub.f32 1.0, %v926
    %v928 = vmul.f32 %v925, %v927
    %v929 = vadd.f32 %v925, %v928
    %vm930 = vweird.f32 %v847
    %vm931 = vweird.f32 %v925
    %vm932 = vmor %vm930, %vm931
    %v933 = vsel %vm932, %v925, %v929
    %v934 = vand.u32 2147483647, %v847
    %vm935 = vcmp.eq.f32.partialorder %v934, 8.507059e+37
    %v936 = vand.u32 %v847, 2147483648
    %v937 = vor.u32 1.1754944e-38, %v936
    %v938 = vsel %vm935, %v937, %v933
    %v939 = vmul.f32 1.0, %v938
    %v940 = vrcp.pop %v848
    %v941 = vmul.f32 %v848, %v940
    %v942 = vsub.f32 1.0, %v941
    %v943 = vmul.f32 %v940, %v942
    %v944 = vadd.f32 %v940, %v943
    %vm945 = vweird.f32 %v848
    %vm946 = vweird.f32 %v940
    %vm947 = vmor %vm945, %vm946
    %v948 = vsel %vm947, %v940, %v944
    %v949 = vand.u32 2147483647, %v848
    %vm950 = vcmp.eq.f32.partialorder %v949, 8.507059e+37
    %v951 = vand.u32 %v848, 2147483648
    %v952 = vor.u32 1.1754944e-38, %v951
    %v953 = vsel %vm950, %v952, %v948
    %v954 = vmul.f32 1.0, %v953
    %v955 = vrcp.pop %v849
    %v956 = vmul.f32 %v849, %v955
    %v957 = vsub.f32 1.0, %v956
    %v958 = vmul.f32 %v955, %v957
    %v959 = vadd.f32 %v955, %v958
    %vm960 = vweird.f32 %v849
    %vm961 = vweird.f32 %v955
    %vm962 = vmor %vm960, %vm961
    %v963 = vsel %vm962, %v955, %v959
    %v964 = vand.u32 2147483647, %v849
    %vm965 = vcmp.eq.f32.partialorder %v964, 8.507059e+37
    %v966 = vand.u32 %v849, 2147483648
    %v967 = vor.u32 1.1754944e-38, %v966
    %v968 = vsel %vm965, %v967, %v963
    %v969 = vmul.f32 1.0, %v968
    %v970 = vmul.f32 %v864, %v659
    %v971 = vmul.f32 %v864, %v662
    %v972 = vmul.f32 %v879, %v659
    %v973 = vmul.f32 %v879, %v662
    %v974 = vmul.f32 %v894, %v659
    %v975 = vmul.f32 %v894, %v662
    %v976 = vmul.f32 %v909, %v659
    %v977 = vmul.f32 %v909, %v662
    %v978 = vmul.f32 %v924, %v659
    %v979 = vmul.f32 %v924, %v662
    %v980 = vmul.f32 %v939, %v659
    %v981 = vmul.f32 %v939, %v662
    %v982 = vmul.f32 %v954, %v659
    %v983 = vmul.f32 %v954, %v662
    %v984 = vmul.f32 %v969, %v659
    %v985 = vmul.f32 %v969, %v662
    %v986 = vadd.f32 %v970, 0.0
    %v987 = vadd.f32 %v971, 0.0
    %v988 = vadd.f32 %v972, 0.0
    %v989 = vadd.f32 %v973, 0.0
    %v990 = vadd.f32 %v974, 0.0
    %v991 = vadd.f32 %v975, 0.0
    %v992 = vadd.f32 %v976, 0.0
    %v993 = vadd.f32 %v977, 0.0
    %v994 = vadd.f32 %v978, 0.0
    %v995 = vadd.f32 %v979, 0.0
    %v996 = vadd.f32 %v980, 0.0
    %v997 = vadd.f32 %v981, 0.0
    %v998 = vadd.f32 %v982, 0.0
    %v999 = vadd.f32 %v983, 0.0
    %v1000 = vadd.f32 %v984, 0.0
    %v1001 = vadd.f32 %v985, 0.0
    %v1002 = vmul.f32 %v864, %v611
    %v1003 = vmul.f32 %v864, %v614
    %v1004 = vmul.f32 %v879, %v617
    %v1005 = vmul.f32 %v879, %v620
    %v1006 = vmul.f32 %v894, %v623
    %v1007 = vmul.f32 %v894, %v626
    %v1008 = vmul.f32 %v909, %v629
    %v1009 = vmul.f32 %v909, %v632
    %v1010 = vmul.f32 %v924, %v635
    %v1011 = vmul.f32 %v924, %v638
    %v1012 = vmul.f32 %v939, %v641
    %v1013 = vmul.f32 %v939, %v644
    %v1014 = vmul.f32 %v954, %v647
    %v1015 = vmul.f32 %v954, %v650
    %v1016 = vmul.f32 %v969, %v653
    %v1017 = vmul.f32 %v969, %v656
    %v1018 = vadd.f32 %v1002, %v1004
    %v1019 = vadd.f32 %v1018, %v1006
    %v1020 = vadd.f32 %v1019, %v1008
    %v1021 = vadd.f32 %v1020, %v1010
    %v1022 = vadd.f32 %v1021, %v1012
    %v1023 = vadd.f32 %v1022, %v1014
    %v1024 = vadd.f32 %v1023, %v1016
    %v1025 = vadd.f32 %v1003, %v1005
    %v1026 = vadd.f32 %v1025, %v1007
    %v1027 = vadd.f32 %v1026, %v1009
    %v1028 = vadd.f32 %v1027, %v1011
    %v1029 = vadd.f32 %v1028, %v1013
    %v1030 = vadd.f32 %v1029, %v1015
    %v1031 = vadd.f32 %v1030, %v1017
    %v1032 = vsub.f32 %v62, %v98
    %v1033 = vsub.f32 %v63, %v99
    %v1034 = vsub.f32 %v64, %v100
    %v1035 = vsub.f32 %v65, %v101
    %v1036 = vsub.f32 %v66, %v98
    %v1037 = vsub.f32 %v67, %v99
    %v1038 = vsub.f32 %v68, %v100
    %v1039 = vsub.f32 %v69, %v101
    %v1040 = vsub.f32 %v70, %v98
    %v1041 = vsub.f32 %v71, %v99
    %v1042 = vsub.f32 %v72, %v100
    %v1043 = vsub.f32 %v73, %v101
    %v1044 = vsub.f32 %v74, %v98
    %v1045 = vsub.f32 %v75, %v99
    %v1046 = vsub.f32 %v76, %v100
    %v1047 = vsub.f32 %v77, %v101
    %v1048 = vsub.f32 %v78, %v98
    %v1049 = vsub.f32 %v79, %v99
    %v1050 = vsub.f32 %v80, %v100
    %v1051 = vsub.f32 %v81, %v101
    %v1052 = vsub.f32 %v82, %v98
    %v1053 = vsub.f32 %v83, %v99
    %v1054 = vsub.f32 %v84, %v100
    %v1055 = vsub.f32 %v85, %v101
    %v1056 = vsub.f32 %v86, %v98
    %v1057 = vsub.f32 %v87, %v99
    %v1058 = vsub.f32 %v88, %v100
    %v1059 = vsub.f32 %v89, %v101
    %v1060 = vsub.f32 %v90, %v98
    %v1061 = vsub.f32 %v91, %v99
    %v1062 = vsub.f32 %v92, %v100
    %v1063 = vsub.f32 %v93, %v101
    %v1064 = vand.u32 2147483647, %v1032
    %v1065 = vand.u32 2147483647, %v1033
    %v1066 = vand.u32 2147483647, %v1034
    %v1067 = vand.u32 2147483647, %v1035
    %v1068 = vand.u32 2147483647, %v1036
    %v1069 = vand.u32 2147483647, %v1037
    %v1070 = vand.u32 2147483647, %v1038
    %v1071 = vand.u32 2147483647, %v1039
    %v1072 = vand.u32 2147483647, %v1040
    %v1073 = vand.u32 2147483647, %v1041
    %v1074 = vand.u32 2147483647, %v1042
    %v1075 = vand.u32 2147483647, %v1043
    %v1076 = vand.u32 2147483647, %v1044
    %v1077 = vand.u32 2147483647, %v1045
    %v1078 = vand.u32 2147483647, %v1046
    %v1079 = vand.u32 2147483647, %v1047
    %v1080 = vand.u32 2147483647, %v1048
    %v1081 = vand.u32 2147483647, %v1049
    %v1082 = vand.u32 2147483647, %v1050
    %v1083 = vand.u32 2147483647, %v1051
    %v1084 = vand.u32 2147483647, %v1052
    %v1085 = vand.u32 2147483647, %v1053
    %v1086 = vand.u32 2147483647, %v1054
    %v1087 = vand.u32 2147483647, %v1055
    %v1088 = vand.u32 2147483647, %v1056
    %v1089 = vand.u32 2147483647, %v1057
    %v1090 = vand.u32 2147483647, %v1058
    %v1091 = vand.u32 2147483647, %v1059
    %v1092 = vand.u32 2147483647, %v1060
    %v1093 = vand.u32 2147483647, %v1061
    %v1094 = vand.u32 2147483647, %v1062
    %v1095 = vand.u32 2147483647, %v1063
    %v1096 = vadd.f32 %v1064, %v1065
    %v1097 = vadd.f32 %v1096, %v1066
    %v1098 = vadd.f32 %v1097, %v1067
    %v1099 = vrot.slane %v1098, 4
    %v1100 = vadd.f32 %v1098, %v1099
    %v1101 = vrot.slane %v1100, 2
    %v1102 = vadd.f32 %v1100, %v1101
    %v1103 = vrot.slane %v1102, 1
    %v1104 = vadd.f32 %v1102, %v1103
    %v1105 = vadd.f32 %v1068, %v1069
    %v1106 = vadd.f32 %v1105, %v1070
    %v1107 = vadd.f32 %v1106, %v1071
    %v1108 = vrot.slane %v1107, 4
    %v1109 = vadd.f32 %v1107, %v1108
    %v1110 = vrot.slane %v1109, 2
    %v1111 = vadd.f32 %v1109, %v1110
    %v1112 = vrot.slane %v1111, 1
    %v1113 = vadd.f32 %v1111, %v1112
    %v1114 = vadd.f32 %v1072, %v1073
    %v1115 = vadd.f32 %v1114, %v1074
    %v1116 = vadd.f32 %v1115, %v1075
    %v1117 = vrot.slane %v1116, 4
    %v1118 = vadd.f32 %v1116, %v1117
    %v1119 = vrot.slane %v1118, 2
    %v1120 = vadd.f32 %v1118, %v1119
    %v1121 = vrot.slane %v1120, 1
    %v1122 = vadd.f32 %v1120, %v1121
    %v1123 = vadd.f32 %v1076, %v1077
    %v1124 = vadd.f32 %v1123, %v1078
    %v1125 = vadd.f32 %v1124, %v1079
    %v1126 = vrot.slane %v1125, 4
    %v1127 = vadd.f32 %v1125, %v1126
    %v1128 = vrot.slane %v1127, 2
    %v1129 = vadd.f32 %v1127, %v1128
    %v1130 = vrot.slane %v1129, 1
    %v1131 = vadd.f32 %v1129, %v1130
    %v1132 = vadd.f32 %v1080, %v1081
    %v1133 = vadd.f32 %v1132, %v1082
    %v1134 = vadd.f32 %v1133, %v1083
    %v1135 = vrot.slane %v1134, 4
    %v1136 = vadd.f32 %v1134, %v1135
    %v1137 = vrot.slane %v1136, 2
    %v1138 = vadd.f32 %v1136, %v1137
    %v1139 = vrot.slane %v1138, 1
    %v1140 = vadd.f32 %v1138, %v1139
    %v1141 = vadd.f32 %v1084, %v1085
    %v1142 = vadd.f32 %v1141, %v1086
    %v1143 = vadd.f32 %v1142, %v1087
    %v1144 = vrot.slane %v1143, 4
    %v1145 = vadd.f32 %v1143, %v1144
    %v1146 = vrot.slane %v1145, 2
    %v1147 = vadd.f32 %v1145, %v1146
    %v1148 = vrot.slane %v1147, 1
    %v1149 = vadd.f32 %v1147, %v1148
    %v1150 = vadd.f32 %v1088, %v1089
    %v1151 = vadd.f32 %v1150, %v1090
    %v1152 = vadd.f32 %v1151, %v1091
    %v1153 = vrot.slane %v1152, 4
    %v1154 = vadd.f32 %v1152, %v1153
    %v1155 = vrot.slane %v1154, 2
    %v1156 = vadd.f32 %v1154, %v1155
    %v1157 = vrot.slane %v1156, 1
    %v1158 = vadd.f32 %v1156, %v1157
    %v1159 = vadd.f32 %v1092, %v1093
    %v1160 = vadd.f32 %v1159, %v1094
    %v1161 = vadd.f32 %v1160, %v1095
    %v1162 = vrot.slane %v1161, 4
    %v1163 = vadd.f32 %v1161, %v1162
    %v1164 = vrot.slane %v1163, 2
    %v1165 = vadd.f32 %v1163, %v1164
    %v1166 = vrot.slane %v1165, 1
    %v1167 = vadd.f32 %v1165, %v1166
    %v1168 = vadd.f32 %v1104, 1.0
    %v1169 = vadd.f32 %v1113, 1.0
    %v1170 = vadd.f32 %v1122, 1.0
    %v1171 = vadd.f32 %v1131, 1.0
    %v1172 = vadd.f32 %v1140, 1.0
    %v1173 = vadd.f32 %v1149, 1.0
    %v1174 = vadd.f32 %v1158, 1.0
    %v1175 = vadd.f32 %v1167, 1.0
    %v1176 = vrcp.pop %v1168
    %v1177 = vmul.f32 %v1168, %v1176
    %v1178 = vsub.f32 1.0, %v1177
    %v1179 = vmul.f32 %v1176, %v1178
    %v1180 = vadd.f32 %v1176, %v1179
    %vm1181 = vweird.f32 %v1168
    %vm1182 = vweird.f32 %v1176
    %vm1183 = vmor %vm1181, %vm1182
    %v1184 = vsel %vm1183, %v1176, %v1180
    %v1185 = vand.u32 2147483647, %v1168
    %vm1186 = vcmp.eq.f32.partialorder %v1185, 8.507059e+37
    %v1187 = vand.u32 %v1168, 2147483648
    %v1188 = vor.u32 1.1754944e-38, %v1187
    %v1189 = vsel %vm1186, %v1188, %v1184
    %v1190 = vmul.f32 1.0, %v1189
    %v1191 = vrcp.pop %v1169
    %v1192 = vmul.f32 %v1169, %v1191
    %v1193 = vsub.f32 1.0, %v1192
    %v1194 = vmul.f32 %v1191, %v1193
    %v1195 = vadd.f32 %v1191, %v1194
    %vm1196 = vweird.f32 %v1169
    %vm1197 = vweird.f32 %v1191
    %vm1198 = vmor %vm1196, %vm1197
    %v1199 = vsel %vm1198, %v1191, %v1195
    %v1200 = vand.u32 2147483647, %v1169
    %vm1201 = vcmp.eq.f32.partialorder %v1200, 8.507059e+37
    %v1202 = vand.u32 %v1169, 2147483648
    %v1203 = vor.u32 1.1754944e-38, %v1202
    %v1204 = vsel %vm1201, %v1203, %v1199
    %v1205 = vmul.f32 1.0, %v1204
    %v1206 = vrcp.pop %v1170
    %v1207 = vmul.f32 %v1170, %v1206
    %v1208 = vsub.f32 1.0, %v1207
    %v1209 = vmul.f32 %v1206, %v1208
    %v1210 = vadd.f32 %v1206, %v1209
    %vm1211 = vweird.f32 %v1170
    %vm1212 = vweird.f32 %v1206
    %vm1213 = vmor %vm1211, %vm1212
    %v1214 = vsel %vm1213, %v1206, %v1210
    %v1215 = vand.u32 2147483647, %v1170
    %vm1216 = vcmp.eq.f32.partialorder %v1215, 8.507059e+37
    %v1217 = vand.u32 %v1170, 2147483648
    %v1218 = vor.u32 1.1754944e-38, %v1217
    %v1219 = vsel %vm1216, %v1218, %v1214
    %v1220 = vmul.f32 1.0, %v1219
    %v1221 = vrcp.pop %v1171
    %v1222 = vmul.f32 %v1171, %v1221
    %v1223 = vsub.f32 1.0, %v1222
    %v1224 = vmul.f32 %v1221, %v1223
    %v1225 = vadd.f32 %v1221, %v1224
    %vm1226 = vweird.f32 %v1171
    %vm1227 = vweird.f32 %v1221
    %vm1228 = vmor %vm1226, %vm1227
    %v1229 = vsel %vm1228, %v1221, %v1225
    %v1230 = vand.u32 2147483647, %v1171
    %vm1231 = vcmp.eq.f32.partialorder %v1230, 8.507059e+37
    %v1232 = vand.u32 %v1171, 2147483648
    %v1233 = vor.u32 1.1754944e-38, %v1232
    %v1234 = vsel %vm1231, %v1233, %v1229
    %v1235 = vmul.f32 1.0, %v1234
    %v1236 = vrcp.pop %v1172
    %v1237 = vmul.f32 %v1172, %v1236
    %v1238 = vsub.f32 1.0, %v1237
    %v1239 = vmul.f32 %v1236, %v1238
    %v1240 = vadd.f32 %v1236, %v1239
    %vm1241 = vweird.f32 %v1172
    %vm1242 = vweird.f32 %v1236
    %vm1243 = vmor %vm1241, %vm1242
    %v1244 = vsel %vm1243, %v1236, %v1240
    %v1245 = vand.u32 2147483647, %v1172
    %vm1246 = vcmp.eq.f32.partialorder %v1245, 8.507059e+37
    %v1247 = vand.u32 %v1172, 2147483648
    %v1248 = vor.u32 1.1754944e-38, %v1247
    %v1249 = vsel %vm1246, %v1248, %v1244
    %v1250 = vmul.f32 1.0, %v1249
    %v1251 = vrcp.pop %v1173
    %v1252 = vmul.f32 %v1173, %v1251
    %v1253 = vsub.f32 1.0, %v1252
    %v1254 = vmul.f32 %v1251, %v1253
    %v1255 = vadd.f32 %v1251, %v1254
    %vm1256 = vweird.f32 %v1173
    %vm1257 = vweird.f32 %v1251
    %vm1258 = vmor %vm1256, %vm1257
    %v1259 = vsel %vm1258, %v1251, %v1255
    %v1260 = vand.u32 2147483647, %v1173
    %vm1261 = vcmp.eq.f32.partialorder %v1260, 8.507059e+37
    %v1262 = vand.u32 %v1173, 2147483648
    %v1263 = vor.u32 1.1754944e-38, %v1262
    %v1264 = vsel %vm1261, %v1263, %v1259
    %v1265 = vmul.f32 1.0, %v1264
    %v1266 = vrcp.pop %v1174
    %v1267 = vmul.f32 %v1174, %v1266
    %v1268 = vsub.f32 1.0, %v1267
    %v1269 = vmul.f32 %v1266, %v1268
    %v1270 = vadd.f32 %v1266, %v1269
    %vm1271 = vweird.f32 %v1174
    %vm1272 = vweird.f32 %v1266
    %vm1273 = vmor %vm1271, %vm1272
    %v1274 = vsel %vm1273, %v1266, %v1270
    %v1275 = vand.u32 2147483647, %v1174
    %vm1276 = vcmp.eq.f32.partialorder %v1275, 8.507059e+37
    %v1277 = vand.u32 %v1174, 2147483648
    %v1278 = vor.u32 1.1754944e-38, %v1277
    %v1279 = vsel %vm1276, %v1278, %v1274
    %v1280 = vmul.f32 1.0, %v1279
    %v1281 = vrcp.pop %v1175
    %v1282 = vmul.f32 %v1175, %v1281
    %v1283 = vsub.f32 1.0, %v1282
    %v1284 = vmul.f32 %v1281, %v1283
    %v1285 = vadd.f32 %v1281, %v1284
    %vm1286 = vweird.f32 %v1175
    %vm1287 = vweird.f32 %v1281
    %vm1288 = vmor %vm1286, %vm1287
    %v1289 = vsel %vm1288, %v1281, %v1285
    %v1290 = vand.u32 2147483647, %v1175
    %vm1291 = vcmp.eq.f32.partialorder %v1290, 8.507059e+37
    %v1292 = vand.u32 %v1175, 2147483648
    %v1293 = vor.u32 1.1754944e-38, %v1292
    %v1294 = vsel %vm1291, %v1293, %v1289
    %v1295 = vmul.f32 1.0, %v1294
    %v1296 = vmul.f32 %v1190, %v665
    %v1297 = vmul.f32 %v1190, %v668
    %v1298 = vmul.f32 %v1205, %v665
    %v1299 = vmul.f32 %v1205, %v668
    %v1300 = vmul.f32 %v1220, %v665
    %v1301 = vmul.f32 %v1220, %v668
    %v1302 = vmul.f32 %v1235, %v665
    %v1303 = vmul.f32 %v1235, %v668
    %v1304 = vmul.f32 %v1250, %v665
    %v1305 = vmul.f32 %v1250, %v668
    %v1306 = vmul.f32 %v1265, %v665
    %v1307 = vmul.f32 %v1265, %v668
    %v1308 = vmul.f32 %v1280, %v665
    %v1309 = vmul.f32 %v1280, %v668
    %v1310 = vmul.f32 %v1295, %v665
    %v1311 = vmul.f32 %v1295, %v668
    %v1312 = vadd.f32 %v986, %v1296
    %v1313 = vadd.f32 %v987, %v1297
    %v1314 = vadd.f32 %v988, %v1298
    %v1315 = vadd.f32 %v989, %v1299
    %v1316 = vadd.f32 %v990, %v1300
    %v1317 = vadd.f32 %v991, %v1301
    %v1318 = vadd.f32 %v992, %v1302
    %v1319 = vadd.f32 %v993, %v1303
    %v1320 = vadd.f32 %v994, %v1304
    %v1321 = vadd.f32 %v995, %v1305
    %v1322 = vadd.f32 %v996, %v1306
    %v1323 = vadd.f32 %v997, %v1307
    %v1324 = vadd.f32 %v998, %v1308
    %v1325 = vadd.f32 %v999, %v1309
    %v1326 = vadd.f32 %v1000, %v1310
    %v1327 = vadd.f32 %v1001, %v1311
    %v1328 = vmul.f32 %v1190, %v611
    %v1329 = vmul.f32 %v1190, %v614
    %v1330 = vmul.f32 %v1205, %v617
    %v1331 = vmul.f32 %v1205, %v620
    %v1332 = vmul.f32 %v1220, %v623
    %v1333 = vmul.f32 %v1220, %v626
    %v1334 = vmul.f32 %v1235, %v629
    %v1335 = vmul.f32 %v1235, %v632
    %v1336 = vmul.f32 %v1250, %v635
    %v1337 = vmul.f32 %v1250, %v638
    %v1338 = vmul.f32 %v1265, %v641
    %v1339 = vmul.f32 %v1265, %v644
    %v1340 = vmul.f32 %v1280, %v647
    %v1341 = vmul.f32 %v1280, %v650
    %v1342 = vmul.f32 %v1295, %v653
    %v1343 = vmul.f32 %v1295, %v656
    %v1344 = vadd.f32 %v1328, %v1330
    %v1345 = vadd.f32 %v1344, %v1332
    %v1346 = vadd.f32 %v1345, %v1334
    %v1347 = vadd.f32 %v1346, %v1336
    %v1348 = vadd.f32 %v1347, %v1338
    %v1349 = vadd.f32 %v1348, %v1340
    %v1350 = vadd.f32 %v1349, %v1342
    %v1351 = vadd.f32 %v1329, %v1331
    %v1352 = vadd.f32 %v1351, %v1333
    %v1353 = vadd.f32 %v1352, %v1335
    %v1354 = vadd.f32 %v1353, %v1337
    %v1355 = vadd.f32 %v1354, %v1339
    %v1356 = vadd.f32 %v1355, %v1341
    %v1357 = vadd.f32 %v1356, %v1343
    %v1358 = vsub.f32 %v62, %v102
    %v1359 = vsub.f32 %v63, %v103
    %v1360 = vsub.f32 %v64, %v104
    %v1361 = vsub.f32 %v65, %v105
    %v1362 = vsub.f32 %v66, %v102
    %v1363 = vsub.f32 %v67, %v103
    %v1364 = vsub.f32 %v68, %v104
    %v1365 = vsub.f32 %v69, %v105
    %v1366 = vsub.f32 %v70, %v102
    %v1367 = vsub.f32 %v71, %v103
    %v1368 = vsub.f32 %v72, %v104
    %v1369 = vsub.f32 %v73, %v105
    %v1370 = vsub.f32 %v74, %v102
    %v1371 = vsub.f32 %v75, %v103
    %v1372 = vsub.f32 %v76, %v104
    %v1373 = vsub.f32 %v77, %v105
    %v1374 = vsub.f32 %v78, %v102
    %v1375 = vsub.f32 %v79, %v103
    %v1376 = vsub.f32 %v80, %v104
    %v1377 = vsub.f32 %v81, %v105
    %v1378 = vsub.f32 %v82, %v102
    %v1379 = vsub.f32 %v83, %v103
    %v1380 = vsub.f32 %v84, %v104
    %v1381 = vsub.f32 %v85, %v105
    %v1382 = vsub.f32 %v86, %v102
    %v1383 = vsub.f32 %v87, %v103
    %v1384 = vsub.f32 %v88, %v104
    %v1385 = vsub.f32 %v89, %v105
    %v1386 = vsub.f32 %v90, %v102
    %v1387 = vsub.f32 %v91, %v103
    %v1388 = vsub.f32 %v92, %v104
    %v1389 = vsub.f32 %v93, %v105
    %v1390 = vand.u32 2147483647, %v1358
    %v1391 = vand.u32 2147483647, %v1359
    %v1392 = vand.u32 2147483647, %v1360
    %v1393 = vand.u32 2147483647, %v1361
    %v1394 = vand.u32 2147483647, %v1362
    %v1395 = vand.u32 2147483647, %v1363
    %v1396 = vand.u32 2147483647, %v1364
    %v1397 = vand.u32 2147483647, %v1365
    %v1398 = vand.u32 2147483647, %v1366
    %v1399 = vand.u32 2147483647, %v1367
    %v1400 = vand.u32 2147483647, %v1368
    %v1401 = vand.u32 2147483647, %v1369
    %v1402 = vand.u32 2147483647, %v1370
    %v1403 = vand.u32 2147483647, %v1371
    %v1404 = vand.u32 2147483647, %v1372
    %v1405 = vand.u32 2147483647, %v1373
    %v1406 = vand.u32 2147483647, %v1374
    %v1407 = vand.u32 2147483647, %v1375
    %v1408 = vand.u32 2147483647, %v1376
    %v1409 = vand.u32 2147483647, %v1377
    %v1410 = vand.u32 2147483647, %v1378
    %v1411 = vand.u32 2147483647, %v1379
    %v1412 = vand.u32 2147483647, %v1380
    %v1413 = vand.u32 2147483647, %v1381
    %v1414 = vand.u32 2147483647, %v1382
    %v1415 = vand.u32 2147483647, %v1383
    %v1416 = vand.u32 2147483647, %v1384
    %v1417 = vand.u32 2147483647, %v1385
    %v1418 = vand.u32 2147483647, %v1386
    %v1419 = vand.u32 2147483647, %v1387
    %v1420 = vand.u32 2147483647, %v1388
    %v1421 = vand.u32 2147483647, %v1389
    %v1422 = vadd.f32 %v1390, %v1391
    %v1423 = vadd.f32 %v1422, %v1392
    %v1424 = vadd.f32 %v1423, %v1393
    %v1425 = vrot.slane %v1424, 4
    %v1426 = vadd.f32 %v1424, %v1425
    %v1427 = vrot.slane %v1426, 2
    %v1428 = vadd.f32 %v1426, %v1427
    %v1429 = vrot.slane %v1428, 1
    %v1430 = vadd.f32 %v1428, %v1429
    %v1431 = vadd.f32 %v1394, %v1395
    %v1432 = vadd.f32 %v1431, %v1396
    %v1433 = vadd.f32 %v1432, %v1397
    %v1434 = vrot.slane %v1433, 4
    %v1435 = vadd.f32 %v1433, %v1434
    %v1436 = vrot.slane %v1435, 2
    %v1437 = vadd.f32 %v1435, %v1436
    %v1438 = vrot.slane %v1437, 1
    %v1439 = vadd.f32 %v1437, %v1438
    %v1440 = vadd.f32 %v1398, %v1399
    %v1441 = vadd.f32 %v1440, %v1400
    %v1442 = vadd.f32 %v1441, %v1401
    %v1443 = vrot.slane %v1442, 4
    %v1444 = vadd.f32 %v1442, %v1443
    %v1445 = vrot.slane %v1444, 2
    %v1446 = vadd.f32 %v1444, %v1445
    %v1447 = vrot.slane %v1446, 1
    %v1448 = vadd.f32 %v1446, %v1447
    %v1449 = vadd.f32 %v1402, %v1403
    %v1450 = vadd.f32 %v1449, %v1404
    %v1451 = vadd.f32 %v1450, %v1405
    %v1452 = vrot.slane %v1451, 4
    %v1453 = vadd.f32 %v1451, %v1452
    %v1454 = vrot.slane %v1453, 2
    %v1455 = vadd.f32 %v1453, %v1454
    %v1456 = vrot.slane %v1455, 1
    %v1457 = vadd.f32 %v1455, %v1456
    %v1458 = vadd.f32 %v1406, %v1407
    %v1459 = vadd.f32 %v1458, %v1408
    %v1460 = vadd.f32 %v1459, %v1409
    %v1461 = vrot.slane %v1460, 4
    %v1462 = vadd.f32 %v1460, %v1461
    %v1463 = vrot.slane %v1462, 2
    %v1464 = vadd.f32 %v1462, %v1463
    %v1465 = vrot.slane %v1464, 1
    %v1466 = vadd.f32 %v1464, %v1465
    %v1467 = vadd.f32 %v1410, %v1411
    %v1468 = vadd.f32 %v1467, %v1412
    %v1469 = vadd.f32 %v1468, %v1413
    %v1470 = vrot.slane %v1469, 4
    %v1471 = vadd.f32 %v1469, %v1470
    %v1472 = vrot.slane %v1471, 2
    %v1473 = vadd.f32 %v1471, %v1472
    %v1474 = vrot.slane %v1473, 1
    %v1475 = vadd.f32 %v1473, %v1474
    %v1476 = vadd.f32 %v1414, %v1415
    %v1477 = vadd.f32 %v1476, %v1416
    %v1478 = vadd.f32 %v1477, %v1417
    %v1479 = vrot.slane %v1478, 4
    %v1480 = vadd.f32 %v1478, %v1479
    %v1481 = vrot.slane %v1480, 2
    %v1482 = vadd.f32 %v1480, %v1481
    %v1483 = vrot.slane %v1482, 1
    %v1484 = vadd.f32 %v1482, %v1483
    %v1485 = vadd.f32 %v1418, %v1419
    %v1486 = vadd.f32 %v1485, %v1420
    %v1487 = vadd.f32 %v1486, %v1421
    %v1488 = vrot.slane %v1487, 4
    %v1489 = vadd.f32 %v1487, %v1488
    %v1490 = vrot.slane %v1489, 2
    %v1491 = vadd.f32 %v1489, %v1490
    %v1492 = vrot.slane %v1491, 1
    %v1493 = vadd.f32 %v1491, %v1492
    %v1494 = vadd.f32 %v1430, 1.0
    %v1495 = vadd.f32 %v1439, 1.0
    %v1496 = vadd.f32 %v1448, 1.0
    %v1497 = vadd.f32 %v1457, 1.0
    %v1498 = vadd.f32 %v1466, 1.0
    %v1499 = vadd.f32 %v1475, 1.0
    %v1500 = vadd.f32 %v1484, 1.0
    %v1501 = vadd.f32 %v1493, 1.0
    %v1502 = vrcp.pop %v1494
    %v1503 = vmul.f32 %v1494, %v1502
    %v1504 = vsub.f32 1.0, %v1503
    %v1505 = vmul.f32 %v1502, %v1504
    %v1506 = vadd.f32 %v1502, %v1505
    %vm1507 = vweird.f32 %v1494
    %vm1508 = vweird.f32 %v1502
    %vm1509 = vmor %vm1507, %vm1508
    %v1510 = vsel %vm1509, %v1502, %v1506
    %v1511 = vand.u32 2147483647, %v1494
    %vm1512 = vcmp.eq.f32.partialorder %v1511, 8.507059e+37
    %v1513 = vand.u32 %v1494, 2147483648
    %v1514 = vor.u32 1.1754944e-38, %v1513
    %v1515 = vsel %vm1512, %v1514, %v1510
    %v1516 = vmul.f32 1.0, %v1515
    %v1517 = vrcp.pop %v1495
    %v1518 = vmul.f32 %v1495, %v1517
    %v1519 = vsub.f32 1.0, %v1518
    %v1520 = vmul.f32 %v1517, %v1519
    %v1521 = vadd.f32 %v1517, %v1520
    %vm1522 = vweird.f32 %v1495
    %vm1523 = vweird.f32 %v1517
    %vm1524 = vmor %vm1522, %vm1523
    %v1525 = vsel %vm1524, %v1517, %v1521
    %v1526 = vand.u32 2147483647, %v1495
    %vm1527 = vcmp.eq.f32.partialorder %v1526, 8.507059e+37
    %v1528 = vand.u32 %v1495, 2147483648
    %v1529 = vor.u32 1.1754944e-38, %v1528
    %v1530 = vsel %vm1527, %v1529, %v1525
    %v1531 = vmul.f32 1.0, %v1530
    %v1532 = vrcp.pop %v1496
    %v1533 = vmul.f32 %v1496, %v1532
    %v1534 = vsub.f32 1.0, %v1533
    %v1535 = vmul.f32 %v1532, %v1534
    %v1536 = vadd.f32 %v1532, %v1535
    %vm1537 = vweird.f32 %v1496
    %vm1538 = vweird.f32 %v1532
    %vm1539 = vmor %vm1537, %vm1538
    %v1540 = vsel %vm1539, %v1532, %v1536
    %v1541 = vand.u32 2147483647, %v1496
    %vm1542 = vcmp.eq.f32.partialorder %v1541, 8.507059e+37
    %v1543 = vand.u32 %v1496, 2147483648
    %v1544 = vor.u32 1.1754944e-38, %v1543
    %v1545 = vsel %vm1542, %v1544, %v1540
    %v1546 = vmul.f32 1.0, %v1545
    %v1547 = vrcp.pop %v1497
    %v1548 = vmul.f32 %v1497, %v1547
    %v1549 = vsub.f32 1.0, %v1548
    %v1550 = vmul.f32 %v1547, %v1549
    %v1551 = vadd.f32 %v1547, %v1550
    %vm1552 = vweird.f32 %v1497
    %vm1553 = vweird.f32 %v1547
    %vm1554 = vmor %vm1552, %vm1553
    %v1555 = vsel %vm1554, %v1547, %v1551
    %v1556 = vand.u32 2147483647, %v1497
    %vm1557 = vcmp.eq.f32.partialorder %v1556, 8.507059e+37
    %v1558 = vand.u32 %v1497, 2147483648
    %v1559 = vor.u32 1.1754944e-38, %v1558
    %v1560 = vsel %vm1557, %v1559, %v1555
    %v1561 = vmul.f32 1.0, %v1560
    %v1562 = vrcp.pop %v1498
    %v1563 = vmul.f32 %v1498, %v1562
    %v1564 = vsub.f32 1.0, %v1563
    %v1565 = vmul.f32 %v1562, %v1564
    %v1566 = vadd.f32 %v1562, %v1565
    %vm1567 = vweird.f32 %v1498
    %vm1568 = vweird.f32 %v1562
    %vm1569 = vmor %vm1567, %vm1568
    %v1570 = vsel %vm1569, %v1562, %v1566
    %v1571 = vand.u32 2147483647, %v1498
    %vm1572 = vcmp.eq.f32.partialorder %v1571, 8.507059e+37
    %v1573 = vand.u32 %v1498, 2147483648
    %v1574 = vor.u32 1.1754944e-38, %v1573
    %v1575 = vsel %vm1572, %v1574, %v1570
    %v1576 = vmul.f32 1.0, %v1575
    %v1577 = vrcp.pop %v1499
    %v1578 = vmul.f32 %v1499, %v1577
    %v1579 = vsub.f32 1.0, %v1578
    %v1580 = vmul.f32 %v1577, %v1579
    %v1581 = vadd.f32 %v1577, %v1580
    %vm1582 = vweird.f32 %v1499
    %vm1583 = vweird.f32 %v1577
    %vm1584 = vmor %vm1582, %vm1583
    %v1585 = vsel %vm1584, %v1577, %v1581
    %v1586 = vand.u32 2147483647, %v1499
    %vm1587 = vcmp.eq.f32.partialorder %v1586, 8.507059e+37
    %v1588 = vand.u32 %v1499, 2147483648
    %v1589 = vor.u32 1.1754944e-38, %v1588
    %v1590 = vsel %vm1587, %v1589, %v1585
    %v1591 = vmul.f32 1.0, %v1590
    %v1592 = vrcp.pop %v1500
    %v1593 = vmul.f32 %v1500, %v1592
    %v1594 = vsub.f32 1.0, %v1593
    %v1595 = vmul.f32 %v1592, %v1594
    %v1596 = vadd.f32 %v1592, %v1595
    %vm1597 = vweird.f32 %v1500
    %vm1598 = vweird.f32 %v1592
    %vm1599 = vmor %vm1597, %vm1598
    %v1600 = vsel %vm1599, %v1592, %v1596
    %v1601 = vand.u32 2147483647, %v1500
    %vm1602 = vcmp.eq.f32.partialorder %v1601, 8.507059e+37
    %v1603 = vand.u32 %v1500, 2147483648
    %v1604 = vor.u32 1.1754944e-38, %v1603
    %v1605 = vsel %vm1602, %v1604, %v1600
    %v1606 = vmul.f32 1.0, %v1605
    %v1607 = vrcp.pop %v1501
    %v1608 = vmul.f32 %v1501, %v1607
    %v1609 = vsub.f32 1.0, %v1608
    %v1610 = vmul.f32 %v1607, %v1609
    %v1611 = vadd.f32 %v1607, %v1610
    %vm1612 = vweird.f32 %v1501
    %vm1613 = vweird.f32 %v1607
    %vm1614 = vmor %vm1612, %vm1613
    %v1615 = vsel %vm1614, %v1607, %v1611
    %v1616 = vand.u32 2147483647, %v1501
    %vm1617 = vcmp.eq.f32.partialorder %v1616, 8.507059e+37
    %v1618 = vand.u32 %v1501, 2147483648
    %v1619 = vor.u32 1.1754944e-38, %v1618
    %v1620 = vsel %vm1617, %v1619, %v1615
    %v1621 = vmul.f32 1.0, %v1620
    %v1622 = vmul.f32 %v1516, %v671
    %v1623 = vmul.f32 %v1516, %v674
    %v1624 = vmul.f32 %v1531, %v671
    %v1625 = vmul.f32 %v1531, %v674
    %v1626 = vmul.f32 %v1546, %v671
    %v1627 = vmul.f32 %v1546, %v674
    %v1628 = vmul.f32 %v1561, %v671
    %v1629 = vmul.f32 %v1561, %v674
    %v1630 = vmul.f32 %v1576, %v671
    %v1631 = vmul.f32 %v1576, %v674
    %v1632 = vmul.f32 %v1591, %v671
    %v1633 = vmul.f32 %v1591, %v674
    %v1634 = vmul.f32 %v1606, %v671
    %v1635 = vmul.f32 %v1606, %v674
    %v1636 = vmul.f32 %v1621, %v671
    %v1637 = vmul.f32 %v1621, %v674
    %v1638 = vadd.f32 %v1312, %v1622
    %v1639 = vadd.f32 %v1313, %v1623
    %v1640 = vadd.f32 %v1314, %v1624
    %v1641 = vadd.f32 %v1315, %v1625
    %v1642 = vadd.f32 %v1316, %v1626
    %v1643 = vadd.f32 %v1317, %v1627
    %v1644 = vadd.f32 %v1318, %v1628
    %v1645 = vadd.f32 %v1319, %v1629
    %v1646 = vadd.f32 %v1320, %v1630
    %v1647 = vadd.f32 %v1321, %v1631
    %v1648 = vadd.f32 %v1322, %v1632
    %v1649 = vadd.f32 %v1323, %v1633
    %v1650 = vadd.f32 %v1324, %v1634
    %v1651 = vadd.f32 %v1325, %v1635
    %v1652 = vadd.f32 %v1326, %v1636
    %v1653 = vadd.f32 %v1327, %v1637
    %v1654 = vmul.f32 %v1516, %v611
    %v1655 = vmul.f32 %v1516, %v614
    %v1656 = vmul.f32 %v1531, %v617
    %v1657 = vmul.f32 %v1531, %v620
    %v1658 = vmul.f32 %v1546, %v623
    %v1659 = vmul.f32 %v1546, %v626
    %v1660 = vmul.f32 %v1561, %v629
    %v1661 = vmul.f32 %v1561, %v632
    %v1662 = vmul.f32 %v1576, %v635
    %v1663 = vmul.f32 %v1576, %v638
    %v1664 = vmul.f32 %v1591, %v641
    %v1665 = vmul.f32 %v1591, %v644
    %v1666 = vmul.f32 %v1606, %v647
    %v1667 = vmul.f32 %v1606, %v650
    %v1668 = vmul.f32 %v1621, %v653
    %v1669 = vmul.f32 %v1621, %v656
    %v1670 = vadd.f32 %v1654, %v1656
    %v1671 = vadd.f32 %v1670, %v1658
    %v1672 = vadd.f32 %v1671, %v1660
    %v1673 = vadd.f32 %v1672, %v1662
    %v1674 = vadd.f32 %v1673, %v1664
    %v1675 = vadd.f32 %v1674, %v1666
    %v1676 = vadd.f32 %v1675, %v1668
    %v1677 = vadd.f32 %v1655, %v1657
    %v1678 = vadd.f32 %v1677, %v1659
    %v1679 = vadd.f32 %v1678, %v1661
    %v1680 = vadd.f32 %v1679, %v1663
    %v1681 = vadd.f32 %v1680, %v1665
    %v1682 = vadd.f32 %v1681, %v1667
    %v1683 = vadd.f32 %v1682, %v1669
    %v1684 = vsub.f32 %v62, %v106
    %v1685 = vsub.f32 %v63, %v107
    %v1686 = vsub.f32 %v64, %v108
    %v1687 = vsub.f32 %v65, %v109
    %v1688 = vsub.f32 %v66, %v106
    %v1689 = vsub.f32 %v67, %v107
    %v1690 = vsub.f32 %v68, %v108
    %v1691 = vsub.f32 %v69, %v109
    %v1692 = vsub.f32 %v70, %v106
    %v1693 = vsub.f32 %v71, %v107
    %v1694 = vsub.f32 %v72, %v108
    %v1695 = vsub.f32 %v73, %v109
    %v1696 = vsub.f32 %v74, %v106
    %v1697 = vsub.f32 %v75, %v107
    %v1698 = vsub.f32 %v76, %v108
    %v1699 = vsub.f32 %v77, %v109
    %v1700 = vsub.f32 %v78, %v106
    %v1701 = vsub.f32 %v79, %v107
    %v1702 = vsub.f32 %v80, %v108
    %v1703 = vsub.f32 %v81, %v109
    %v1704 = vsub.f32 %v82, %v106
    %v1705 = vsub.f32 %v83, %v107
    %v1706 = vsub.f32 %v84, %v108
    %v1707 = vsub.f32 %v85, %v109
    %v1708 = vsub.f32 %v86, %v106
    %v1709 = vsub.f32 %v87, %v107
    %v1710 = vsub.f32 %v88, %v108
    %v1711 = vsub.f32 %v89, %v109
    %v1712 = vsub.f32 %v90, %v106
    %v1713 = vsub.f32 %v91, %v107
    %v1714 = vsub.f32 %v92, %v108
    %v1715 = vsub.f32 %v93, %v109
    %v1716 = vand.u32 2147483647, %v1684
    %v1717 = vand.u32 2147483647, %v1685
    %v1718 = vand.u32 2147483647, %v1686
    %v1719 = vand.u32 2147483647, %v1687
    %v1720 = vand.u32 2147483647, %v1688
    %v1721 = vand.u32 2147483647, %v1689
    %v1722 = vand.u32 2147483647, %v1690
    %v1723 = vand.u32 2147483647, %v1691
    %v1724 = vand.u32 2147483647, %v1692
    %v1725 = vand.u32 2147483647, %v1693
    %v1726 = vand.u32 2147483647, %v1694
    %v1727 = vand.u32 2147483647, %v1695
    %v1728 = vand.u32 2147483647, %v1696
    %v1729 = vand.u32 2147483647, %v1697
    %v1730 = vand.u32 2147483647, %v1698
    %v1731 = vand.u32 2147483647, %v1699
    %v1732 = vand.u32 2147483647, %v1700
    %v1733 = vand.u32 2147483647, %v1701
    %v1734 = vand.u32 2147483647, %v1702
    %v1735 = vand.u32 2147483647, %v1703
    %v1736 = vand.u32 2147483647, %v1704
    %v1737 = vand.u32 2147483647, %v1705
    %v1738 = vand.u32 2147483647, %v1706
    %v1739 = vand.u32 2147483647, %v1707
    %v1740 = vand.u32 2147483647, %v1708
    %v1741 = vand.u32 2147483647, %v1709
    %v1742 = vand.u32 2147483647, %v1710
    %v1743 = vand.u32 2147483647, %v1711
    %v1744 = vand.u32 2147483647, %v1712
    %v1745 = vand.u32 2147483647, %v1713
    %v1746 = vand.u32 2147483647, %v1714
    %v1747 = vand.u32 2147483647, %v1715
    %v1748 = vadd.f32 %v1716, %v1717
    %v1749 = vadd.f32 %v1748, %v1718
    %v1750 = vadd.f32 %v1749, %v1719
    %v1751 = vrot.slane %v1750, 4
    %v1752 = vadd.f32 %v1750, %v1751
    %v1753 = vrot.slane %v1752, 2
    %v1754 = vadd.f32 %v1752, %v1753
    %v1755 = vrot.slane %v1754, 1
    %v1756 = vadd.f32 %v1754, %v1755
    %v1757 = vadd.f32 %v1720, %v1721
    %v1758 = vadd.f32 %v1757, %v1722
    %v1759 = vadd.f32 %v1758, %v1723
    %v1760 = vrot.slane %v1759, 4
    %v1761 = vadd.f32 %v1759, %v1760
    %v1762 = vrot.slane %v1761, 2
    %v1763 = vadd.f32 %v1761, %v1762
    %v1764 = vrot.slane %v1763, 1
    %v1765 = vadd.f32 %v1763, %v1764
    %v1766 = vadd.f32 %v1724, %v1725
    %v1767 = vadd.f32 %v1766, %v1726
    %v1768 = vadd.f32 %v1767, %v1727
    %v1769 = vrot.slane %v1768, 4
    %v1770 = vadd.f32 %v1768, %v1769
    %v1771 = vrot.slane %v1770, 2
    %v1772 = vadd.f32 %v1770, %v1771
    %v1773 = vrot.slane %v1772, 1
    %v1774 = vadd.f32 %v1772, %v1773
    %v1775 = vadd.f32 %v1728, %v1729
    %v1776 = vadd.f32 %v1775, %v1730
    %v1777 = vadd.f32 %v1776, %v1731
    %v1778 = vrot.slane %v1777, 4
    %v1779 = vadd.f32 %v1777, %v1778
    %v1780 = vrot.slane %v1779, 2
    %v1781 = vadd.f32 %v1779, %v1780
    %v1782 = vrot.slane %v1781, 1
    %v1783 = vadd.f32 %v1781, %v1782
    %v1784 = vadd.f32 %v1732, %v1733
    %v1785 = vadd.f32 %v1784, %v1734
    %v1786 = vadd.f32 %v1785, %v1735
    %v1787 = vrot.slane %v1786, 4
    %v1788 = vadd.f32 %v1786, %v1787
    %v1789 = vrot.slane %v1788, 2
    %v1790 = vadd.f32 %v1788, %v1789
    %v1791 = vrot.slane %v1790, 1
    %v1792 = vadd.f32 %v1790, %v1791
    %v1793 = vadd.f32 %v1736, %v1737
    %v1794 = vadd.f32 %v1793, %v1738
    %v1795 = vadd.f32 %v1794, %v1739
    %v1796 = vrot.slane %v1795, 4
    %v1797 = vadd.f32 %v1795, %v1796
    %v1798 = vrot.slane %v1797, 2
    %v1799 = vadd.f32 %v1797, %v1798
    %v1800 = vrot.slane %v1799, 1
    %v1801 = vadd.f32 %v1799, %v1800
    %v1802 = vadd.f32 %v1740, %v1741
    %v1803 = vadd.f32 %v1802, %v1742
    %v1804 = vadd.f32 %v1803, %v1743
    %v1805 = vrot.slane %v1804, 4
    %v1806 = vadd.f32 %v1804, %v1805
    %v1807 = vrot.slane %v1806, 2
    %v1808 = vadd.f32 %v1806, %v1807
    %v1809 = vrot.slane %v1808, 1
    %v1810 = vadd.f32 %v1808, %v1809
    %v1811 = vadd.f32 %v1744, %v1745
    %v1812 = vadd.f32 %v1811, %v1746
    %v1813 = vadd.f32 %v1812, %v1747
    %v1814 = vrot.slane %v1813, 4
    %v1815 = vadd.f32 %v1813, %v1814
    %v1816 = vrot.slane %v1815, 2
    %v1817 = vadd.f32 %v1815, %v1816
    %v1818 = vrot.slane %v1817, 1
    %v1819 = vadd.f32 %v1817, %v1818
    %v1820 = vadd.f32 %v1756, 1.0
    %v1821 = vadd.f32 %v1765, 1.0
    %v1822 = vadd.f32 %v1774, 1.0
    %v1823 = vadd.f32 %v1783, 1.0
    %v1824 = vadd.f32 %v1792, 1.0
    %v1825 = vadd.f32 %v1801, 1.0
    %v1826 = vadd.f32 %v1810, 1.0
    %v1827 = vadd.f32 %v1819, 1.0
    %v1828 = vrcp.pop %v1820
    %v1829 = vmul.f32 %v1820, %v1828
    %v1830 = vsub.f32 1.0, %v1829
    %v1831 = vmul.f32 %v1828, %v1830
    %v1832 = vadd.f32 %v1828, %v1831
    %vm1833 = vweird.f32 %v1820
    %vm1834 = vweird.f32 %v1828
    %vm1835 = vmor %vm1833, %vm1834
    %v1836 = vsel %vm1835, %v1828, %v1832
    %v1837 = vand.u32 2147483647, %v1820
    %vm1838 = vcmp.eq.f32.partialorder %v1837, 8.507059e+37
    %v1839 = vand.u32 %v1820, 2147483648
    %v1840 = vor.u32 1.1754944e-38, %v1839
    %v1841 = vsel %vm1838, %v1840, %v1836
    %v1842 = vmul.f32 1.0, %v1841
    %v1843 = vrcp.pop %v1821
    %v1844 = vmul.f32 %v1821, %v1843
    %v1845 = vsub.f32 1.0, %v1844
    %v1846 = vmul.f32 %v1843, %v1845
    %v1847 = vadd.f32 %v1843, %v1846
    %vm1848 = vweird.f32 %v1821
    %vm1849 = vweird.f32 %v1843
    %vm1850 = vmor %vm1848, %vm1849
    %v1851 = vsel %vm1850, %v1843, %v1847
    %v1852 = vand.u32 2147483647, %v1821
    %vm1853 = vcmp.eq.f32.partialorder %v1852, 8.507059e+37
    %v1854 = vand.u32 %v1821, 2147483648
    %v1855 = vor.u32 1.1754944e-38, %v1854
    %v1856 = vsel %vm1853, %v1855, %v1851
    %v1857 = vmul.f32 1.0, %v1856
    %v1858 = vrcp.pop %v1822
    %v1859 = vmul.f32 %v1822, %v1858
    %v1860 = vsub.f32 1.0, %v1859
    %v1861 = vmul.f32 %v1858, %v1860
    %v1862 = vadd.f32 %v1858, %v1861
    %vm1863 = vweird.f32 %v1822
    %vm1864 = vweird.f32 %v1858
    %vm1865 = vmor %vm1863, %vm1864
    %v1866 = vsel %vm1865, %v1858, %v1862
    %v1867 = vand.u32 2147483647, %v1822
    %vm1868 = vcmp.eq.f32.partialorder %v1867, 8.507059e+37
    %v1869 = vand.u32 %v1822, 2147483648
    %v1870 = vor.u32 1.1754944e-38, %v1869
    %v1871 = vsel %vm1868, %v1870, %v1866
    %v1872 = vmul.f32 1.0, %v1871
    %v1873 = vrcp.pop %v1823
    %v1874 = vmul.f32 %v1823, %v1873
    %v1875 = vsub.f32 1.0, %v1874
    %v1876 = vmul.f32 %v1873, %v1875
    %v1877 = vadd.f32 %v1873, %v1876
    %vm1878 = vweird.f32 %v1823
    %vm1879 = vweird.f32 %v1873
    %vm1880 = vmor %vm1878, %vm1879
    %v1881 = vsel %vm1880, %v1873, %v1877
    %v1882 = vand.u32 2147483647, %v1823
    %vm1883 = vcmp.eq.f32.partialorder %v1882, 8.507059e+37
    %v1884 = vand.u32 %v1823, 2147483648
    %v1885 = vor.u32 1.1754944e-38, %v1884
    %v1886 = vsel %vm1883, %v1885, %v1881
    %v1887 = vmul.f32 1.0, %v1886
    %v1888 = vrcp.pop %v1824
    %v1889 = vmul.f32 %v1824, %v1888
    %v1890 = vsub.f32 1.0, %v1889
    %v1891 = vmul.f32 %v1888, %v1890
    %v1892 = vadd.f32 %v1888, %v1891
    %vm1893 = vweird.f32 %v1824
    %vm1894 = vweird.f32 %v1888
    %vm1895 = vmor %vm1893, %vm1894
    %v1896 = vsel %vm1895, %v1888, %v1892
    %v1897 = vand.u32 2147483647, %v1824
    %vm1898 = vcmp.eq.f32.partialorder %v1897, 8.507059e+37
    %v1899 = vand.u32 %v1824, 2147483648
    %v1900 = vor.u32 1.1754944e-38, %v1899
    %v1901 = vsel %vm1898, %v1900, %v1896
    %v1902 = vmul.f32 1.0, %v1901
    %v1903 = vrcp.pop %v1825
    %v1904 = vmul.f32 %v1825, %v1903
    %v1905 = vsub.f32 1.0, %v1904
    %v1906 = vmul.f32 %v1903, %v1905
    %v1907 = vadd.f32 %v1903, %v1906
    %vm1908 = vweird.f32 %v1825
    %vm1909 = vweird.f32 %v1903
    %vm1910 = vmor %vm1908, %vm1909
    %v1911 = vsel %vm1910, %v1903, %v1907
    %v1912 = vand.u32 2147483647, %v1825
    %vm1913 = vcmp.eq.f32.partialorder %v1912, 8.507059e+37
    %v1914 = vand.u32 %v1825, 2147483648
    %v1915 = vor.u32 1.1754944e-38, %v1914
    %v1916 = vsel %vm1913, %v1915, %v1911
    %v1917 = vmul.f32 1.0, %v1916
    %v1918 = vrcp.pop %v1826
    %v1919 = vmul.f32 %v1826, %v1918
    %v1920 = vsub.f32 1.0, %v1919
    %v1921 = vmul.f32 %v1918, %v1920
    %v1922 = vadd.f32 %v1918, %v1921
    %vm1923 = vweird.f32 %v1826
    %vm1924 = vweird.f32 %v1918
    %vm1925 = vmor %vm1923, %vm1924
    %v1926 = vsel %vm1925, %v1918, %v1922
    %v1927 = vand.u32 2147483647, %v1826
    %vm1928 = vcmp.eq.f32.partialorder %v1927, 8.507059e+37
    %v1929 = vand.u32 %v1826, 2147483648
    %v1930 = vor.u32 1.1754944e-38, %v1929
    %v1931 = vsel %vm1928, %v1930, %v1926
    %v1932 = vmul.f32 1.0, %v1931
    %v1933 = vrcp.pop %v1827
    %v1934 = vmul.f32 %v1827, %v1933
    %v1935 = vsub.f32 1.0, %v1934
    %v1936 = vmul.f32 %v1933, %v1935
    %v1937 = vadd.f32 %v1933, %v1936
    %vm1938 = vweird.f32 %v1827
    %vm1939 = vweird.f32 %v1933
    %vm1940 = vmor %vm1938, %vm1939
    %v1941 = vsel %vm1940, %v1933, %v1937
    %v1942 = vand.u32 2147483647, %v1827
    %vm1943 = vcmp.eq.f32.partialorder %v1942, 8.507059e+37
    %v1944 = vand.u32 %v1827, 2147483648
    %v1945 = vor.u32 1.1754944e-38, %v1944
    %v1946 = vsel %vm1943, %v1945, %v1941
    %v1947 = vmul.f32 1.0, %v1946
    %v1948 = vmul.f32 %v1842, %v677
    %v1949 = vmul.f32 %v1842, %v680
    %v1950 = vmul.f32 %v1857, %v677
    %v1951 = vmul.f32 %v1857, %v680
    %v1952 = vmul.f32 %v1872, %v677
    %v1953 = vmul.f32 %v1872, %v680
    %v1954 = vmul.f32 %v1887, %v677
    %v1955 = vmul.f32 %v1887, %v680
    %v1956 = vmul.f32 %v1902, %v677
    %v1957 = vmul.f32 %v1902, %v680
    %v1958 = vmul.f32 %v1917, %v677
    %v1959 = vmul.f32 %v1917, %v680
    %v1960 = vmul.f32 %v1932, %v677
    %v1961 = vmul.f32 %v1932, %v680
    %v1962 = vmul.f32 %v1947, %v677
    %v1963 = vmul.f32 %v1947, %v680
    %v1964 = vadd.f32 %v1638, %v1948
    %v1965 = vadd.f32 %v1639, %v1949
    %v1966 = vadd.f32 %v1640, %v1950
    %v1967 = vadd.f32 %v1641, %v1951
    %v1968 = vadd.f32 %v1642, %v1952
    %v1969 = vadd.f32 %v1643, %v1953
    %v1970 = vadd.f32 %v1644, %v1954
    %v1971 = vadd.f32 %v1645, %v1955
    %v1972 = vadd.f32 %v1646, %v1956
    %v1973 = vadd.f32 %v1647, %v1957
    %v1974 = vadd.f32 %v1648, %v1958
    %v1975 = vadd.f32 %v1649, %v1959
    %v1976 = vadd.f32 %v1650, %v1960
    %v1977 = vadd.f32 %v1651, %v1961
    %v1978 = vadd.f32 %v1652, %v1962
    %v1979 = vadd.f32 %v1653, %v1963
    %v1980 = vmul.f32 %v1842, %v611
    %v1981 = vmul.f32 %v1842, %v614
    %v1982 = vmul.f32 %v1857, %v617
    %v1983 = vmul.f32 %v1857, %v620
    %v1984 = vmul.f32 %v1872, %v623
    %v1985 = vmul.f32 %v1872, %v626
    %v1986 = vmul.f32 %v1887, %v629
    %v1987 = vmul.f32 %v1887, %v632
    %v1988 = vmul.f32 %v1902, %v635
    %v1989 = vmul.f32 %v1902, %v638
    %v1990 = vmul.f32 %v1917, %v641
    %v1991 = vmul.f32 %v1917, %v644
    %v1992 = vmul.f32 %v1932, %v647
    %v1993 = vmul.f32 %v1932, %v650
    %v1994 = vmul.f32 %v1947, %v653
    %v1995 = vmul.f32 %v1947, %v656
    %v1996 = vadd.f32 %v1980, %v1982
    %v1997 = vadd.f32 %v1996, %v1984
    %v1998 = vadd.f32 %v1997, %v1986
    %v1999 = vadd.f32 %v1998, %v1988
    %v2000 = vadd.f32 %v1999, %v1990
    %v2001 = vadd.f32 %v2000, %v1992
    %v2002 = vadd.f32 %v2001, %v1994
    %v2003 = vadd.f32 %v1981, %v1983
    %v2004 = vadd.f32 %v2003, %v1985
    %v2005 = vadd.f32 %v2004, %v1987
    %v2006 = vadd.f32 %v2005, %v1989
    %v2007 = vadd.f32 %v2006, %v1991
    %v2008 = vadd.f32 %v2007, %v1993
    %v2009 = vadd.f32 %v2008, %v1995
    %v2010 = vsub.f32 %v62, %v110
    %v2011 = vsub.f32 %v63, %v111
    %v2012 = vsub.f32 %v64, %v112
    %v2013 = vsub.f32 %v65, %v113
    %v2014 = vsub.f32 %v66, %v110
    %v2015 = vsub.f32 %v67, %v111
    %v2016 = vsub.f32 %v68, %v112
    %v2017 = vsub.f32 %v69, %v113
    %v2018 = vsub.f32 %v70, %v110
    %v2019 = vsub.f32 %v71, %v111
    %v2020 = vsub.f32 %v72, %v112
    %v2021 = vsub.f32 %v73, %v113
    %v2022 = vsub.f32 %v74, %v110
    %v2023 = vsub.f32 %v75, %v111
    %v2024 = vsub.f32 %v76, %v112
    %v2025 = vsub.f32 %v77, %v113
    %v2026 = vsub.f32 %v78, %v110
    %v2027 = vsub.f32 %v79, %v111
    %v2028 = vsub.f32 %v80, %v112
    %v2029 = vsub.f32 %v81, %v113
    %v2030 = vsub.f32 %v82, %v110
    %v2031 = vsub.f32 %v83, %v111
    %v2032 = vsub.f32 %v84, %v112
    %v2033 = vsub.f32 %v85, %v113
    %v2034 = vsub.f32 %v86, %v110
    %v2035 = vsub.f32 %v87, %v111
    %v2036 = vsub.f32 %v88, %v112
    %v2037 = vsub.f32 %v89, %v113
    %v2038 = vsub.f32 %v90, %v110
    %v2039 = vsub.f32 %v91, %v111
    %v2040 = vsub.f32 %v92, %v112
    %v2041 = vsub.f32 %v93, %v113
    %v2042 = vand.u32 2147483647, %v2010
    %v2043 = vand.u32 2147483647, %v2011
    %v2044 = vand.u32 2147483647, %v2012
    %v2045 = vand.u32 2147483647, %v2013
    %v2046 = vand.u32 2147483647, %v2014
    %v2047 = vand.u32 2147483647, %v2015
    %v2048 = vand.u32 2147483647, %v2016
    %v2049 = vand.u32 2147483647, %v2017
    %v2050 = vand.u32 2147483647, %v2018
    %v2051 = vand.u32 2147483647, %v2019
    %v2052 = vand.u32 2147483647, %v2020
    %v2053 = vand.u32 2147483647, %v2021
    %v2054 = vand.u32 2147483647, %v2022
    %v2055 = vand.u32 2147483647, %v2023
    %v2056 = vand.u32 2147483647, %v2024
    %v2057 = vand.u32 2147483647, %v2025
    %v2058 = vand.u32 2147483647, %v2026
    %v2059 = vand.u32 2147483647, %v2027
    %v2060 = vand.u32 2147483647, %v2028
    %v2061 = vand.u32 2147483647, %v2029
    %v2062 = vand.u32 2147483647, %v2030
    %v2063 = vand.u32 2147483647, %v2031
    %v2064 = vand.u32 2147483647, %v2032
    %v2065 = vand.u32 2147483647, %v2033
    %v2066 = vand.u32 2147483647, %v2034
    %v2067 = vand.u32 2147483647, %v2035
    %v2068 = vand.u32 2147483647, %v2036
    %v2069 = vand.u32 2147483647, %v2037
    %v2070 = vand.u32 2147483647, %v2038
    %v2071 = vand.u32 2147483647, %v2039
    %v2072 = vand.u32 2147483647, %v2040
    %v2073 = vand.u32 2147483647, %v2041
    %v2074 = vadd.f32 %v2042, %v2043
    %v2075 = vadd.f32 %v2074, %v2044
    %v2076 = vadd.f32 %v2075, %v2045
    %v2077 = vrot.slane %v2076, 4
    %v2078 = vadd.f32 %v2076, %v2077
    %v2079 = vrot.slane %v2078, 2
    %v2080 = vadd.f32 %v2078, %v2079
    %v2081 = vrot.slane %v2080, 1
    %v2082 = vadd.f32 %v2080, %v2081
    %v2083 = vadd.f32 %v2046, %v2047
    %v2084 = vadd.f32 %v2083, %v2048
    %v2085 = vadd.f32 %v2084, %v2049
    %v2086 = vrot.slane %v2085, 4
    %v2087 = vadd.f32 %v2085, %v2086
    %v2088 = vrot.slane %v2087, 2
    %v2089 = vadd.f32 %v2087, %v2088
    %v2090 = vrot.slane %v2089, 1
    %v2091 = vadd.f32 %v2089, %v2090
    %v2092 = vadd.f32 %v2050, %v2051
    %v2093 = vadd.f32 %v2092, %v2052
    %v2094 = vadd.f32 %v2093, %v2053
    %v2095 = vrot.slane %v2094, 4
    %v2096 = vadd.f32 %v2094, %v2095
    %v2097 = vrot.slane %v2096, 2
    %v2098 = vadd.f32 %v2096, %v2097
    %v2099 = vrot.slane %v2098, 1
    %v2100 = vadd.f32 %v2098, %v2099
    %v2101 = vadd.f32 %v2054, %v2055
    %v2102 = vadd.f32 %v2101, %v2056
    %v2103 = vadd.f32 %v2102, %v2057
    %v2104 = vrot.slane %v2103, 4
    %v2105 = vadd.f32 %v2103, %v2104
    %v2106 = vrot.slane %v2105, 2
    %v2107 = vadd.f32 %v2105, %v2106
    %v2108 = vrot.slane %v2107, 1
    %v2109 = vadd.f32 %v2107, %v2108
    %v2110 = vadd.f32 %v2058, %v2059
    %v2111 = vadd.f32 %v2110, %v2060
    %v2112 = vadd.f32 %v2111, %v2061
    %v2113 = vrot.slane %v2112, 4
    %v2114 = vadd.f32 %v2112, %v2113
    %v2115 = vrot.slane %v2114, 2
    %v2116 = vadd.f32 %v2114, %v2115
    %v2117 = vrot.slane %v2116, 1
    %v2118 = vadd.f32 %v2116, %v2117
    %v2119 = vadd.f32 %v2062, %v2063
    %v2120 = vadd.f32 %v2119, %v2064
    %v2121 = vadd.f32 %v2120, %v2065
    %v2122 = vrot.slane %v2121, 4
    %v2123 = vadd.f32 %v2121, %v2122
    %v2124 = vrot.slane %v2123, 2
    %v2125 = vadd.f32 %v2123, %v2124
    %v2126 = vrot.slane %v2125, 1
    %v2127 = vadd.f32 %v2125, %v2126
    %v2128 = vadd.f32 %v2066, %v2067
    %v2129 = vadd.f32 %v2128, %v2068
    %v2130 = vadd.f32 %v2129, %v2069
    %v2131 = vrot.slane %v2130, 4
    %v2132 = vadd.f32 %v2130, %v2131
    %v2133 = vrot.slane %v2132, 2
    %v2134 = vadd.f32 %v2132, %v2133
    %v2135 = vrot.slane %v2134, 1
    %v2136 = vadd.f32 %v2134, %v2135
    %v2137 = vadd.f32 %v2070, %v2071
    %v2138 = vadd.f32 %v2137, %v2072
    %v2139 = vadd.f32 %v2138, %v2073
    %v2140 = vrot.slane %v2139, 4
    %v2141 = vadd.f32 %v2139, %v2140
    %v2142 = vrot.slane %v2141, 2
    %v2143 = vadd.f32 %v2141, %v2142
    %v2144 = vrot.slane %v2143, 1
    %v2145 = vadd.f32 %v2143, %v2144
    %v2146 = vadd.f32 %v2082, 1.0
    %v2147 = vadd.f32 %v2091, 1.0
    %v2148 = vadd.f32 %v2100, 1.0
    %v2149 = vadd.f32 %v2109, 1.0
    %v2150 = vadd.f32 %v2118, 1.0
    %v2151 = vadd.f32 %v2127, 1.0
    %v2152 = vadd.f32 %v2136, 1.0
    %v2153 = vadd.f32 %v2145, 1.0
    %v2154 = vrcp.pop %v2146
    %v2155 = vmul.f32 %v2146, %v2154
    %v2156 = vsub.f32 1.0, %v2155
    %v2157 = vmul.f32 %v2154, %v2156
    %v2158 = vadd.f32 %v2154, %v2157
    %vm2159 = vweird.f32 %v2146
    %vm2160 = vweird.f32 %v2154
    %vm2161 = vmor %vm2159, %vm2160
    %v2162 = vsel %vm2161, %v2154, %v2158
    %v2163 = vand.u32 2147483647, %v2146
    %vm2164 = vcmp.eq.f32.partialorder %v2163, 8.507059e+37
    %v2165 = vand.u32 %v2146, 2147483648
    %v2166 = vor.u32 1.1754944e-38, %v2165
    %v2167 = vsel %vm2164, %v2166, %v2162
    %v2168 = vmul.f32 1.0, %v2167
    %v2169 = vrcp.pop %v2147
    %v2170 = vmul.f32 %v2147, %v2169
    %v2171 = vsub.f32 1.0, %v2170
    %v2172 = vmul.f32 %v2169, %v2171
    %v2173 = vadd.f32 %v2169, %v2172
    %vm2174 = vweird.f32 %v2147
    %vm2175 = vweird.f32 %v2169
    %vm2176 = vmor %vm2174, %vm2175
    %v2177 = vsel %vm2176, %v2169, %v2173
    %v2178 = vand.u32 2147483647, %v2147
    %vm2179 = vcmp.eq.f32.partialorder %v2178, 8.507059e+37
    %v2180 = vand.u32 %v2147, 2147483648
    %v2181 = vor.u32 1.1754944e-38, %v2180
    %v2182 = vsel %vm2179, %v2181, %v2177
    %v2183 = vmul.f32 1.0, %v2182
    %v2184 = vrcp.pop %v2148
    %v2185 = vmul.f32 %v2148, %v2184
    %v2186 = vsub.f32 1.0, %v2185
    %v2187 = vmul.f32 %v2184, %v2186
    %v2188 = vadd.f32 %v2184, %v2187
    %vm2189 = vweird.f32 %v2148
    %vm2190 = vweird.f32 %v2184
    %vm2191 = vmor %vm2189, %vm2190
    %v2192 = vsel %vm2191, %v2184, %v2188
    %v2193 = vand.u32 2147483647, %v2148
    %vm2194 = vcmp.eq.f32.partialorder %v2193, 8.507059e+37
    %v2195 = vand.u32 %v2148, 2147483648
    %v2196 = vor.u32 1.1754944e-38, %v2195
    %v2197 = vsel %vm2194, %v2196, %v2192
    %v2198 = vmul.f32 1.0, %v2197
    %v2199 = vrcp.pop %v2149
    %v2200 = vmul.f32 %v2149, %v2199
    %v2201 = vsub.f32 1.0, %v2200
    %v2202 = vmul.f32 %v2199, %v2201
    %v2203 = vadd.f32 %v2199, %v2202
    %vm2204 = vweird.f32 %v2149
    %vm2205 = vweird.f32 %v2199
    %vm2206 = vmor %vm2204, %vm2205
    %v2207 = vsel %vm2206, %v2199, %v2203
    %v2208 = vand.u32 2147483647, %v2149
    %vm2209 = vcmp.eq.f32.partialorder %v2208, 8.507059e+37
    %v2210 = vand.u32 %v2149, 2147483648
    %v2211 = vor.u32 1.1754944e-38, %v2210
    %v2212 = vsel %vm2209, %v2211, %v2207
    %v2213 = vmul.f32 1.0, %v2212
    %v2214 = vrcp.pop %v2150
    %v2215 = vmul.f32 %v2150, %v2214
    %v2216 = vsub.f32 1.0, %v2215
    %v2217 = vmul.f32 %v2214, %v2216
    %v2218 = vadd.f32 %v2214, %v2217
    %vm2219 = vweird.f32 %v2150
    %vm2220 = vweird.f32 %v2214
    %vm2221 = vmor %vm2219, %vm2220
    %v2222 = vsel %vm2221, %v2214, %v2218
    %v2223 = vand.u32 2147483647, %v2150
    %vm2224 = vcmp.eq.f32.partialorder %v2223, 8.507059e+37
    %v2225 = vand.u32 %v2150, 2147483648
    %v2226 = vor.u32 1.1754944e-38, %v2225
    %v2227 = vsel %vm2224, %v2226, %v2222
    %v2228 = vmul.f32 1.0, %v2227
    %v2229 = vrcp.pop %v2151
    %v2230 = vmul.f32 %v2151, %v2229
    %v2231 = vsub.f32 1.0, %v2230
    %v2232 = vmul.f32 %v2229, %v2231
    %v2233 = vadd.f32 %v2229, %v2232
    %vm2234 = vweird.f32 %v2151
    %vm2235 = vweird.f32 %v2229
    %vm2236 = vmor %vm2234, %vm2235
    %v2237 = vsel %vm2236, %v2229, %v2233
    %v2238 = vand.u32 2147483647, %v2151
    %vm2239 = vcmp.eq.f32.partialorder %v2238, 8.507059e+37
    %v2240 = vand.u32 %v2151, 2147483648
    %v2241 = vor.u32 1.1754944e-38, %v2240
    %v2242 = vsel %vm2239, %v2241, %v2237
    %v2243 = vmul.f32 1.0, %v2242
    %v2244 = vrcp.pop %v2152
    %v2245 = vmul.f32 %v2152, %v2244
    %v2246 = vsub.f32 1.0, %v2245
    %v2247 = vmul.f32 %v2244, %v2246
    %v2248 = vadd.f32 %v2244, %v2247
    %vm2249 = vweird.f32 %v2152
    %vm2250 = vweird.f32 %v2244
    %vm2251 = vmor %vm2249, %vm2250
    %v2252 = vsel %vm2251, %v2244, %v2248
    %v2253 = vand.u32 2147483647, %v2152
    %vm2254 = vcmp.eq.f32.partialorder %v2253, 8.507059e+37
    %v2255 = vand.u32 %v2152, 2147483648
    %v2256 = vor.u32 1.1754944e-38, %v2255
    %v2257 = vsel %vm2254, %v2256, %v2252
    %v2258 = vmul.f32 1.0, %v2257
    %v2259 = vrcp.pop %v2153
    %v2260 = vmul.f32 %v2153, %v2259
    %v2261 = vsub.f32 1.0, %v2260
    %v2262 = vmul.f32 %v2259, %v2261
    %v2263 = vadd.f32 %v2259, %v2262
    %vm2264 = vweird.f32 %v2153
    %vm2265 = vweird.f32 %v2259
    %vm2266 = vmor %vm2264, %vm2265
    %v2267 = vsel %vm2266, %v2259, %v2263
    %v2268 = vand.u32 2147483647, %v2153
    %vm2269 = vcmp.eq.f32.partialorder %v2268, 8.507059e+37
    %v2270 = vand.u32 %v2153, 2147483648
    %v2271 = vor.u32 1.1754944e-38, %v2270
    %v2272 = vsel %vm2269, %v2271, %v2267
    %v2273 = vmul.f32 1.0, %v2272
    %v2274 = vmul.f32 %v2168, %v683
    %v2275 = vmul.f32 %v2168, %v686
    %v2276 = vmul.f32 %v2183, %v683
    %v2277 = vmul.f32 %v2183, %v686
    %v2278 = vmul.f32 %v2198, %v683
    %v2279 = vmul.f32 %v2198, %v686
    %v2280 = vmul.f32 %v2213, %v683
    %v2281 = vmul.f32 %v2213, %v686
    %v2282 = vmul.f32 %v2228, %v683
    %v2283 = vmul.f32 %v2228, %v686
    %v2284 = vmul.f32 %v2243, %v683
    %v2285 = vmul.f32 %v2243, %v686
    %v2286 = vmul.f32 %v2258, %v683
    %v2287 = vmul.f32 %v2258, %v686
    %v2288 = vmul.f32 %v2273, %v683
    %v2289 = vmul.f32 %v2273, %v686
    %v2290 = vadd.f32 %v1964, %v2274
    %v2291 = vadd.f32 %v1965, %v2275
    %v2292 = vadd.f32 %v1966, %v2276
    %v2293 = vadd.f32 %v1967, %v2277
    %v2294 = vadd.f32 %v1968, %v2278
    %v2295 = vadd.f32 %v1969, %v2279
    %v2296 = vadd.f32 %v1970, %v2280
    %v2297 = vadd.f32 %v1971, %v2281
    %v2298 = vadd.f32 %v1972, %v2282
    %v2299 = vadd.f32 %v1973, %v2283
    %v2300 = vadd.f32 %v1974, %v2284
    %v2301 = vadd.f32 %v1975, %v2285
    %v2302 = vadd.f32 %v1976, %v2286
    %v2303 = vadd.f32 %v1977, %v2287
    %v2304 = vadd.f32 %v1978, %v2288
    %v2305 = vadd.f32 %v1979, %v2289
    %v2306 = vmul.f32 %v2168, %v611
    %v2307 = vmul.f32 %v2168, %v614
    %v2308 = vmul.f32 %v2183, %v617
    %v2309 = vmul.f32 %v2183, %v620
    %v2310 = vmul.f32 %v2198, %v623
    %v2311 = vmul.f32 %v2198, %v626
    %v2312 = vmul.f32 %v2213, %v629
    %v2313 = vmul.f32 %v2213, %v632
    %v2314 = vmul.f32 %v2228, %v635
    %v2315 = vmul.f32 %v2228, %v638
    %v2316 = vmul.f32 %v2243, %v641
    %v2317 = vmul.f32 %v2243, %v644
    %v2318 = vmul.f32 %v2258, %v647
    %v2319 = vmul.f32 %v2258, %v650
    %v2320 = vmul.f32 %v2273, %v653
    %v2321 = vmul.f32 %v2273, %v656
    %v2322 = vadd.f32 %v2306, %v2308
    %v2323 = vadd.f32 %v2322, %v2310
    %v2324 = vadd.f32 %v2323, %v2312
    %v2325 = vadd.f32 %v2324, %v2314
    %v2326 = vadd.f32 %v2325, %v2316
    %v2327 = vadd.f32 %v2326, %v2318
    %v2328 = vadd.f32 %v2327, %v2320
    %v2329 = vadd.f32 %v2307, %v2309
    %v2330 = vadd.f32 %v2329, %v2311
    %v2331 = vadd.f32 %v2330, %v2313
    %v2332 = vadd.f32 %v2331, %v2315
    %v2333 = vadd.f32 %v2332, %v2317
    %v2334 = vadd.f32 %v2333, %v2319
    %v2335 = vadd.f32 %v2334, %v2321
    %v2336 = vsub.f32 %v62, %v114
    %v2337 = vsub.f32 %v63, %v115
    %v2338 = vsub.f32 %v64, %v116
    %v2339 = vsub.f32 %v65, %v117
    %v2340 = vsub.f32 %v66, %v114
    %v2341 = vsub.f32 %v67, %v115
    %v2342 = vsub.f32 %v68, %v116
    %v2343 = vsub.f32 %v69, %v117
    %v2344 = vsub.f32 %v70, %v114
    %v2345 = vsub.f32 %v71, %v115
    %v2346 = vsub.f32 %v72, %v116
    %v2347 = vsub.f32 %v73, %v117
    %v2348 = vsub.f32 %v74, %v114
    %v2349 = vsub.f32 %v75, %v115
    %v2350 = vsub.f32 %v76, %v116
    %v2351 = vsub.f32 %v77, %v117
    %v2352 = vsub.f32 %v78, %v114
    %v2353 = vsub.f32 %v79, %v115
    %v2354 = vsub.f32 %v80, %v116
    %v2355 = vsub.f32 %v81, %v117
    %v2356 = vsub.f32 %v82, %v114
    %v2357 = vsub.f32 %v83, %v115
    %v2358 = vsub.f32 %v84, %v116
    %v2359 = vsub.f32 %v85, %v117
    %v2360 = vsub.f32 %v86, %v114
    %v2361 = vsub.f32 %v87, %v115
    %v2362 = vsub.f32 %v88, %v116
    %v2363 = vsub.f32 %v89, %v117
    %v2364 = vsub.f32 %v90, %v114
    %v2365 = vsub.f32 %v91, %v115
    %v2366 = vsub.f32 %v92, %v116
    %v2367 = vsub.f32 %v93, %v117
    %v2368 = vand.u32 2147483647, %v2336
    %v2369 = vand.u32 2147483647, %v2337
    %v2370 = vand.u32 2147483647, %v2338
    %v2371 = vand.u32 2147483647, %v2339
    %v2372 = vand.u32 2147483647, %v2340
    %v2373 = vand.u32 2147483647, %v2341
    %v2374 = vand.u32 2147483647, %v2342
    %v2375 = vand.u32 2147483647, %v2343
    %v2376 = vand.u32 2147483647, %v2344
    %v2377 = vand.u32 2147483647, %v2345
    %v2378 = vand.u32 2147483647, %v2346
    %v2379 = vand.u32 2147483647, %v2347
    %v2380 = vand.u32 2147483647, %v2348
    %v2381 = vand.u32 2147483647, %v2349
    %v2382 = vand.u32 2147483647, %v2350
    %v2383 = vand.u32 2147483647, %v2351
    %v2384 = vand.u32 2147483647, %v2352
    %v2385 = vand.u32 2147483647, %v2353
    %v2386 = vand.u32 2147483647, %v2354
    %v2387 = vand.u32 2147483647, %v2355
    %v2388 = vand.u32 2147483647, %v2356
    %v2389 = vand.u32 2147483647, %v2357
    %v2390 = vand.u32 2147483647, %v2358
    %v2391 = vand.u32 2147483647, %v2359
    %v2392 = vand.u32 2147483647, %v2360
    %v2393 = vand.u32 2147483647, %v2361
    %v2394 = vand.u32 2147483647, %v2362
    %v2395 = vand.u32 2147483647, %v2363
    %v2396 = vand.u32 2147483647, %v2364
    %v2397 = vand.u32 2147483647, %v2365
    %v2398 = vand.u32 2147483647, %v2366
    %v2399 = vand.u32 2147483647, %v2367
    %v2400 = vadd.f32 %v2368, %v2369
    %v2401 = vadd.f32 %v2400, %v2370
    %v2402 = vadd.f32 %v2401, %v2371
    %v2403 = vrot.slane %v2402, 4
    %v2404 = vadd.f32 %v2402, %v2403
    %v2405 = vrot.slane %v2404, 2
    %v2406 = vadd.f32 %v2404, %v2405
    %v2407 = vrot.slane %v2406, 1
    %v2408 = vadd.f32 %v2406, %v2407
    %v2409 = vadd.f32 %v2372, %v2373
    %v2410 = vadd.f32 %v2409, %v2374
    %v2411 = vadd.f32 %v2410, %v2375
    %v2412 = vrot.slane %v2411, 4
    %v2413 = vadd.f32 %v2411, %v2412
    %v2414 = vrot.slane %v2413, 2
    %v2415 = vadd.f32 %v2413, %v2414
    %v2416 = vrot.slane %v2415, 1
    %v2417 = vadd.f32 %v2415, %v2416
    %v2418 = vadd.f32 %v2376, %v2377
    %v2419 = vadd.f32 %v2418, %v2378
    %v2420 = vadd.f32 %v2419, %v2379
    %v2421 = vrot.slane %v2420, 4
    %v2422 = vadd.f32 %v2420, %v2421
    %v2423 = vrot.slane %v2422, 2
    %v2424 = vadd.f32 %v2422, %v2423
    %v2425 = vrot.slane %v2424, 1
    %v2426 = vadd.f32 %v2424, %v2425
    %v2427 = vadd.f32 %v2380, %v2381
    %v2428 = vadd.f32 %v2427, %v2382
    %v2429 = vadd.f32 %v2428, %v2383
    %v2430 = vrot.slane %v2429, 4
    %v2431 = vadd.f32 %v2429, %v2430
    %v2432 = vrot.slane %v2431, 2
    %v2433 = vadd.f32 %v2431, %v2432
    %v2434 = vrot.slane %v2433, 1
    %v2435 = vadd.f32 %v2433, %v2434
    %v2436 = vadd.f32 %v2384, %v2385
    %v2437 = vadd.f32 %v2436, %v2386
    %v2438 = vadd.f32 %v2437, %v2387
    %v2439 = vrot.slane %v2438, 4
    %v2440 = vadd.f32 %v2438, %v2439
    %v2441 = vrot.slane %v2440, 2
    %v2442 = vadd.f32 %v2440, %v2441
    %v2443 = vrot.slane %v2442, 1
    %v2444 = vadd.f32 %v2442, %v2443
    %v2445 = vadd.f32 %v2388, %v2389
    %v2446 = vadd.f32 %v2445, %v2390
    %v2447 = vadd.f32 %v2446, %v2391
    %v2448 = vrot.slane %v2447, 4
    %v2449 = vadd.f32 %v2447, %v2448
    %v2450 = vrot.slane %v2449, 2
    %v2451 = vadd.f32 %v2449, %v2450
    %v2452 = vrot.slane %v2451, 1
    %v2453 = vadd.f32 %v2451, %v2452
    %v2454 = vadd.f32 %v2392, %v2393
    %v2455 = vadd.f32 %v2454, %v2394
    %v2456 = vadd.f32 %v2455, %v2395
    %v2457 = vrot.slane %v2456, 4
    %v2458 = vadd.f32 %v2456, %v2457
    %v2459 = vrot.slane %v2458, 2
    %v2460 = vadd.f32 %v2458, %v2459
    %v2461 = vrot.slane %v2460, 1
    %v2462 = vadd.f32 %v2460, %v2461
    %v2463 = vadd.f32 %v2396, %v2397
    %v2464 = vadd.f32 %v2463, %v2398
    %v2465 = vadd.f32 %v2464, %v2399
    %v2466 = vrot.slane %v2465, 4
    %v2467 = vadd.f32 %v2465, %v2466
    %v2468 = vrot.slane %v2467, 2
    %v2469 = vadd.f32 %v2467, %v2468
    %v2470 = vrot.slane %v2469, 1
    %v2471 = vadd.f32 %v2469, %v2470
    %v2472 = vadd.f32 %v2408, 1.0
    %v2473 = vadd.f32 %v2417, 1.0
    %v2474 = vadd.f32 %v2426, 1.0
    %v2475 = vadd.f32 %v2435, 1.0
    %v2476 = vadd.f32 %v2444, 1.0
    %v2477 = vadd.f32 %v2453, 1.0
    %v2478 = vadd.f32 %v2462, 1.0
    %v2479 = vadd.f32 %v2471, 1.0
    %v2480 = vrcp.pop %v2472
    %v2481 = vmul.f32 %v2472, %v2480
    %v2482 = vsub.f32 1.0, %v2481
    %v2483 = vmul.f32 %v2480, %v2482
    %v2484 = vadd.f32 %v2480, %v2483
    %vm2485 = vweird.f32 %v2472
    %vm2486 = vweird.f32 %v2480
    %vm2487 = vmor %vm2485, %vm2486
    %v2488 = vsel %vm2487, %v2480, %v2484
    %v2489 = vand.u32 2147483647, %v2472
    %vm2490 = vcmp.eq.f32.partialorder %v2489, 8.507059e+37
    %v2491 = vand.u32 %v2472, 2147483648
    %v2492 = vor.u32 1.1754944e-38, %v2491
    %v2493 = vsel %vm2490, %v2492, %v2488
    %v2494 = vmul.f32 1.0, %v2493
    %v2495 = vrcp.pop %v2473
    %v2496 = vmul.f32 %v2473, %v2495
    %v2497 = vsub.f32 1.0, %v2496
    %v2498 = vmul.f32 %v2495, %v2497
    %v2499 = vadd.f32 %v2495, %v2498
    %vm2500 = vweird.f32 %v2473
    %vm2501 = vweird.f32 %v2495
    %vm2502 = vmor %vm2500, %vm2501
    %v2503 = vsel %vm2502, %v2495, %v2499
    %v2504 = vand.u32 2147483647, %v2473
    %vm2505 = vcmp.eq.f32.partialorder %v2504, 8.507059e+37
    %v2506 = vand.u32 %v2473, 2147483648
    %v2507 = vor.u32 1.1754944e-38, %v2506
    %v2508 = vsel %vm2505, %v2507, %v2503
    %v2509 = vmul.f32 1.0, %v2508
    %v2510 = vrcp.pop %v2474
    %v2511 = vmul.f32 %v2474, %v2510
    %v2512 = vsub.f32 1.0, %v2511
    %v2513 = vmul.f32 %v2510, %v2512
    %v2514 = vadd.f32 %v2510, %v2513
    %vm2515 = vweird.f32 %v2474
    %vm2516 = vweird.f32 %v2510
    %vm2517 = vmor %vm2515, %vm2516
    %v2518 = vsel %vm2517, %v2510, %v2514
    %v2519 = vand.u32 2147483647, %v2474
    %vm2520 = vcmp.eq.f32.partialorder %v2519, 8.507059e+37
    %v2521 = vand.u32 %v2474, 2147483648
    %v2522 = vor.u32 1.1754944e-38, %v2521
    %v2523 = vsel %vm2520, %v2522, %v2518
    %v2524 = vmul.f32 1.0, %v2523
    %v2525 = vrcp.pop %v2475
    %v2526 = vmul.f32 %v2475, %v2525
    %v2527 = vsub.f32 1.0, %v2526
    %v2528 = vmul.f32 %v2525, %v2527
    %v2529 = vadd.f32 %v2525, %v2528
    %vm2530 = vweird.f32 %v2475
    %vm2531 = vweird.f32 %v2525
    %vm2532 = vmor %vm2530, %vm2531
    %v2533 = vsel %vm2532, %v2525, %v2529
    %v2534 = vand.u32 2147483647, %v2475
    %vm2535 = vcmp.eq.f32.partialorder %v2534, 8.507059e+37
    %v2536 = vand.u32 %v2475, 2147483648
    %v2537 = vor.u32 1.1754944e-38, %v2536
    %v2538 = vsel %vm2535, %v2537, %v2533
    %v2539 = vmul.f32 1.0, %v2538
    %v2540 = vrcp.pop %v2476
    %v2541 = vmul.f32 %v2476, %v2540
    %v2542 = vsub.f32 1.0, %v2541
    %v2543 = vmul.f32 %v2540, %v2542
    %v2544 = vadd.f32 %v2540, %v2543
    %vm2545 = vweird.f32 %v2476
    %vm2546 = vweird.f32 %v2540
    %vm2547 = vmor %vm2545, %vm2546
    %v2548 = vsel %vm2547, %v2540, %v2544
    %v2549 = vand.u32 2147483647, %v2476
    %vm2550 = vcmp.eq.f32.partialorder %v2549, 8.507059e+37
    %v2551 = vand.u32 %v2476, 2147483648
    %v2552 = vor.u32 1.1754944e-38, %v2551
    %v2553 = vsel %vm2550, %v2552, %v2548
    %v2554 = vmul.f32 1.0, %v2553
    %v2555 = vrcp.pop %v2477
    %v2556 = vmul.f32 %v2477, %v2555
    %v2557 = vsub.f32 1.0, %v2556
    %v2558 = vmul.f32 %v2555, %v2557
    %v2559 = vadd.f32 %v2555, %v2558
    %vm2560 = vweird.f32 %v2477
    %vm2561 = vweird.f32 %v2555
    %vm2562 = vmor %vm2560, %vm2561
    %v2563 = vsel %vm2562, %v2555, %v2559
    %v2564 = vand.u32 2147483647, %v2477
    %vm2565 = vcmp.eq.f32.partialorder %v2564, 8.507059e+37
    %v2566 = vand.u32 %v2477, 2147483648
    %v2567 = vor.u32 1.1754944e-38, %v2566
    %v2568 = vsel %vm2565, %v2567, %v2563
    %v2569 = vmul.f32 1.0, %v2568
    %v2570 = vrcp.pop %v2478
    %v2571 = vmul.f32 %v2478, %v2570
    %v2572 = vsub.f32 1.0, %v2571
    %v2573 = vmul.f32 %v2570, %v2572
    %v2574 = vadd.f32 %v2570, %v2573
    %vm2575 = vweird.f32 %v2478
    %vm2576 = vweird.f32 %v2570
    %vm2577 = vmor %vm2575, %vm2576
    %v2578 = vsel %vm2577, %v2570, %v2574
    %v2579 = vand.u32 2147483647, %v2478
    %vm2580 = vcmp.eq.f32.partialorder %v2579, 8.507059e+37
    %v2581 = vand.u32 %v2478, 2147483648
    %v2582 = vor.u32 1.1754944e-38, %v2581
    %v2583 = vsel %vm2580, %v2582, %v2578
    %v2584 = vmul.f32 1.0, %v2583
    %v2585 = vrcp.pop %v2479
    %v2586 = vmul.f32 %v2479, %v2585
    %v2587 = vsub.f32 1.0, %v2586
    %v2588 = vmul.f32 %v2585, %v2587
    %v2589 = vadd.f32 %v2585, %v2588
    %vm2590 = vweird.f32 %v2479
    %vm2591 = vweird.f32 %v2585
    %vm2592 = vmor %vm2590, %vm2591
    %v2593 = vsel %vm2592, %v2585, %v2589
    %v2594 = vand.u32 2147483647, %v2479
    %vm2595 = vcmp.eq.f32.partialorder %v2594, 8.507059e+37
    %v2596 = vand.u32 %v2479, 2147483648
    %v2597 = vor.u32 1.1754944e-38, %v2596
    %v2598 = vsel %vm2595, %v2597, %v2593
    %v2599 = vmul.f32 1.0, %v2598
    %v2600 = vmul.f32 %v2494, %v689
    %v2601 = vmul.f32 %v2494, %v692
    %v2602 = vmul.f32 %v2509, %v689
    %v2603 = vmul.f32 %v2509, %v692
    %v2604 = vmul.f32 %v2524, %v689
    %v2605 = vmul.f32 %v2524, %v692
    %v2606 = vmul.f32 %v2539, %v689
    %v2607 = vmul.f32 %v2539, %v692
    %v2608 = vmul.f32 %v2554, %v689
    %v2609 = vmul.f32 %v2554, %v692
    %v2610 = vmul.f32 %v2569, %v689
    %v2611 = vmul.f32 %v2569, %v692
    %v2612 = vmul.f32 %v2584, %v689
    %v2613 = vmul.f32 %v2584, %v692
    %v2614 = vmul.f32 %v2599, %v689
    %v2615 = vmul.f32 %v2599, %v692
    %v2616 = vadd.f32 %v2290, %v2600
    %v2617 = vadd.f32 %v2291, %v2601
    %v2618 = vadd.f32 %v2292, %v2602
    %v2619 = vadd.f32 %v2293, %v2603
    %v2620 = vadd.f32 %v2294, %v2604
    %v2621 = vadd.f32 %v2295, %v2605
    %v2622 = vadd.f32 %v2296, %v2606
    %v2623 = vadd.f32 %v2297, %v2607
    %v2624 = vadd.f32 %v2298, %v2608
    %v2625 = vadd.f32 %v2299, %v2609
    %v2626 = vadd.f32 %v2300, %v2610
    %v2627 = vadd.f32 %v2301, %v2611
    %v2628 = vadd.f32 %v2302, %v2612
    %v2629 = vadd.f32 %v2303, %v2613
    %v2630 = vadd.f32 %v2304, %v2614
    %v2631 = vadd.f32 %v2305, %v2615
    %v2632 = vmul.f32 %v2494, %v611
    %v2633 = vmul.f32 %v2494, %v614
    %v2634 = vmul.f32 %v2509, %v617
    %v2635 = vmul.f32 %v2509, %v620
    %v2636 = vmul.f32 %v2524, %v623
    %v2637 = vmul.f32 %v2524, %v626
    %v2638 = vmul.f32 %v2539, %v629
    %v2639 = vmul.f32 %v2539, %v632
    %v2640 = vmul.f32 %v2554, %v635
    %v2641 = vmul.f32 %v2554, %v638
    %v2642 = vmul.f32 %v2569, %v641
    %v2643 = vmul.f32 %v2569, %v644
    %v2644 = vmul.f32 %v2584, %v647
    %v2645 = vmul.f32 %v2584, %v650
    %v2646 = vmul.f32 %v2599, %v653
    %v2647 = vmul.f32 %v2599, %v656
    %v2648 = vadd.f32 %v2632, %v2634
    %v2649 = vadd.f32 %v2648, %v2636
    %v2650 = vadd.f32 %v2649, %v2638
    %v2651 = vadd.f32 %v2650, %v2640
    %v2652 = vadd.f32 %v2651, %v2642
    %v2653 = vadd.f32 %v2652, %v2644
    %v2654 = vadd.f32 %v2653, %v2646
    %v2655 = vadd.f32 %v2633, %v2635
    %v2656 = vadd.f32 %v2655, %v2637
    %v2657 = vadd.f32 %v2656, %v2639
    %v2658 = vadd.f32 %v2657, %v2641
    %v2659 = vadd.f32 %v2658, %v2643
    %v2660 = vadd.f32 %v2659, %v2645
    %v2661 = vadd.f32 %v2660, %v2647
    %v2662 = vsub.f32 %v62, %v118
    %v2663 = vsub.f32 %v63, %v119
    %v2664 = vsub.f32 %v64, %v120
    %v2665 = vsub.f32 %v65, %v121
    %v2666 = vsub.f32 %v66, %v118
    %v2667 = vsub.f32 %v67, %v119
    %v2668 = vsub.f32 %v68, %v120
    %v2669 = vsub.f32 %v69, %v121
    %v2670 = vsub.f32 %v70, %v118
    %v2671 = vsub.f32 %v71, %v119
    %v2672 = vsub.f32 %v72, %v120
    %v2673 = vsub.f32 %v73, %v121
    %v2674 = vsub.f32 %v74, %v118
    %v2675 = vsub.f32 %v75, %v119
    %v2676 = vsub.f32 %v76, %v120
    %v2677 = vsub.f32 %v77, %v121
    %v2678 = vsub.f32 %v78, %v118
    %v2679 = vsub.f32 %v79, %v119
    %v2680 = vsub.f32 %v80, %v120
    %v2681 = vsub.f32 %v81, %v121
    %v2682 = vsub.f32 %v82, %v118
    %v2683 = vsub.f32 %v83, %v119
    %v2684 = vsub.f32 %v84, %v120
    %v2685 = vsub.f32 %v85, %v121
    %v2686 = vsub.f32 %v86, %v118
    %v2687 = vsub.f32 %v87, %v119
    %v2688 = vsub.f32 %v88, %v120
    %v2689 = vsub.f32 %v89, %v121
    %v2690 = vsub.f32 %v90, %v118
    %v2691 = vsub.f32 %v91, %v119
    %v2692 = vsub.f32 %v92, %v120
    %v2693 = vsub.f32 %v93, %v121
    %v2694 = vand.u32 2147483647, %v2662
    %v2695 = vand.u32 2147483647, %v2663
    %v2696 = vand.u32 2147483647, %v2664
    %v2697 = vand.u32 2147483647, %v2665
    %v2698 = vand.u32 2147483647, %v2666
    %v2699 = vand.u32 2147483647, %v2667
    %v2700 = vand.u32 2147483647, %v2668
    %v2701 = vand.u32 2147483647, %v2669
    %v2702 = vand.u32 2147483647, %v2670
    %v2703 = vand.u32 2147483647, %v2671
    %v2704 = vand.u32 2147483647, %v2672
    %v2705 = vand.u32 2147483647, %v2673
    %v2706 = vand.u32 2147483647, %v2674
    %v2707 = vand.u32 2147483647, %v2675
    %v2708 = vand.u32 2147483647, %v2676
    %v2709 = vand.u32 2147483647, %v2677
    %v2710 = vand.u32 2147483647, %v2678
    %v2711 = vand.u32 2147483647, %v2679
    %v2712 = vand.u32 2147483647, %v2680
    %v2713 = vand.u32 2147483647, %v2681
    %v2714 = vand.u32 2147483647, %v2682
    %v2715 = vand.u32 2147483647, %v2683
    %v2716 = vand.u32 2147483647, %v2684
    %v2717 = vand.u32 2147483647, %v2685
    %v2718 = vand.u32 2147483647, %v2686
    %v2719 = vand.u32 2147483647, %v2687
    %v2720 = vand.u32 2147483647, %v2688
    %v2721 = vand.u32 2147483647, %v2689
    %v2722 = vand.u32 2147483647, %v2690
    %v2723 = vand.u32 2147483647, %v2691
    %v2724 = vand.u32 2147483647, %v2692
    %v2725 = vand.u32 2147483647, %v2693
    %v2726 = vadd.f32 %v2694, %v2695
    %v2727 = vadd.f32 %v2726, %v2696
    %v2728 = vadd.f32 %v2727, %v2697
    %v2729 = vrot.slane %v2728, 4
    %v2730 = vadd.f32 %v2728, %v2729
    %v2731 = vrot.slane %v2730, 2
    %v2732 = vadd.f32 %v2730, %v2731
    %v2733 = vrot.slane %v2732, 1
    %v2734 = vadd.f32 %v2732, %v2733
    %v2735 = vadd.f32 %v2698, %v2699
    %v2736 = vadd.f32 %v2735, %v2700
    %v2737 = vadd.f32 %v2736, %v2701
    %v2738 = vrot.slane %v2737, 4
    %v2739 = vadd.f32 %v2737, %v2738
    %v2740 = vrot.slane %v2739, 2
    %v2741 = vadd.f32 %v2739, %v2740
    %v2742 = vrot.slane %v2741, 1
    %v2743 = vadd.f32 %v2741, %v2742
    %v2744 = vadd.f32 %v2702, %v2703
    %v2745 = vadd.f32 %v2744, %v2704
    %v2746 = vadd.f32 %v2745, %v2705
    %v2747 = vrot.slane %v2746, 4
    %v2748 = vadd.f32 %v2746, %v2747
    %v2749 = vrot.slane %v2748, 2
    %v2750 = vadd.f32 %v2748, %v2749
    %v2751 = vrot.slane %v2750, 1
    %v2752 = vadd.f32 %v2750, %v2751
    %v2753 = vadd.f32 %v2706, %v2707
    %v2754 = vadd.f32 %v2753, %v2708
    %v2755 = vadd.f32 %v2754, %v2709
    %v2756 = vrot.slane %v2755, 4
    %v2757 = vadd.f32 %v2755, %v2756
    %v2758 = vrot.slane %v2757, 2
    %v2759 = vadd.f32 %v2757, %v2758
    %v2760 = vrot.slane %v2759, 1
    %v2761 = vadd.f32 %v2759, %v2760
    %v2762 = vadd.f32 %v2710, %v2711
    %v2763 = vadd.f32 %v2762, %v2712
    %v2764 = vadd.f32 %v2763, %v2713
    %v2765 = vrot.slane %v2764, 4
    %v2766 = vadd.f32 %v2764, %v2765
    %v2767 = vrot.slane %v2766, 2
    %v2768 = vadd.f32 %v2766, %v2767
    %v2769 = vrot.slane %v2768, 1
    %v2770 = vadd.f32 %v2768, %v2769
    %v2771 = vadd.f32 %v2714, %v2715
    %v2772 = vadd.f32 %v2771, %v2716
    %v2773 = vadd.f32 %v2772, %v2717
    %v2774 = vrot.slane %v2773, 4
    %v2775 = vadd.f32 %v2773, %v2774
    %v2776 = vrot.slane %v2775, 2
    %v2777 = vadd.f32 %v2775, %v2776
    %v2778 = vrot.slane %v2777, 1
    %v2779 = vadd.f32 %v2777, %v2778
    %v2780 = vadd.f32 %v2718, %v2719
    %v2781 = vadd.f32 %v2780, %v2720
    %v2782 = vadd.f32 %v2781, %v2721
    %v2783 = vrot.slane %v2782, 4
    %v2784 = vadd.f32 %v2782, %v2783
    %v2785 = vrot.slane %v2784, 2
    %v2786 = vadd.f32 %v2784, %v2785
    %v2787 = vrot.slane %v2786, 1
    %v2788 = vadd.f32 %v2786, %v2787
    %v2789 = vadd.f32 %v2722, %v2723
    %v2790 = vadd.f32 %v2789, %v2724
    %v2791 = vadd.f32 %v2790, %v2725
    %v2792 = vrot.slane %v2791, 4
    %v2793 = vadd.f32 %v2791, %v2792
    %v2794 = vrot.slane %v2793, 2
    %v2795 = vadd.f32 %v2793, %v2794
    %v2796 = vrot.slane %v2795, 1
    %v2797 = vadd.f32 %v2795, %v2796
    %v2798 = vadd.f32 %v2734, 1.0
    %v2799 = vadd.f32 %v2743, 1.0
    %v2800 = vadd.f32 %v2752, 1.0
    %v2801 = vadd.f32 %v2761, 1.0
    %v2802 = vadd.f32 %v2770, 1.0
    %v2803 = vadd.f32 %v2779, 1.0
    %v2804 = vadd.f32 %v2788, 1.0
    %v2805 = vadd.f32 %v2797, 1.0
    %v2806 = vrcp.pop %v2798
    %v2807 = vmul.f32 %v2798, %v2806
    %v2808 = vsub.f32 1.0, %v2807
    %v2809 = vmul.f32 %v2806, %v2808
    %v2810 = vadd.f32 %v2806, %v2809
    %vm2811 = vweird.f32 %v2798
    %vm2812 = vweird.f32 %v2806
    %vm2813 = vmor %vm2811, %vm2812
    %v2814 = vsel %vm2813, %v2806, %v2810
    %v2815 = vand.u32 2147483647, %v2798
    %vm2816 = vcmp.eq.f32.partialorder %v2815, 8.507059e+37
    %v2817 = vand.u32 %v2798, 2147483648
    %v2818 = vor.u32 1.1754944e-38, %v2817
    %v2819 = vsel %vm2816, %v2818, %v2814
    %v2820 = vmul.f32 1.0, %v2819
    %v2821 = vrcp.pop %v2799
    %v2822 = vmul.f32 %v2799, %v2821
    %v2823 = vsub.f32 1.0, %v2822
    %v2824 = vmul.f32 %v2821, %v2823
    %v2825 = vadd.f32 %v2821, %v2824
    %vm2826 = vweird.f32 %v2799
    %vm2827 = vweird.f32 %v2821
    %vm2828 = vmor %vm2826, %vm2827
    %v2829 = vsel %vm2828, %v2821, %v2825
    %v2830 = vand.u32 2147483647, %v2799
    %vm2831 = vcmp.eq.f32.partialorder %v2830, 8.507059e+37
    %v2832 = vand.u32 %v2799, 2147483648
    %v2833 = vor.u32 1.1754944e-38, %v2832
    %v2834 = vsel %vm2831, %v2833, %v2829
    %v2835 = vmul.f32 1.0, %v2834
    %v2836 = vrcp.pop %v2800
    %v2837 = vmul.f32 %v2800, %v2836
    %v2838 = vsub.f32 1.0, %v2837
    %v2839 = vmul.f32 %v2836, %v2838
    %v2840 = vadd.f32 %v2836, %v2839
    %vm2841 = vweird.f32 %v2800
    %vm2842 = vweird.f32 %v2836
    %vm2843 = vmor %vm2841, %vm2842
    %v2844 = vsel %vm2843, %v2836, %v2840
    %v2845 = vand.u32 2147483647, %v2800
    %vm2846 = vcmp.eq.f32.partialorder %v2845, 8.507059e+37
    %v2847 = vand.u32 %v2800, 2147483648
    %v2848 = vor.u32 1.1754944e-38, %v2847
    %v2849 = vsel %vm2846, %v2848, %v2844
    %v2850 = vmul.f32 1.0, %v2849
    %v2851 = vrcp.pop %v2801
    %v2852 = vmul.f32 %v2801, %v2851
    %v2853 = vsub.f32 1.0, %v2852
    %v2854 = vmul.f32 %v2851, %v2853
    %v2855 = vadd.f32 %v2851, %v2854
    %vm2856 = vweird.f32 %v2801
    %vm2857 = vweird.f32 %v2851
    %vm2858 = vmor %vm2856, %vm2857
    %v2859 = vsel %vm2858, %v2851, %v2855
    %v2860 = vand.u32 2147483647, %v2801
    %vm2861 = vcmp.eq.f32.partialorder %v2860, 8.507059e+37
    %v2862 = vand.u32 %v2801, 2147483648
    %v2863 = vor.u32 1.1754944e-38, %v2862
    %v2864 = vsel %vm2861, %v2863, %v2859
    %v2865 = vmul.f32 1.0, %v2864
    %v2866 = vrcp.pop %v2802
    %v2867 = vmul.f32 %v2802, %v2866
    %v2868 = vsub.f32 1.0, %v2867
    %v2869 = vmul.f32 %v2866, %v2868
    %v2870 = vadd.f32 %v2866, %v2869
    %vm2871 = vweird.f32 %v2802
    %vm2872 = vweird.f32 %v2866
    %vm2873 = vmor %vm2871, %vm2872
    %v2874 = vsel %vm2873, %v2866, %v2870
    %v2875 = vand.u32 2147483647, %v2802
    %vm2876 = vcmp.eq.f32.partialorder %v2875, 8.507059e+37
    %v2877 = vand.u32 %v2802, 2147483648
    %v2878 = vor.u32 1.1754944e-38, %v2877
    %v2879 = vsel %vm2876, %v2878, %v2874
    %v2880 = vmul.f32 1.0, %v2879
    %v2881 = vrcp.pop %v2803
    %v2882 = vmul.f32 %v2803, %v2881
    %v2883 = vsub.f32 1.0, %v2882
    %v2884 = vmul.f32 %v2881, %v2883
    %v2885 = vadd.f32 %v2881, %v2884
    %vm2886 = vweird.f32 %v2803
    %vm2887 = vweird.f32 %v2881
    %vm2888 = vmor %vm2886, %vm2887
    %v2889 = vsel %vm2888, %v2881, %v2885
    %v2890 = vand.u32 2147483647, %v2803
    %vm2891 = vcmp.eq.f32.partialorder %v2890, 8.507059e+37
    %v2892 = vand.u32 %v2803, 2147483648
    %v2893 = vor.u32 1.1754944e-38, %v2892
    %v2894 = vsel %vm2891, %v2893, %v2889
    %v2895 = vmul.f32 1.0, %v2894
    %v2896 = vrcp.pop %v2804
    %v2897 = vmul.f32 %v2804, %v2896
    %v2898 = vsub.f32 1.0, %v2897
    %v2899 = vmul.f32 %v2896, %v2898
    %v2900 = vadd.f32 %v2896, %v2899
    %vm2901 = vweird.f32 %v2804
    %vm2902 = vweird.f32 %v2896
    %vm2903 = vmor %vm2901, %vm2902
    %v2904 = vsel %vm2903, %v2896, %v2900
    %v2905 = vand.u32 2147483647, %v2804
    %vm2906 = vcmp.eq.f32.partialorder %v2905, 8.507059e+37
    %v2907 = vand.u32 %v2804, 2147483648
    %v2908 = vor.u32 1.1754944e-38, %v2907
    %v2909 = vsel %vm2906, %v2908, %v2904
    %v2910 = vmul.f32 1.0, %v2909
    %v2911 = vrcp.pop %v2805
    %v2912 = vmul.f32 %v2805, %v2911
    %v2913 = vsub.f32 1.0, %v2912
    %v2914 = vmul.f32 %v2911, %v2913
    %v2915 = vadd.f32 %v2911, %v2914
    %vm2916 = vweird.f32 %v2805
    %vm2917 = vweird.f32 %v2911
    %vm2918 = vmor %vm2916, %vm2917
    %v2919 = vsel %vm2918, %v2911, %v2915
    %v2920 = vand.u32 2147483647, %v2805
    %vm2921 = vcmp.eq.f32.partialorder %v2920, 8.507059e+37
    %v2922 = vand.u32 %v2805, 2147483648
    %v2923 = vor.u32 1.1754944e-38, %v2922
    %v2924 = vsel %vm2921, %v2923, %v2919
    %v2925 = vmul.f32 1.0, %v2924
    %v2926 = vmul.f32 %v2820, %v695
    %v2927 = vmul.f32 %v2820, %v698
    %v2928 = vmul.f32 %v2835, %v695
    %v2929 = vmul.f32 %v2835, %v698
    %v2930 = vmul.f32 %v2850, %v695
    %v2931 = vmul.f32 %v2850, %v698
    %v2932 = vmul.f32 %v2865, %v695
    %v2933 = vmul.f32 %v2865, %v698
    %v2934 = vmul.f32 %v2880, %v695
    %v2935 = vmul.f32 %v2880, %v698
    %v2936 = vmul.f32 %v2895, %v695
    %v2937 = vmul.f32 %v2895, %v698
    %v2938 = vmul.f32 %v2910, %v695
    %v2939 = vmul.f32 %v2910, %v698
    %v2940 = vmul.f32 %v2925, %v695
    %v2941 = vmul.f32 %v2925, %v698
    %v2942 = vadd.f32 %v2616, %v2926
    %v2943 = vadd.f32 %v2617, %v2927
    %v2944 = vadd.f32 %v2618, %v2928
    %v2945 = vadd.f32 %v2619, %v2929
    %v2946 = vadd.f32 %v2620, %v2930
    %v2947 = vadd.f32 %v2621, %v2931
    %v2948 = vadd.f32 %v2622, %v2932
    %v2949 = vadd.f32 %v2623, %v2933
    %v2950 = vadd.f32 %v2624, %v2934
    %v2951 = vadd.f32 %v2625, %v2935
    %v2952 = vadd.f32 %v2626, %v2936
    %v2953 = vadd.f32 %v2627, %v2937
    %v2954 = vadd.f32 %v2628, %v2938
    %v2955 = vadd.f32 %v2629, %v2939
    %v2956 = vadd.f32 %v2630, %v2940
    %v2957 = vadd.f32 %v2631, %v2941
    %v2958 = vmul.f32 %v2820, %v611
    %v2959 = vmul.f32 %v2820, %v614
    %v2960 = vmul.f32 %v2835, %v617
    %v2961 = vmul.f32 %v2835, %v620
    %v2962 = vmul.f32 %v2850, %v623
    %v2963 = vmul.f32 %v2850, %v626
    %v2964 = vmul.f32 %v2865, %v629
    %v2965 = vmul.f32 %v2865, %v632
    %v2966 = vmul.f32 %v2880, %v635
    %v2967 = vmul.f32 %v2880, %v638
    %v2968 = vmul.f32 %v2895, %v641
    %v2969 = vmul.f32 %v2895, %v644
    %v2970 = vmul.f32 %v2910, %v647
    %v2971 = vmul.f32 %v2910, %v650
    %v2972 = vmul.f32 %v2925, %v653
    %v2973 = vmul.f32 %v2925, %v656
    %v2974 = vadd.f32 %v2958, %v2960
    %v2975 = vadd.f32 %v2974, %v2962
    %v2976 = vadd.f32 %v2975, %v2964
    %v2977 = vadd.f32 %v2976, %v2966
    %v2978 = vadd.f32 %v2977, %v2968
    %v2979 = vadd.f32 %v2978, %v2970
    %v2980 = vadd.f32 %v2979, %v2972
    %v2981 = vadd.f32 %v2959, %v2961
    %v2982 = vadd.f32 %v2981, %v2963
    %v2983 = vadd.f32 %v2982, %v2965
    %v2984 = vadd.f32 %v2983, %v2967
    %v2985 = vadd.f32 %v2984, %v2969
    %v2986 = vadd.f32 %v2985, %v2971
    %v2987 = vadd.f32 %v2986, %v2973
    %v2988 = vsub.f32 %v62, %v122
    %v2989 = vsub.f32 %v63, %v123
    %v2990 = vsub.f32 %v64, %v124
    %v2991 = vsub.f32 %v65, %v125
    %v2992 = vsub.f32 %v66, %v122
    %v2993 = vsub.f32 %v67, %v123
    %v2994 = vsub.f32 %v68, %v124
    %v2995 = vsub.f32 %v69, %v125
    %v2996 = vsub.f32 %v70, %v122
    %v2997 = vsub.f32 %v71, %v123
    %v2998 = vsub.f32 %v72, %v124
    %v2999 = vsub.f32 %v73, %v125
    %v3000 = vsub.f32 %v74, %v122
    %v3001 = vsub.f32 %v75, %v123
    %v3002 = vsub.f32 %v76, %v124
    %v3003 = vsub.f32 %v77, %v125
    %v3004 = vsub.f32 %v78, %v122
    %v3005 = vsub.f32 %v79, %v123
    %v3006 = vsub.f32 %v80, %v124
    %v3007 = vsub.f32 %v81, %v125
    %v3008 = vsub.f32 %v82, %v122
    %v3009 = vsub.f32 %v83, %v123
    %v3010 = vsub.f32 %v84, %v124
    %v3011 = vsub.f32 %v85, %v125
    %v3012 = vsub.f32 %v86, %v122
    %v3013 = vsub.f32 %v87, %v123
    %v3014 = vsub.f32 %v88, %v124
    %v3015 = vsub.f32 %v89, %v125
    %v3016 = vsub.f32 %v90, %v122
    %v3017 = vsub.f32 %v91, %v123
    %v3018 = vsub.f32 %v92, %v124
    %v3019 = vsub.f32 %v93, %v125
    %v3020 = vand.u32 2147483647, %v2988
    %v3021 = vand.u32 2147483647, %v2989
    %v3022 = vand.u32 2147483647, %v2990
    %v3023 = vand.u32 2147483647, %v2991
    %v3024 = vand.u32 2147483647, %v2992
    %v3025 = vand.u32 2147483647, %v2993
    %v3026 = vand.u32 2147483647, %v2994
    %v3027 = vand.u32 2147483647, %v2995
    %v3028 = vand.u32 2147483647, %v2996
    %v3029 = vand.u32 2147483647, %v2997
    %v3030 = vand.u32 2147483647, %v2998
    %v3031 = vand.u32 2147483647, %v2999
    %v3032 = vand.u32 2147483647, %v3000
    %v3033 = vand.u32 2147483647, %v3001
    %v3034 = vand.u32 2147483647, %v3002
    %v3035 = vand.u32 2147483647, %v3003
    %v3036 = vand.u32 2147483647, %v3004
    %v3037 = vand.u32 2147483647, %v3005
    %v3038 = vand.u32 2147483647, %v3006
    %v3039 = vand.u32 2147483647, %v3007
    %v3040 = vand.u32 2147483647, %v3008
    %v3041 = vand.u32 2147483647, %v3009
    %v3042 = vand.u32 2147483647, %v3010
    %v3043 = vand.u32 2147483647, %v3011
    %v3044 = vand.u32 2147483647, %v3012
    %v3045 = vand.u32 2147483647, %v3013
    %v3046 = vand.u32 2147483647, %v3014
    %v3047 = vand.u32 2147483647, %v3015
    %v3048 = vand.u32 2147483647, %v3016
    %v3049 = vand.u32 2147483647, %v3017
    %v3050 = vand.u32 2147483647, %v3018
    %v3051 = vand.u32 2147483647, %v3019
    %v3052 = vadd.f32 %v3020, %v3021
    %v3053 = vadd.f32 %v3052, %v3022
    %v3054 = vadd.f32 %v3053, %v3023
    %v3055 = vrot.slane %v3054, 4
    %v3056 = vadd.f32 %v3054, %v3055
    %v3057 = vrot.slane %v3056, 2
    %v3058 = vadd.f32 %v3056, %v3057
    %v3059 = vrot.slane %v3058, 1
    %v3060 = vadd.f32 %v3058, %v3059
    %v3061 = vadd.f32 %v3024, %v3025
    %v3062 = vadd.f32 %v3061, %v3026
    %v3063 = vadd.f32 %v3062, %v3027
    %v3064 = vrot.slane %v3063, 4
    %v3065 = vadd.f32 %v3063, %v3064
    %v3066 = vrot.slane %v3065, 2
    %v3067 = vadd.f32 %v3065, %v3066
    %v3068 = vrot.slane %v3067, 1
    %v3069 = vadd.f32 %v3067, %v3068
    %v3070 = vadd.f32 %v3028, %v3029
    %v3071 = vadd.f32 %v3070, %v3030
    %v3072 = vadd.f32 %v3071, %v3031
    %v3073 = vrot.slane %v3072, 4
    %v3074 = vadd.f32 %v3072, %v3073
    %v3075 = vrot.slane %v3074, 2
    %v3076 = vadd.f32 %v3074, %v3075
    %v3077 = vrot.slane %v3076, 1
    %v3078 = vadd.f32 %v3076, %v3077
    %v3079 = vadd.f32 %v3032, %v3033
    %v3080 = vadd.f32 %v3079, %v3034
    %v3081 = vadd.f32 %v3080, %v3035
    %v3082 = vrot.slane %v3081, 4
    %v3083 = vadd.f32 %v3081, %v3082
    %v3084 = vrot.slane %v3083, 2
    %v3085 = vadd.f32 %v3083, %v3084
    %v3086 = vrot.slane %v3085, 1
    %v3087 = vadd.f32 %v3085, %v3086
    %v3088 = vadd.f32 %v3036, %v3037
    %v3089 = vadd.f32 %v3088, %v3038
    %v3090 = vadd.f32 %v3089, %v3039
    %v3091 = vrot.slane %v3090, 4
    %v3092 = vadd.f32 %v3090, %v3091
    %v3093 = vrot.slane %v3092, 2
    %v3094 = vadd.f32 %v3092, %v3093
    %v3095 = vrot.slane %v3094, 1
    %v3096 = vadd.f32 %v3094, %v3095
    %v3097 = vadd.f32 %v3040, %v3041
    %v3098 = vadd.f32 %v3097, %v3042
    %v3099 = vadd.f32 %v3098, %v3043
    %v3100 = vrot.slane %v3099, 4
    %v3101 = vadd.f32 %v3099, %v3100
    %v3102 = vrot.slane %v3101, 2
    %v3103 = vadd.f32 %v3101, %v3102
    %v3104 = vrot.slane %v3103, 1
    %v3105 = vadd.f32 %v3103, %v3104
    %v3106 = vadd.f32 %v3044, %v3045
    %v3107 = vadd.f32 %v3106, %v3046
    %v3108 = vadd.f32 %v3107, %v3047
    %v3109 = vrot.slane %v3108, 4
    %v3110 = vadd.f32 %v3108, %v3109
    %v3111 = vrot.slane %v3110, 2
    %v3112 = vadd.f32 %v3110, %v3111
    %v3113 = vrot.slane %v3112, 1
    %v3114 = vadd.f32 %v3112, %v3113
    %v3115 = vadd.f32 %v3048, %v3049
    %v3116 = vadd.f32 %v3115, %v3050
    %v3117 = vadd.f32 %v3116, %v3051
    %v3118 = vrot.slane %v3117, 4
    %v3119 = vadd.f32 %v3117, %v3118
    %v3120 = vrot.slane %v3119, 2
    %v3121 = vadd.f32 %v3119, %v3120
    %v3122 = vrot.slane %v3121, 1
    %v3123 = vadd.f32 %v3121, %v3122
    %v3124 = vadd.f32 %v3060, 1.0
    %v3125 = vadd.f32 %v3069, 1.0
    %v3126 = vadd.f32 %v3078, 1.0
    %v3127 = vadd.f32 %v3087, 1.0
    %v3128 = vadd.f32 %v3096, 1.0
    %v3129 = vadd.f32 %v3105, 1.0
    %v3130 = vadd.f32 %v3114, 1.0
    %v3131 = vadd.f32 %v3123, 1.0
    %v3132 = vrcp.pop %v3124
    %v3133 = vmul.f32 %v3124, %v3132
    %v3134 = vsub.f32 1.0, %v3133
    %v3135 = vmul.f32 %v3132, %v3134
    %v3136 = vadd.f32 %v3132, %v3135
    %vm3137 = vweird.f32 %v3124
    %vm3138 = vweird.f32 %v3132
    %vm3139 = vmor %vm3137, %vm3138
    %v3140 = vsel %vm3139, %v3132, %v3136
    %v3141 = vand.u32 2147483647, %v3124
    %vm3142 = vcmp.eq.f32.partialorder %v3141, 8.507059e+37
    %v3143 = vand.u32 %v3124, 2147483648
    %v3144 = vor.u32 1.1754944e-38, %v3143
    %v3145 = vsel %vm3142, %v3144, %v3140
    %v3146 = vmul.f32 1.0, %v3145
    %v3147 = vrcp.pop %v3125
    %v3148 = vmul.f32 %v3125, %v3147
    %v3149 = vsub.f32 1.0, %v3148
    %v3150 = vmul.f32 %v3147, %v3149
    %v3151 = vadd.f32 %v3147, %v3150
    %vm3152 = vweird.f32 %v3125
    %vm3153 = vweird.f32 %v3147
    %vm3154 = vmor %vm3152, %vm3153
    %v3155 = vsel %vm3154, %v3147, %v3151
    %v3156 = vand.u32 2147483647, %v3125
    %vm3157 = vcmp.eq.f32.partialorder %v3156, 8.507059e+37
    %v3158 = vand.u32 %v3125, 2147483648
    %v3159 = vor.u32 1.1754944e-38, %v3158
    %v3160 = vsel %vm3157, %v3159, %v3155
    %v3161 = vmul.f32 1.0, %v3160
    %v3162 = vrcp.pop %v3126
    %v3163 = vmul.f32 %v3126, %v3162
    %v3164 = vsub.f32 1.0, %v3163
    %v3165 = vmul.f32 %v3162, %v3164
    %v3166 = vadd.f32 %v3162, %v3165
    %vm3167 = vweird.f32 %v3126
    %vm3168 = vweird.f32 %v3162
    %vm3169 = vmor %vm3167, %vm3168
    %v3170 = vsel %vm3169, %v3162, %v3166
    %v3171 = vand.u32 2147483647, %v3126
    %vm3172 = vcmp.eq.f32.partialorder %v3171, 8.507059e+37
    %v3173 = vand.u32 %v3126, 2147483648
    %v3174 = vor.u32 1.1754944e-38, %v3173
    %v3175 = vsel %vm3172, %v3174, %v3170
    %v3176 = vmul.f32 1.0, %v3175
    %v3177 = vrcp.pop %v3127
    %v3178 = vmul.f32 %v3127, %v3177
    %v3179 = vsub.f32 1.0, %v3178
    %v3180 = vmul.f32 %v3177, %v3179
    %v3181 = vadd.f32 %v3177, %v3180
    %vm3182 = vweird.f32 %v3127
    %vm3183 = vweird.f32 %v3177
    %vm3184 = vmor %vm3182, %vm3183
    %v3185 = vsel %vm3184, %v3177, %v3181
    %v3186 = vand.u32 2147483647, %v3127
    %vm3187 = vcmp.eq.f32.partialorder %v3186, 8.507059e+37
    %v3188 = vand.u32 %v3127, 2147483648
    %v3189 = vor.u32 1.1754944e-38, %v3188
    %v3190 = vsel %vm3187, %v3189, %v3185
    %v3191 = vmul.f32 1.0, %v3190
    %v3192 = vrcp.pop %v3128
    %v3193 = vmul.f32 %v3128, %v3192
    %v3194 = vsub.f32 1.0, %v3193
    %v3195 = vmul.f32 %v3192, %v3194
    %v3196 = vadd.f32 %v3192, %v3195
    %vm3197 = vweird.f32 %v3128
    %vm3198 = vweird.f32 %v3192
    %vm3199 = vmor %vm3197, %vm3198
    %v3200 = vsel %vm3199, %v3192, %v3196
    %v3201 = vand.u32 2147483647, %v3128
    %vm3202 = vcmp.eq.f32.partialorder %v3201, 8.507059e+37
    %v3203 = vand.u32 %v3128, 2147483648
    %v3204 = vor.u32 1.1754944e-38, %v3203
    %v3205 = vsel %vm3202, %v3204, %v3200
    %v3206 = vmul.f32 1.0, %v3205
    %v3207 = vrcp.pop %v3129
    %v3208 = vmul.f32 %v3129, %v3207
    %v3209 = vsub.f32 1.0, %v3208
    %v3210 = vmul.f32 %v3207, %v3209
    %v3211 = vadd.f32 %v3207, %v3210
    %vm3212 = vweird.f32 %v3129
    %vm3213 = vweird.f32 %v3207
    %vm3214 = vmor %vm3212, %vm3213
    %v3215 = vsel %vm3214, %v3207, %v3211
    %v3216 = vand.u32 2147483647, %v3129
    %vm3217 = vcmp.eq.f32.partialorder %v3216, 8.507059e+37
    %v3218 = vand.u32 %v3129, 2147483648
    %v3219 = vor.u32 1.1754944e-38, %v3218
    %v3220 = vsel %vm3217, %v3219, %v3215
    %v3221 = vmul.f32 1.0, %v3220
    %v3222 = vrcp.pop %v3130
    %v3223 = vmul.f32 %v3130, %v3222
    %v3224 = vsub.f32 1.0, %v3223
    %v3225 = vmul.f32 %v3222, %v3224
    %v3226 = vadd.f32 %v3222, %v3225
    %vm3227 = vweird.f32 %v3130
    %vm3228 = vweird.f32 %v3222
    %vm3229 = vmor %vm3227, %vm3228
    %v3230 = vsel %vm3229, %v3222, %v3226
    %v3231 = vand.u32 2147483647, %v3130
    %vm3232 = vcmp.eq.f32.partialorder %v3231, 8.507059e+37
    %v3233 = vand.u32 %v3130, 2147483648
    %v3234 = vor.u32 1.1754944e-38, %v3233
    %v3235 = vsel %vm3232, %v3234, %v3230
    %v3236 = vmul.f32 1.0, %v3235
    %v3237 = vrcp.pop %v3131
    %v3238 = vmul.f32 %v3131, %v3237
    %v3239 = vsub.f32 1.0, %v3238
    %v3240 = vmul.f32 %v3237, %v3239
    %v3241 = vadd.f32 %v3237, %v3240
    %vm3242 = vweird.f32 %v3131
    %vm3243 = vweird.f32 %v3237
    %vm3244 = vmor %vm3242, %vm3243
    %v3245 = vsel %vm3244, %v3237, %v3241
    %v3246 = vand.u32 2147483647, %v3131
    %vm3247 = vcmp.eq.f32.partialorder %v3246, 8.507059e+37
    %v3248 = vand.u32 %v3131, 2147483648
    %v3249 = vor.u32 1.1754944e-38, %v3248
    %v3250 = vsel %vm3247, %v3249, %v3245
    %v3251 = vmul.f32 1.0, %v3250
    %v3252 = vmul.f32 %v3146, %v701
    %v3253 = vmul.f32 %v3146, %v704
    %v3254 = vmul.f32 %v3161, %v701
    %v3255 = vmul.f32 %v3161, %v704
    %v3256 = vmul.f32 %v3176, %v701
    %v3257 = vmul.f32 %v3176, %v704
    %v3258 = vmul.f32 %v3191, %v701
    %v3259 = vmul.f32 %v3191, %v704
    %v3260 = vmul.f32 %v3206, %v701
    %v3261 = vmul.f32 %v3206, %v704
    %v3262 = vmul.f32 %v3221, %v701
    %v3263 = vmul.f32 %v3221, %v704
    %v3264 = vmul.f32 %v3236, %v701
    %v3265 = vmul.f32 %v3236, %v704
    %v3266 = vmul.f32 %v3251, %v701
    %v3267 = vmul.f32 %v3251, %v704
    %v3268 = vadd.f32 %v2942, %v3252
    %v3269 = vadd.f32 %v2943, %v3253
    %v3270 = vadd.f32 %v2944, %v3254
    %v3271 = vadd.f32 %v2945, %v3255
    %v3272 = vadd.f32 %v2946, %v3256
    %v3273 = vadd.f32 %v2947, %v3257
    %v3274 = vadd.f32 %v2948, %v3258
    %v3275 = vadd.f32 %v2949, %v3259
    %v3276 = vadd.f32 %v2950, %v3260
    %v3277 = vadd.f32 %v2951, %v3261
    %v3278 = vadd.f32 %v2952, %v3262
    %v3279 = vadd.f32 %v2953, %v3263
    %v3280 = vadd.f32 %v2954, %v3264
    %v3281 = vadd.f32 %v2955, %v3265
    %v3282 = vadd.f32 %v2956, %v3266
    %v3283 = vadd.f32 %v2957, %v3267
    %v3284 = vmul.f32 %v3146, %v611
    %v3285 = vmul.f32 %v3146, %v614
    %v3286 = vmul.f32 %v3161, %v617
    %v3287 = vmul.f32 %v3161, %v620
    %v3288 = vmul.f32 %v3176, %v623
    %v3289 = vmul.f32 %v3176, %v626
    %v3290 = vmul.f32 %v3191, %v629
    %v3291 = vmul.f32 %v3191, %v632
    %v3292 = vmul.f32 %v3206, %v635
    %v3293 = vmul.f32 %v3206, %v638
    %v3294 = vmul.f32 %v3221, %v641
    %v3295 = vmul.f32 %v3221, %v644
    %v3296 = vmul.f32 %v3236, %v647
    %v3297 = vmul.f32 %v3236, %v650
    %v3298 = vmul.f32 %v3251, %v653
    %v3299 = vmul.f32 %v3251, %v656
    %v3300 = vadd.f32 %v3284, %v3286
    %v3301 = vadd.f32 %v3300, %v3288
    %v3302 = vadd.f32 %v3301, %v3290
    %v3303 = vadd.f32 %v3302, %v3292
    %v3304 = vadd.f32 %v3303, %v3294
    %v3305 = vadd.f32 %v3304, %v3296
    %v3306 = vadd.f32 %v3305, %v3298
    %v3307 = vadd.f32 %v3285, %v3287
    %v3308 = vadd.f32 %v3307, %v3289
    %v3309 = vadd.f32 %v3308, %v3291
    %v3310 = vadd.f32 %v3309, %v3293
    %v3311 = vadd.f32 %v3310, %v3295
    %v3312 = vadd.f32 %v3311, %v3297
    %v3313 = vadd.f32 %v3312, %v3299
    %v3314 = vadd.f32 %v611, %v3268
    %v3315 = vadd.f32 %v614, %v3269
    %v3316 = vadd.f32 %v617, %v3270
    %v3317 = vadd.f32 %v620, %v3271
    %v3318 = vadd.f32 %v623, %v3272
    %v3319 = vadd.f32 %v626, %v3273
    %v3320 = vadd.f32 %v629, %v3274
    %v3321 = vadd.f32 %v632, %v3275
    %v3322 = vadd.f32 %v635, %v3276
    %v3323 = vadd.f32 %v638, %v3277
    %v3324 = vadd.f32 %v641, %v3278
    %v3325 = vadd.f32 %v644, %v3279
    %v3326 = vadd.f32 %v647, %v3280
    %v3327 = vadd.f32 %v650, %v3281
    %v3328 = vadd.f32 %v653, %v3282
    %v3329 = vadd.f32 %v656, %v3283
    %v3330 = vmax.f32 %v3314, 0.0
    %v3331 = vmax.f32 %v3315, 0.0
    %v3332 = vmax.f32 %v3316, 0.0
    %v3333 = vmax.f32 %v3317, 0.0
    %v3334 = vmax.f32 %v3318, 0.0
    %v3335 = vmax.f32 %v3319, 0.0
    %v3336 = vmax.f32 %v3320, 0.0
    %v3337 = vmax.f32 %v3321, 0.0
    %v3338 = vmax.f32 %v3322, 0.0
    %v3339 = vmax.f32 %v3323, 0.0
    %v3340 = vmax.f32 %v3324, 0.0
    %v3341 = vmax.f32 %v3325, 0.0
    %v3342 = vmax.f32 %v3326, 0.0
    %v3343 = vmax.f32 %v3327, 0.0
    %v3344 = vmax.f32 %v3328, 0.0
    %v3345 = vmax.f32 %v3329, 0.0
    %v3346 = vadd.f32 %v659, %v1024
    %v3347 = vadd.f32 %v662, %v1031
    %v3348 = vadd.f32 %v665, %v1350
    %v3349 = vadd.f32 %v668, %v1357
    %v3350 = vadd.f32 %v671, %v1676
    %v3351 = vadd.f32 %v674, %v1683
    %v3352 = vadd.f32 %v677, %v2002
    %v3353 = vadd.f32 %v680, %v2009
    %v3354 = vadd.f32 %v683, %v2328
    %v3355 = vadd.f32 %v686, %v2335
    %v3356 = vadd.f32 %v689, %v2654
    %v3357 = vadd.f32 %v692, %v2661
    %v3358 = vadd.f32 %v695, %v2980
    %v3359 = vadd.f32 %v698, %v2987
    %v3360 = vadd.f32 %v701, %v3306
    %v3361 = vadd.f32 %v704, %v3313
    %v3362 = vmax.f32 %v3346, 0.0
    %v3363 = vmax.f32 %v3347, 0.0
    %v3364 = vmax.f32 %v3348, 0.0
    %v3365 = vmax.f32 %v3349, 0.0
    %v3366 = vmax.f32 %v3350, 0.0
    %v3367 = vmax.f32 %v3351, 0.0
    %v3368 = vmax.f32 %v3352, 0.0
    %v3369 = vmax.f32 %v3353, 0.0
    %v3370 = vmax.f32 %v3354, 0.0
    %v3371 = vmax.f32 %v3355, 0.0
    %v3372 = vmax.f32 %v3356, 0.0
    %v3373 = vmax.f32 %v3357, 0.0
    %v3374 = vmax.f32 %v3358, 0.0
    %v3375 = vmax.f32 %v3359, 0.0
    %v3376 = vmax.f32 %v3360, 0.0
    %v3377 = vmax.f32 %v3361, 0.0
    %v3378 = vld [vmem:[#allocation5] sm:$0xff]
    %v3379 = vld [vmem:[#allocation5 + $0x8] sm:$0xff]
    %v3380 = vld [vmem:[#allocation5 + $0x10] sm:$0xff]
    %v3381 = vld [vmem:[#allocation5 + $0x18] sm:$0xff]
    %3382 = vmatpush.msra.mxu0 %v3345
    %3383 = vmatpush.msra.mxu0 %v3344
    %3384 = vmatpush.msra.mxu0 %v3343
    %3385 = vmatpush.msra.mxu0 %v3342
    %3386 = vmatpush.msra.mxu0 %v3341
    %3387 = vmatpush.msra.mxu0 %v3340
    %3388 = vmatpush.msra.mxu0 %v3339
    %3389 = vmatpush.msra.mxu0 %v3338
    %3390 = vmatpush.msra.mxu0 %v3337
    %3391 = vmatpush.msra.mxu0 %v3336
    %3392 = vmatpush.msra.mxu0 %v3335
    %3393 = vmatpush.msra.mxu0 %v3334
    %3394 = vmatpush.msra.mxu0 %v3333
    %3395 = vmatpush.msra.mxu0 %v3332
    %3396 = vmatpush.msra.mxu0 %v3331
    %3397 = vmatpush.msra.mxu0 %v3330
    %3398 = vmatmul.f32.gmra.mxu0 %v3378
    %v3399 = vpop.f32.mrf.mxu0
    %v3400 = vadd.f32 0.0, %v3399
    %3401 = vmatmul.f32.gmra.mxu0 %v3380
    %v3402 = vpop.f32.mrf.mxu0
    %v3403 = vadd.f32 0.0, %v3402
    %3404 = vdwg.mxu0
    %3405 = vmatpush.msra.mxu0 %v3377
    %3406 = vmatpush.msra.mxu0 %v3376
    %3407 = vmatpush.msra.mxu0 %v3375
    %3408 = vmatpush.msra.mxu0 %v3374
    %3409 = vmatpush.msra.mxu0 %v3373
    %3410 = vmatpush.msra.mxu0 %v3372
    %3411 = vmatpush.msra.mxu0 %v3371
    %3412 = vmatpush.msra.mxu0 %v3370
    %3413 = vmatpush.msra.mxu0 %v3369
    %3414 = vmatpush.msra.mxu0 %v3368
    %3415 = vmatpush.msra.mxu0 %v3367
    %3416 = vmatpush.msra.mxu0 %v3366
    %3417 = vmatpush.msra.mxu0 %v3365
    %3418 = vmatpush.msra.mxu0 %v3364
    %3419 = vmatpush.msra.mxu0 %v3363
    %3420 = vmatpush.msra.mxu0 %v3362
    %3421 = vmatmul.f32.gmra.mxu0 %v3379
    %v3422 = vpop.f32.mrf.mxu0
    %v3423 = vadd.f32 %v3400, %v3422
    %3424 = vmatmul.f32.gmra.mxu0 %v3381
    %v3425 = vpop.f32.mrf.mxu0
    %v3426 = vadd.f32 %v3403, %v3425
    %3427 = vdwg.mxu0
    %v3428 = vrot.slane %v3423, 4
    %v3429 = vmax.f32 %v3423, %v3428
    %v3430 = vrot.slane %v3429, 2
    %v3431 = vmax.f32 %v3429, %v3430
    %v3432 = vrot.slane %v3431, 1
    %v3433 = vmax.f32 %v3431, %v3432
    %v3434 = vsub.f32 %v3423, %v3433
    %v3435 = vmul.f32 %v3434, 1.442695
    %v3436 = vpow.pop %v3435
    %v3437 = vrot.slane %v3426, 4
    %v3438 = vmax.f32 %v3426, %v3437
    %v3439 = vrot.slane %v3438, 2
    %v3440 = vmax.f32 %v3438, %v3439
    %v3441 = vrot.slane %v3440, 1
    %v3442 = vmax.f32 %v3440, %v3441
    %v3443 = vsub.f32 %v3426, %v3442
    %v3444 = vmul.f32 %v3443, 1.442695
    %v3445 = vpow.pop %v3444
    %v3446 = vrot.slane %v3436, 4
    %v3447 = vadd.f32 %v3436, %v3446
    %v3448 = vrot.slane %v3447, 2
    %v3449 = vadd.f32 %v3447, %v3448
    %v3450 = vrot.slane %v3449, 1
    %v3451 = vadd.f32 %v3449, %v3450
    %v3452 = vrcp.pop %v3451
    %v3453 = vmul.f32 %v3451, %v3452
    %v3454 = vsub.f32 1.0, %v3453
    %v3455 = vmul.f32 %v3452, %v3454
    %v3456 = vadd.f32 %v3452, %v3455
    %vm3457 = vweird.f32 %v3451
    %vm3458 = vweird.f32 %v3452
    %vm3459 = vmor %vm3457, %vm3458
    %v3460 = vsel %vm3459, %v3452, %v3456
    %v3461 = vand.u32 2147483647, %v3451
    %vm3462 = vcmp.eq.f32.partialorder %v3461, 8.507059e+37
    %v3463 = vand.u32 %v3451, 2147483648
    %v3464 = vor.u32 1.1754944e-38, %v3463
    %v3465 = vsel %vm3462, %v3464, %v3460
    %v3466 = vmul.f32 %v3436, %v3465
    %v3467 = vrot.slane %v3445, 4
    %v3468 = vadd.f32 %v3445, %v3467
    %v3469 = vrot.slane %v3468, 2
    %v3470 = vadd.f32 %v3468, %v3469
    %v3471 = vrot.slane %v3470, 1
    %v3472 = vadd.f32 %v3470, %v3471
    %v3473 = vrcp.pop %v3472
    %v3474 = vmul.f32 %v3472, %v3473
    %v3475 = vsub.f32 1.0, %v3474
    %v3476 = vmul.f32 %v3473, %v3475
    %v3477 = vadd.f32 %v3473, %v3476
    %vm3478 = vweird.f32 %v3472
    %vm3479 = vweird.f32 %v3473
    %vm3480 = vmor %vm3478, %vm3479
    %v3481 = vsel %vm3480, %v3473, %v3477
    %v3482 = vand.u32 2147483647, %v3472
    %vm3483 = vcmp.eq.f32.partialorder %v3482, 8.507059e+37
    %v3484 = vand.u32 %v3472, 2147483648
    %v3485 = vor.u32 1.1754944e-38, %v3484
    %v3486 = vsel %vm3483, %v3485, %v3481
    %v3487 = vmul.f32 %v3445, %v3486
    %3488 = vst [vmem:[#allocation8] sm:$0xff] %v3466
    %3489 = vst [vmem:[#allocation8 + $0x8] sm:$0xff] %v3487
    // Predicated region
    $region26: #{tpu_custom_call.1} parent=1 // pred_check
      _
    $region27: #{tpu_custom_call.1} parent=1 // pred_check_branch
      %3491 = sbr.rel (0) target = $region29
    $region28: #{tpu_custom_call.1} parent=1 // pred_region
      %3493 = vsyncadd [#allocation4], 0
      %s3494 = sshll.u32 [#allocation8], 4
      %s3495 = int_to_ptr.vmem [resolvable:$true] %s3494
      %s3496 = sshll.u32 %s3, 4
      %s3497 = int_to_ptr.hbm [resolvable:$true] %s3496
      %3502 = dma.vmem_to_hbm [thread:$0]  %s3495, 256, %s3497, [#allocation4], 128, 128, 8
    $region29: #{tpu_custom_call.1} parent=1 // pred_fallthru
      _
    // Predicated region
    $region30: #{tpu_custom_call.1} parent=1 // pred_check
      _
    $region31: #{tpu_custom_call.1} parent=1 // pred_check_branch
      %3504 = sbr.rel (0) target = $region33
    $region32: #{tpu_custom_call.1} parent=1 // pred_region
      %3506 = dma.done [#allocation4], 256
    $region33: #{tpu_custom_call.1} parent=1 // pred_fallthru
      _
    %3507 = vsyncpa [#allocation3], 1
    %3508 = vsyncpa [#allocation6], 1
    %3509 = vsyncpa [#allocation4], 1

</llo_original>
